<compile_context>
chip_gen: v7x
topology: tpu7x:2x2x1
jax: 0.10.0
libtpu: 0.0.40
codegen_flags: <defaults>
</compile_context>

<pallas_src>
import math

import jax
import jax.numpy as jnp
from jax import lax
from jax.experimental import pallas as pl
from jax.experimental.pallas import tpu as pltpu

block_size = 8     # T (max sequence length, also the tril size)
n_embed = 32       # C


def _mha_kernel(x_ref, w_ref, o_ref):
    # x_ref: (B, T, C)           input activations
    # w_ref: (3, nh, C, H)       packed [Wq*scale, Wk, Wv], head-major
    # o_ref: (B*T, nh*H)         output slab, heads concatenated along lanes
    f32 = jnp.float32
    B, T, C = x_ref.shape
    _, nh, _, H = w_ref.shape
    G = B * nh                   # one leading-dim slot per (batch, head) pair

    wq = w_ref[0]                # (nh, C, H) — leading-dim indexing, no lane slicing
    wk = w_ref[1]
    wv = w_ref[2]

    # Per-batch projections, batched over heads via a leading batch dim: the activation
    # row-block is replicated across heads (cheap vreg copies, no XLU lane shuffles) so
    # every (batch, head) pair owns its own leading-dim slot from here on.
    s_parts, v_parts = [], []
    for b in range(B):                                  # static unroll: B = 2
        xb = jnp.broadcast_to(x_ref[b], (nh, T, C))     # (nh, T, C)
        q = jnp.einsum('htc,hcd->htd', xb, wq, preferred_element_type=f32)  # scale folded
        k = jnp.einsum('htc,hcd->htd', xb, wk, preferred_element_type=f32)
        v = jnp.einsum('htc,hcd->htd', xb, wv, preferred_element_type=f32)
        # scores for all heads of this batch in one batched NT contraction
        s_parts.append(jnp.einsum('htd,hsd->hts', q, k, preferred_element_type=f32))
        v_parts.append(v)

    # Leading-dim concatenation = vreg grouping (no data shuffles): g = b*nh + h.
    s = jnp.concatenate(s_parts, axis=0)                # (G, T, T)
    v = jnp.concatenate(v_parts, axis=0)                # (G, T, H)

    # Additive causal bias (finite, so a fully-masked row can never produce NaN),
    # built once and broadcast over the whole (G, T, T) slab.
    row = lax.broadcasted_iota(jnp.int32, (T, T), 0)
    col = lax.broadcasted_iota(jnp.int32, (T, T), 1)
    bias = jnp.where(col <= row, f32(0.0), f32(-1e30))  # (T, T)
    s = s + bias[None]

    # ONE numerically-stable softmax over all (batch, head) tiles; exact divide.
    s = s - jnp.max(s, axis=-1, keepdims=True)
    p = jnp.exp(s)
    p = p / jnp.sum(p, axis=-1, keepdims=True)

    # Attention-weighted values for all (batch, head) pairs in one batched matmul.
    o = jnp.einsum('gts,gsh->gth', p, v, preferred_element_type=f32)   # (G, T, H)

    # Store each (batch, head) tile straight into its output slot — no register concats.
    for b in range(B):                                  # static unroll: B = 2
        for h in range(nh):                             # static unroll: nh = 4
            o_ref[b * T:(b + 1) * T, h * H:(h + 1) * H] = (
                o[b * nh + h].astype(o_ref.dtype))


def pack_mha_weights(wq, wk, wv):
    """ONE-TIME packing (cache this with the parameters, not the training step).

    wq/wk/wv: (num_heads, C, head_size). Stacks head-major and folds the softmax scale
    (C**-0.5, matching the PyTorch module which scales by n_embed, not head_size) into Wq.
    Returns (3, num_heads, C, head_size)."""
    C = wq.shape[1]
    scale = jnp.asarray(C ** (-0.5), wq.dtype)
    return jnp.stack([wq * scale, wk, wv], axis=0)


@jax.jit
def multi_head_attention(x, w_qkvh):
    """x: (B, T, C) float32; w_qkvh: (3, num_heads, C, head_size) from pack_mha_weights().
    Returns (B, T, num_heads*head_size) == torch.cat([h(x) for h in heads], dim=-1).
    (No output projection/bias — matches the spec module, not nn.MultiheadAttention.)"""
    B, T, C = x.shape
    _, nh, C2, H = w_qkvh.shape
    assert C == C2
    NH = nh * H
    G = B * nh

    flops = 2 * G * T * C * (3 * H) + 2 * (2 * G * T * T * H)
    transcendentals = G * T * T
    bytes_accessed = 4 * (B * T * C + 3 * nh * C * H + B * T * NH)

    out2 = pl.pallas_call(
        _mha_kernel,
        out_shape=jax.ShapeDtypeStruct((B * T, NH), x.dtype),
        grid=(1,),   # whole problem (~16 KiB) lives in VMEM: single invocation
        in_specs=[
            pl.BlockSpec((B, T, C), lambda i: (0, 0, 0)),
            pl.BlockSpec((3, nh, C, H), lambda i: (0, 0, 0, 0)),
        ],
        out_specs=pl.BlockSpec((B * T, NH), lambda i: (0, 0)),
        compiler_params=pltpu.CompilerParams(
            dimension_semantics=("arbitrary",)),
        cost_estimate=pl.CostEstimate(
            flops=flops,
            transcendentals=transcendentals,
            bytes_accessed=bytes_accessed),
    )(x, w_qkvh)

    # Layout-preserving reshape (no transpose); folded away under jit.
    return out2.reshape(B, T, NH)


def _reference(x, wk, wq, wv):
    """Pure-JAX reference mirroring the PyTorch forward, for correctness checking."""
    B, T, C = x.shape
    outs = []
    tril = jnp.tril(jnp.ones((T, T)))
    for h in range(wk.shape[0]):
        k = x @ wk[h]
        q = x @ wq[h]
        v = x @ wv[h]
        w = (q @ jnp.swapaxes(k, -2, -1)) * C ** (-0.5)
        w = jnp.where(tril == 0, -jnp.inf, w)
        w = jax.nn.softmax(w, axis=-1)
        outs.append(w @ v)
    return jnp.concatenate(outs, axis=-1)


if __name__ == "__main__":
    num_heads = 4
    head_size = 8          # num_heads * head_size == n_embed == 32
    B, T, C = 2, block_size, n_embed

    key = jax.random.PRNGKey(0)
    kx, kk, kq, kv = jax.random.split(key, 4)

    x = jax.random.normal(kx, (B, T, C), dtype=jnp.float32)

    # Deterministic nn.Linear-style init: U(-1/sqrt(fan_in), 1/sqrt(fan_in)), bias=False.
    bound = 1.0 / math.sqrt(n_embed)
    wk = jax.random.uniform(kk, (num_heads, C, head_size), jnp.float32, -bound, bound)
    wq = jax.random.uniform(kq, (num_heads, C, head_size), jnp.float32, -bound, bound)
    wv = jax.random.uniform(kv, (num_heads, C, head_size), jnp.float32, -bound, bound)

    # One-time weight packing — outside the per-call path (largest end-to-end win).
    w_qkvh = jax.block_until_ready(pack_mha_weights(wq, wk, wv))

    out = jax.block_until_ready(multi_head_attention(x, w_qkvh))
    ref = _reference(x, wk, wq, wv)

    assert out.shape == (B, T, num_heads * head_size)
    # 5x tighter than the previous approx-reciprocal version; the remaining slack only
    # covers MXU f32 multi-pass rounding differences between the Pallas matmuls and the
    # XLA-compiled reference (typical observed agreement is far smaller).
    assert jnp.allclose(out, ref, atol=2e-3, rtol=2e-3), \
        float(jnp.max(jnp.abs(out - ref)))

    print("KERNEL_OK")
</pallas_src>

<mosaic_0001>
module attributes {stable_mosaic.version = 11 : i64} {
  func.func @_mha_kernel(%arg0: i32, %arg1: memref<2x8x32xf32, #tpu.memory_space<vmem>>, %arg2: memref<3x4x32x8xf32, #tpu.memory_space<vmem>>, %arg3: memref<16x32xf32, #tpu.memory_space<vmem>>) attributes {dimension_semantics = [#tpu.dimension_semantics<arbitrary>], iteration_bounds = array<i64: 1>, scalar_prefetch = 0 : i64, scratch_operands = 0 : i64, tpu.core_type = #tpu.core_type<tc>, window_params = [{pipeline_mode = #tpu.pipeline_mode<synchronous>, transform_indices = @transform_0, window_bounds = array<i64: 2, 8, 32>}, {pipeline_mode = #tpu.pipeline_mode<synchronous>, transform_indices = @transform_1, window_bounds = array<i64: 3, 4, 32, 8>}, {pipeline_mode = #tpu.pipeline_mode<synchronous>, transform_indices = @transform_2, window_bounds = array<i64: 16, 32>}]} {
    %c0 = arith.constant 0 : index
    %c0_0 = arith.constant 0 : index
    %c0_1 = arith.constant 0 : index
    %c0_2 = arith.constant 0 : index
    %0 = vector.load %arg2[%c0, %c0_0, %c0_1, %c0_2] : memref<3x4x32x8xf32, #tpu.memory_space<vmem>>, vector<1x4x32x8xf32>
    %1 = vector.shape_cast %0 : vector<1x4x32x8xf32> to vector<4x32x8xf32>
    %c1 = arith.constant 1 : index
    %c0_3 = arith.constant 0 : index
    %c0_4 = arith.constant 0 : index
    %c0_5 = arith.constant 0 : index
    %2 = vector.load %arg2[%c1, %c0_3, %c0_4, %c0_5] : memref<3x4x32x8xf32, #tpu.memory_space<vmem>>, vector<1x4x32x8xf32>
    %3 = vector.shape_cast %2 : vector<1x4x32x8xf32> to vector<4x32x8xf32>
    %c2 = arith.constant 2 : index
    %c0_6 = arith.constant 0 : index
    %c0_7 = arith.constant 0 : index
    %c0_8 = arith.constant 0 : index
    %4 = vector.load %arg2[%c2, %c0_6, %c0_7, %c0_8] : memref<3x4x32x8xf32, #tpu.memory_space<vmem>>, vector<1x4x32x8xf32>
    %5 = vector.shape_cast %4 : vector<1x4x32x8xf32> to vector<4x32x8xf32>
    %c0_9 = arith.constant 0 : index
    %c0_10 = arith.constant 0 : index
    %c0_11 = arith.constant 0 : index
    %6 = vector.load %arg1[%c0_9, %c0_10, %c0_11] : memref<2x8x32xf32, #tpu.memory_space<vmem>>, vector<1x8x32xf32>
    %7 = vector.shape_cast %6 : vector<1x8x32xf32> to vector<8x32xf32>
    %8 = vector.shape_cast %7 : vector<8x32xf32> to vector<1x8x32xf32>
    %9 = vector.broadcast %8 : vector<1x8x32xf32> to vector<4x8x32xf32>
    "tpu.trace_start"() <{level = 10 : i32, message = "htc,hcd->htd"}> : () -> ()
    %cst = arith.constant dense<0.000000e+00> : vector<4x8x8xf32>
    %10 = tpu.matmul %9, %1, %cst {dimension_numbers = #tpu.dot_dimension_numbers<[2], [1], [1], [2], [0, 0, 0, 1, 1, 2], [0], [0]>} : vector<4x8x32xf32>, vector<4x32x8xf32>, vector<4x8x8xf32> -> vector<4x8x8xf32>
    %cst_12 = arith.constant dense<0.000000e+00> : vector<4x8x8xf32>
    %11 = tpu.matmul %9, %3, %cst_12 {dimension_numbers = #tpu.dot_dimension_numbers<[2], [1], [1], [2], [0, 0, 0, 1, 1, 2], [0], [0]>} : vector<4x8x32xf32>, vector<4x32x8xf32>, vector<4x8x8xf32> -> vector<4x8x8xf32>
    %cst_13 = arith.constant dense<0.000000e+00> : vector<4x8x8xf32>
    %12 = tpu.matmul %9, %5, %cst_13 {dimension_numbers = #tpu.dot_dimension_numbers<[2], [1], [1], [2], [0, 0, 0, 1, 1, 2], [0], [0]>} : vector<4x8x32xf32>, vector<4x32x8xf32>, vector<4x8x8xf32> -> vector<4x8x8xf32>
    "tpu.trace_stop"() : () -> ()
    "tpu.trace_start"() <{level = 10 : i32, message = "htd,hsd->hts"}> : () -> ()
    %cst_14 = arith.constant dense<0.000000e+00> : vector<4x8x8xf32>
    %13 = tpu.matmul %10, %11, %cst_14 {dimension_numbers = #tpu.dot_dimension_numbers<[2], [2], [1], [1], [0, 0, 0, 1, 1, 1], [0], [0]>} : vector<4x8x8xf32>, vector<4x8x8xf32>, vector<4x8x8xf32> -> vector<4x8x8xf32>
    "tpu.trace_stop"() : () -> ()
    %c1_15 = arith.constant 1 : index
    %c0_16 = arith.constant 0 : index
    %c0_17 = arith.constant 0 : index
    %14 = vector.load %arg1[%c1_15, %c0_16, %c0_17] : memref<2x8x32xf32, #tpu.memory_space<vmem>>, vector<1x8x32xf32>
    %15 = vector.shape_cast %14 : vector<1x8x32xf32> to vector<8x32xf32>
    %16 = vector.shape_cast %15 : vector<8x32xf32> to vector<1x8x32xf32>
    %17 = vector.broadcast %16 : vector<1x8x32xf32> to vector<4x8x32xf32>
    "tpu.trace_start"() <{level = 10 : i32, message = "htc,hcd->htd"}> : () -> ()
    %cst_18 = arith.constant dense<0.000000e+00> : vector<4x8x8xf32>
    %18 = tpu.matmul %17, %1, %cst_18 {dimension_numbers = #tpu.dot_dimension_numbers<[2], [1], [1], [2], [0, 0, 0, 1, 1, 2], [0], [0]>} : vector<4x8x32xf32>, vector<4x32x8xf32>, vector<4x8x8xf32> -> vector<4x8x8xf32>
    %cst_19 = arith.constant dense<0.000000e+00> : vector<4x8x8xf32>
    %19 = tpu.matmul %17, %3, %cst_19 {dimension_numbers = #tpu.dot_dimension_numbers<[2], [1], [1], [2], [0, 0, 0, 1, 1, 2], [0], [0]>} : vector<4x8x32xf32>, vector<4x32x8xf32>, vector<4x8x8xf32> -> vector<4x8x8xf32>
    %cst_20 = arith.constant dense<0.000000e+00> : vector<4x8x8xf32>
    %20 = tpu.matmul %17, %5, %cst_20 {dimension_numbers = #tpu.dot_dimension_numbers<[2], [1], [1], [2], [0, 0, 0, 1, 1, 2], [0], [0]>} : vector<4x8x32xf32>, vector<4x32x8xf32>, vector<4x8x8xf32> -> vector<4x8x8xf32>
    "tpu.trace_stop"() : () -> ()
    "tpu.trace_start"() <{level = 10 : i32, message = "htd,hsd->hts"}> : () -> ()
    %cst_21 = arith.constant dense<0.000000e+00> : vector<4x8x8xf32>
    %21 = tpu.matmul %18, %19, %cst_21 {dimension_numbers = #tpu.dot_dimension_numbers<[2], [2], [1], [1], [0, 0, 0, 1, 1, 1], [0], [0]>} : vector<4x8x8xf32>, vector<4x8x8xf32>, vector<4x8x8xf32> -> vector<4x8x8xf32>
    "tpu.trace_stop"() : () -> ()
    %22 = tpu.concatenate %13, %21 in 0 : vector<4x8x8xf32>, vector<4x8x8xf32> -> vector<8x8x8xf32>
    %23 = tpu.concatenate %12, %20 in 0 : vector<4x8x8xf32>, vector<4x8x8xf32> -> vector<8x8x8xf32>
    %24 = tpu.iota {dimensions = array<i32: 0>} : vector<8x8xi32>
    %25 = tpu.iota {dimensions = array<i32: 1>} : vector<8x8xi32>
    %26 = arith.cmpi sle, %25, %24 : vector<8x8xi32>
    %cst_22 = arith.constant 0.000000e+00 : f32
    %cst_23 = arith.constant -1.000000e+30 : f32
    %27 = vector.broadcast %cst_22 : f32 to vector<8x8xf32>
    %28 = vector.broadcast %cst_23 : f32 to vector<8x8xf32>
    %29 = arith.select %26, %27, %28 : vector<8x8xi1>, vector<8x8xf32>
    %30 = vector.shape_cast %29 : vector<8x8xf32> to vector<1x8x8xf32>
    %31 = vector.broadcast %30 : vector<1x8x8xf32> to vector<8x8x8xf32>
    %32 = arith.addf %22, %31 : vector<8x8x8xf32>
    %cst_24 = arith.constant dense<0xFF800000> : vector<8x8xf32>
    %33 = vector.multi_reduction <maximumf>, %32, %cst_24 [2] : vector<8x8x8xf32> to vector<8x8xf32>
    %34 = vector.shape_cast %33 : vector<8x8xf32> to vector<8x8x1xf32>
    %35 = vector.broadcast %34 : vector<8x8x1xf32> to vector<8x8x8xf32>
    %36 = arith.subf %32, %35 : vector<8x8x8xf32>
    %37 = math.exp %36 : vector<8x8x8xf32>
    %cst_25 = arith.constant dense<0.000000e+00> : vector<8x8xf32>
    %38 = vector.multi_reduction <add>, %37, %cst_25 [2] : vector<8x8x8xf32> to vector<8x8xf32>
    %39 = vector.shape_cast %38 : vector<8x8xf32> to vector<8x8x1xf32>
    %40 = vector.broadcast %39 : vector<8x8x1xf32> to vector<8x8x8xf32>
    %41 = arith.divf %37, %40 : vector<8x8x8xf32>
    "tpu.trace_start"() <{level = 10 : i32, message = "gts,gsh->gth"}> : () -> ()
    %cst_26 = arith.constant dense<0.000000e+00> : vector<8x8x8xf32>
    %42 = tpu.matmul %41, %23, %cst_26 {dimension_numbers = #tpu.dot_dimension_numbers<[2], [1], [1], [2], [0, 0, 0, 1, 1, 2], [0], [0]>} : vector<8x8x8xf32>, vector<8x8x8xf32>, vector<8x8x8xf32> -> vector<8x8x8xf32>
    "tpu.trace_stop"() : () -> ()
    %43 = vector.extract_strided_slice %42 {offsets = [0, 0, 0], sizes = [1, 8, 8], strides = [1, 1, 1]} : vector<8x8x8xf32> to vector<1x8x8xf32>
    %44 = vector.shape_cast %43 : vector<1x8x8xf32> to vector<8x8xf32>
    %c0_27 = arith.constant 0 : index
    %c0_28 = arith.constant 0 : index
    %45 = vector.load %arg3[%c0_27, %c0_28] : memref<16x32xf32, #tpu.memory_space<vmem>>, vector<8x8xf32>
    tpu.vector_store %arg3[%c0_27, %c0_28], %44 {strides = array<i32>} : memref<16x32xf32, #tpu.memory_space<vmem>>, vector<8x8xf32>,
    %46 = vector.extract_strided_slice %42 {offsets = [1, 0, 0], sizes = [1, 8, 8], strides = [1, 1, 1]} : vector<8x8x8xf32> to vector<1x8x8xf32>
    %47 = vector.shape_cast %46 : vector<1x8x8xf32> to vector<8x8xf32>
    %c0_29 = arith.constant 0 : index
    %c8 = arith.constant 8 : index
    %48 = vector.load %arg3[%c0_29, %c8] : memref<16x32xf32, #tpu.memory_space<vmem>>, vector<8x8xf32>
    tpu.vector_store %arg3[%c0_29, %c8], %47 {strides = array<i32>} : memref<16x32xf32, #tpu.memory_space<vmem>>, vector<8x8xf32>,
    %49 = vector.extract_strided_slice %42 {offsets = [2, 0, 0], sizes = [1, 8, 8], strides = [1, 1, 1]} : vector<8x8x8xf32> to vector<1x8x8xf32>
    %50 = vector.shape_cast %49 : vector<1x8x8xf32> to vector<8x8xf32>
    %c0_30 = arith.constant 0 : index
    %c16 = arith.constant 16 : index
    %51 = vector.load %arg3[%c0_30, %c16] : memref<16x32xf32, #tpu.memory_space<vmem>>, vector<8x8xf32>
    tpu.vector_store %arg3[%c0_30, %c16], %50 {strides = array<i32>} : memref<16x32xf32, #tpu.memory_space<vmem>>, vector<8x8xf32>,
    %52 = vector.extract_strided_slice %42 {offsets = [3, 0, 0], sizes = [1, 8, 8], strides = [1, 1, 1]} : vector<8x8x8xf32> to vector<1x8x8xf32>
    %53 = vector.shape_cast %52 : vector<1x8x8xf32> to vector<8x8xf32>
    %c0_31 = arith.constant 0 : index
    %c24 = arith.constant 24 : index
    %54 = vector.load %arg3[%c0_31, %c24] : memref<16x32xf32, #tpu.memory_space<vmem>>, vector<8x8xf32>
    tpu.vector_store %arg3[%c0_31, %c24], %53 {strides = array<i32>} : memref<16x32xf32, #tpu.memory_space<vmem>>, vector<8x8xf32>,
    %55 = vector.extract_strided_slice %42 {offsets = [4, 0, 0], sizes = [1, 8, 8], strides = [1, 1, 1]} : vector<8x8x8xf32> to vector<1x8x8xf32>
    %56 = vector.shape_cast %55 : vector<1x8x8xf32> to vector<8x8xf32>
    %c8_32 = arith.constant 8 : index
    %c0_33 = arith.constant 0 : index
    %57 = vector.load %arg3[%c8_32, %c0_33] : memref<16x32xf32, #tpu.memory_space<vmem>>, vector<8x8xf32>
    tpu.vector_store %arg3[%c8_32, %c0_33], %56 {strides = array<i32>} : memref<16x32xf32, #tpu.memory_space<vmem>>, vector<8x8xf32>,
    %58 = vector.extract_strided_slice %42 {offsets = [5, 0, 0], sizes = [1, 8, 8], strides = [1, 1, 1]} : vector<8x8x8xf32> to vector<1x8x8xf32>
    %59 = vector.shape_cast %58 : vector<1x8x8xf32> to vector<8x8xf32>
    %c8_34 = arith.constant 8 : index
    %c8_35 = arith.constant 8 : index
    %60 = vector.load %arg3[%c8_34, %c8_35] : memref<16x32xf32, #tpu.memory_space<vmem>>, vector<8x8xf32>
    tpu.vector_store %arg3[%c8_34, %c8_35], %59 {strides = array<i32>} : memref<16x32xf32, #tpu.memory_space<vmem>>, vector<8x8xf32>,
    %61 = vector.extract_strided_slice %42 {offsets = [6, 0, 0], sizes = [1, 8, 8], strides = [1, 1, 1]} : vector<8x8x8xf32> to vector<1x8x8xf32>
    %62 = vector.shape_cast %61 : vector<1x8x8xf32> to vector<8x8xf32>
    %c8_36 = arith.constant 8 : index
    %c16_37 = arith.constant 16 : index
    %63 = vector.load %arg3[%c8_36, %c16_37] : memref<16x32xf32, #tpu.memory_space<vmem>>, vector<8x8xf32>
    tpu.vector_store %arg3[%c8_36, %c16_37], %62 {strides = array<i32>} : memref<16x32xf32, #tpu.memory_space<vmem>>, vector<8x8xf32>,
    %64 = vector.extract_strided_slice %42 {offsets = [7, 0, 0], sizes = [1, 8, 8], strides = [1, 1, 1]} : vector<8x8x8xf32> to vector<1x8x8xf32>
    %65 = vector.shape_cast %64 : vector<1x8x8xf32> to vector<8x8xf32>
    %c8_38 = arith.constant 8 : index
    %c24_39 = arith.constant 24 : index
    %66 = vector.load %arg3[%c8_38, %c24_39] : memref<16x32xf32, #tpu.memory_space<vmem>>, vector<8x8xf32>
    tpu.vector_store %arg3[%c8_38, %c24_39], %65 {strides = array<i32>} : memref<16x32xf32, #tpu.memory_space<vmem>>, vector<8x8xf32>,
    return
  }
  func.func @transform_0(%arg0: i32) -> (i32, i32, i32) {
    %c0_i32 = arith.constant 0 : i32
    %c0_i32_0 = arith.constant 0 : i32
    %c0_i32_1 = arith.constant 0 : i32
    %c0_i32_2 = arith.constant 0 : i32
    return %c0_i32, %c0_i32_0, %c0_i32_1 : i32, i32, i32
  }
  func.func @transform_1(%arg0: i32) -> (i32, i32, i32, i32) {
    %c0_i32 = arith.constant 0 : i32
    %c0_i32_0 = arith.constant 0 : i32
    %c0_i32_1 = arith.constant 0 : i32
    %c0_i32_2 = arith.constant 0 : i32
    %c0_i32_3 = arith.constant 0 : i32
    return %c0_i32, %c0_i32_0, %c0_i32_1, %c0_i32_2 : i32, i32, i32, i32
  }
  func.func @transform_2(%arg0: i32) -> (i32, i32) {
    %c0_i32 = arith.constant 0 : i32
    %c0_i32_0 = arith.constant 0 : i32
    %c0_i32_1 = arith.constant 0 : i32
    return %c0_i32, %c0_i32_0 : i32, i32
  }
}

</mosaic_0001>

<llo_original>
// kernel: multi_head_attention.1
$region0: #{multi_head_attention.1}
  #allocation0 [shape = 'u32[]', space=smem, size = 0x4, offset = 0x4, fixed_abs, tag = 'smem constant byte address 0x4 - core index']
  #allocation1 [shape = 'u32[144,128]{1,0:T(1,128)}', space=vmem, size = 0x12000, scoped, tag = 'internal scratch']
  %s0 = inlined_call_operand.vmem [shape: f32[2,8,32], index: 0, kind: input, shape index: {}]
  %s1 = inlined_call_operand.vmem [shape: f32[3,4,32,8], index: 1, kind: input, shape index: {}]
  %s2 = inlined_call_operand.hbm [shape: f32[16,32], index: 2, kind: output, shape index: {}]
  %s3 = sld [smem:[#allocation0]]
  $region18: #{multi_head_attention.1} parent=0
    _
  %s5 = ssub.s32 1, %s3
  %s6 = scalar_select 0, %s5, %s3
  $region1: #{multi_head_attention.1} parent=0
    #allocation2 [shape = 'u8[8192]{0}', space=vmem, size = 0x2000, scoped, tag = 'output window, operand 0, single buffered']
    #allocation3 [shape = 's32[1]{0}', space=sflag, size = 0x4, scoped, tag = 'scoped memory for multi_head_attention.1']
    %7 = vsyncpa [#allocation3], 0
    // Predicated region
    $region2: #{multi_head_attention.1} parent=1 // pred_check
      _
    $region3: #{multi_head_attention.1} parent=1 // pred_check_branch
      %9 = sbr.rel (0) target = $region5
    $region4: #{multi_head_attention.1} parent=1 // pred_region
      _
    $region5: #{multi_head_attention.1} parent=1 // pred_fallthru
      _
    // Predicated region
    $region6: #{multi_head_attention.1} parent=1 // pred_check
      _
    $region7: #{multi_head_attention.1} parent=1 // pred_check_branch
      %11 = sbr.rel (0) target = $region9
    $region8: #{multi_head_attention.1} parent=1 // pred_region
      _
    $region9: #{multi_head_attention.1} parent=1 // pred_fallthru
      _
    %v12 = vld [vmem:[%s1] sm:$0xff]
    %v13 = vld [vmem:[%s1 + $0x8] sm:$0xff]
    %v14 = vld [vmem:[%s1 + $0x10] sm:$0xff]
    %v15 = vld [vmem:[%s1 + $0x18] sm:$0xff]
    %v16 = vld [vmem:[%s1 + $0x20] sm:$0xff]
    %v17 = vld [vmem:[%s1 + $0x28] sm:$0xff]
    %v18 = vld [vmem:[%s1 + $0x30] sm:$0xff]
    %v19 = vld [vmem:[%s1 + $0x38] sm:$0xff]
    %v20 = vld [vmem:[%s1 + $0x40] sm:$0xff]
    %v21 = vld [vmem:[%s1 + $0x48] sm:$0xff]
    %v22 = vld [vmem:[%s1 + $0x50] sm:$0xff]
    %v23 = vld [vmem:[%s1 + $0x58] sm:$0xff]
    %v24 = vld [vmem:[%s1 + $0x60] sm:$0xff]
    %v25 = vld [vmem:[%s1 + $0x68] sm:$0xff]
    %v26 = vld [vmem:[%s1 + $0x70] sm:$0xff]
    %v27 = vld [vmem:[%s1 + $0x78] sm:$0xff]
    %s28 = scalar_lea.vmem %s1, 128
    %v29 = vld [vmem:[%s28] sm:$0xff]
    %v30 = vld [vmem:[%s28 + $0x8] sm:$0xff]
    %v31 = vld [vmem:[%s28 + $0x10] sm:$0xff]
    %v32 = vld [vmem:[%s28 + $0x18] sm:$0xff]
    %v33 = vld [vmem:[%s28 + $0x20] sm:$0xff]
    %v34 = vld [vmem:[%s28 + $0x28] sm:$0xff]
    %v35 = vld [vmem:[%s28 + $0x30] sm:$0xff]
    %v36 = vld [vmem:[%s28 + $0x38] sm:$0xff]
    %v37 = vld [vmem:[%s28 + $0x40] sm:$0xff]
    %v38 = vld [vmem:[%s28 + $0x48] sm:$0xff]
    %v39 = vld [vmem:[%s28 + $0x50] sm:$0xff]
    %v40 = vld [vmem:[%s28 + $0x58] sm:$0xff]
    %v41 = vld [vmem:[%s28 + $0x60] sm:$0xff]
    %v42 = vld [vmem:[%s28 + $0x68] sm:$0xff]
    %v43 = vld [vmem:[%s28 + $0x70] sm:$0xff]
    %v44 = vld [vmem:[%s28 + $0x78] sm:$0xff]
    %s45 = scalar_lea.vmem %s1, 256
    %v46 = vld [vmem:[%s45] sm:$0xff]
    %v47 = vld [vmem:[%s45 + $0x8] sm:$0xff]
    %v48 = vld [vmem:[%s45 + $0x10] sm:$0xff]
    %v49 = vld [vmem:[%s45 + $0x18] sm:$0xff]
    %v50 = vld [vmem:[%s45 + $0x20] sm:$0xff]
    %v51 = vld [vmem:[%s45 + $0x28] sm:$0xff]
    %v52 = vld [vmem:[%s45 + $0x30] sm:$0xff]
    %v53 = vld [vmem:[%s45 + $0x38] sm:$0xff]
    %v54 = vld [vmem:[%s45 + $0x40] sm:$0xff]
    %v55 = vld [vmem:[%s45 + $0x48] sm:$0xff]
    %v56 = vld [vmem:[%s45 + $0x50] sm:$0xff]
    %v57 = vld [vmem:[%s45 + $0x58] sm:$0xff]
    %v58 = vld [vmem:[%s45 + $0x60] sm:$0xff]
    %v59 = vld [vmem:[%s45 + $0x68] sm:$0xff]
    %v60 = vld [vmem:[%s45 + $0x70] sm:$0xff]
    %v61 = vld [vmem:[%s45 + $0x78] sm:$0xff]
    %v62 = vld [vmem:[%s0] sm:$0xff]
    %vm63 = vcmask 261120
    %v65 = vsel %vm63, %v62, 0
    %67 = vmatprep.subr.mxu0 0.0
    %68 = vmatpush1.msra.mxu0 %v12
    %69 = vmatprep.subr.mxu0 0.0
    %70 = vmatpush1.msra.mxu0 %v13
    %71 = vmatprep.subr.mxu0 0.0
    %72 = vmatpush1.msra.mxu0 %v14
    %73 = vmatprep.subr.mxu0 0.0
    %74 = vmatpush1.msra.mxu0 %v15
    %75 = vmatprep.subr.mxu0 0.0
    %76 = vmatpush1.msra.mxu0 0.0
    %77 = vmatprep.subr.mxu0 0.0
    %78 = vmatpush1.msra.mxu0 0.0
    %79 = vmatprep.subr.mxu0 0.0
    %80 = vmatpush1.msra.mxu0 0.0
    %81 = vmatprep.subr.mxu0 0.0
    %82 = vmatpush1.msra.mxu0 0.0
    %83 = vmatprep.subr.mxu0 0.0
    %84 = vmatpush1.msra.mxu0 0.0
    %85 = vmatprep.subr.mxu0 0.0
    %86 = vmatpush1.msra.mxu0 0.0
    %87 = vmatprep.subr.mxu0 0.0
    %88 = vmatpush1.msra.mxu0 0.0
    %89 = vmatprep.subr.mxu0 0.0
    %90 = vmatpush1.msra.mxu0 0.0
    %91 = vmatprep.subr.mxu0 0.0
    %92 = vmatpush1.msra.mxu0 0.0
    %93 = vmatprep.subr.mxu0 0.0
    %94 = vmatpush1.msra.mxu0 0.0
    %95 = vmatprep.subr.mxu0 0.0
    %96 = vmatpush1.msra.mxu0 0.0
    %97 = vmatprep.subr.mxu0 0.0
    %98 = vmatpush1.msra.mxu0 0.0
    %99 = vmatprep.subr.mxu0 0.0
    %100 = vmatpush1.msra.mxu0 0.0
    %101 = vmatprep.subr.mxu0 0.0
    %102 = vmatpush1.msra.mxu0 0.0
    %103 = vmatprep.subr.mxu0 0.0
    %104 = vmatpush1.msra.mxu0 0.0
    %105 = vmatprep.subr.mxu0 0.0
    %106 = vmatpush1.msra.mxu0 0.0
    %107 = vmatprep.subr.mxu0 0.0
    %108 = vmatpush1.msra.mxu0 0.0
    %109 = vmatprep.subr.mxu0 0.0
    %110 = vmatpush1.msra.mxu0 0.0
    %111 = vmatprep.subr.mxu0 0.0
    %112 = vmatpush1.msra.mxu0 0.0
    %113 = vmatprep.subr.mxu0 0.0
    %114 = vmatpush1.msra.mxu0 0.0
    %115 = vmatprep.subr.mxu0 0.0
    %116 = vmatpush1.msra.mxu0 0.0
    %117 = vmatprep.subr.mxu0 0.0
    %118 = vmatpush1.msra.mxu0 0.0
    %119 = vmatprep.subr.mxu0 0.0
    %120 = vmatpush1.msra.mxu0 0.0
    %121 = vmatprep.subr.mxu0 0.0
    %122 = vmatpush1.msra.mxu0 0.0
    %123 = vmatprep.subr.mxu0 0.0
    %124 = vmatpush1.msra.mxu0 0.0
    %125 = vmatprep.subr.mxu0 0.0
    %126 = vmatpush1.msra.mxu0 0.0
    %127 = vmatprep.subr.mxu0 0.0
    %128 = vmatpush1.msra.mxu0 0.0
    %129 = vmatprep.subr.mxu0 0.0
    %130 = vmatpush1.msra.mxu0 0.0
    %131 = vmatprep.mubr.f32.mxu0 0.0
    %132 = vmatmul.mubr.f32.gmra.mrb[0].mxu0 %v65
    %v133 = vpop.f32.mrb[0].mxu0
    %v134 = vadd.f32 0.0, %v133
    %v135 = vpop.f32.mrb[0].mxu0
    %136 = vdwg.mxu0
    %137 = vmatprep.subr.mxu0 0.0
    %138 = vmatpush1.msra.mxu0 %v16
    %139 = vmatprep.subr.mxu0 0.0
    %140 = vmatpush1.msra.mxu0 %v17
    %141 = vmatprep.subr.mxu0 0.0
    %142 = vmatpush1.msra.mxu0 %v18
    %143 = vmatprep.subr.mxu0 0.0
    %144 = vmatpush1.msra.mxu0 %v19
    %145 = vmatprep.subr.mxu0 0.0
    %146 = vmatpush1.msra.mxu0 0.0
    %147 = vmatprep.subr.mxu0 0.0
    %148 = vmatpush1.msra.mxu0 0.0
    %149 = vmatprep.subr.mxu0 0.0
    %150 = vmatpush1.msra.mxu0 0.0
    %151 = vmatprep.subr.mxu0 0.0
    %152 = vmatpush1.msra.mxu0 0.0
    %153 = vmatprep.subr.mxu0 0.0
    %154 = vmatpush1.msra.mxu0 0.0
    %155 = vmatprep.subr.mxu0 0.0
    %156 = vmatpush1.msra.mxu0 0.0
    %157 = vmatprep.subr.mxu0 0.0
    %158 = vmatpush1.msra.mxu0 0.0
    %159 = vmatprep.subr.mxu0 0.0
    %160 = vmatpush1.msra.mxu0 0.0
    %161 = vmatprep.subr.mxu0 0.0
    %162 = vmatpush1.msra.mxu0 0.0
    %163 = vmatprep.subr.mxu0 0.0
    %164 = vmatpush1.msra.mxu0 0.0
    %165 = vmatprep.subr.mxu0 0.0
    %166 = vmatpush1.msra.mxu0 0.0
    %167 = vmatprep.subr.mxu0 0.0
    %168 = vmatpush1.msra.mxu0 0.0
    %169 = vmatprep.subr.mxu0 0.0
    %170 = vmatpush1.msra.mxu0 0.0
    %171 = vmatprep.subr.mxu0 0.0
    %172 = vmatpush1.msra.mxu0 0.0
    %173 = vmatprep.subr.mxu0 0.0
    %174 = vmatpush1.msra.mxu0 0.0
    %175 = vmatprep.subr.mxu0 0.0
    %176 = vmatpush1.msra.mxu0 0.0
    %177 = vmatprep.subr.mxu0 0.0
    %178 = vmatpush1.msra.mxu0 0.0
    %179 = vmatprep.subr.mxu0 0.0
    %180 = vmatpush1.msra.mxu0 0.0
    %181 = vmatprep.subr.mxu0 0.0
    %182 = vmatpush1.msra.mxu0 0.0
    %183 = vmatprep.subr.mxu0 0.0
    %184 = vmatpush1.msra.mxu0 0.0
    %185 = vmatprep.subr.mxu0 0.0
    %186 = vmatpush1.msra.mxu0 0.0
    %187 = vmatprep.subr.mxu0 0.0
    %188 = vmatpush1.msra.mxu0 0.0
    %189 = vmatprep.subr.mxu0 0.0
    %190 = vmatpush1.msra.mxu0 0.0
    %191 = vmatprep.subr.mxu0 0.0
    %192 = vmatpush1.msra.mxu0 0.0
    %193 = vmatprep.subr.mxu0 0.0
    %194 = vmatpush1.msra.mxu0 0.0
    %195 = vmatprep.subr.mxu0 0.0
    %196 = vmatpush1.msra.mxu0 0.0
    %197 = vmatprep.subr.mxu0 0.0
    %198 = vmatpush1.msra.mxu0 0.0
    %199 = vmatprep.subr.mxu0 0.0
    %200 = vmatpush1.msra.mxu0 0.0
    %201 = vmatprep.mubr.f32.mxu0 0.0
    %202 = vmatmul.mubr.f32.gmra.mrb[0].mxu0 %v65
    %v203 = vpop.f32.mrb[0].mxu0
    %v204 = vadd.f32 0.0, %v203
    %v205 = vpop.f32.mrb[0].mxu0
    %206 = vdwg.mxu0
    %207 = vmatprep.subr.mxu0 0.0
    %208 = vmatpush1.msra.mxu0 %v20
    %209 = vmatprep.subr.mxu0 0.0
    %210 = vmatpush1.msra.mxu0 %v21
    %211 = vmatprep.subr.mxu0 0.0
    %212 = vmatpush1.msra.mxu0 %v22
    %213 = vmatprep.subr.mxu0 0.0
    %214 = vmatpush1.msra.mxu0 %v23
    %215 = vmatprep.subr.mxu0 0.0
    %216 = vmatpush1.msra.mxu0 0.0
    %217 = vmatprep.subr.mxu0 0.0
    %218 = vmatpush1.msra.mxu0 0.0
    %219 = vmatprep.subr.mxu0 0.0
    %220 = vmatpush1.msra.mxu0 0.0
    %221 = vmatprep.subr.mxu0 0.0
    %222 = vmatpush1.msra.mxu0 0.0
    %223 = vmatprep.subr.mxu0 0.0
    %224 = vmatpush1.msra.mxu0 0.0
    %225 = vmatprep.subr.mxu0 0.0
    %226 = vmatpush1.msra.mxu0 0.0
    %227 = vmatprep.subr.mxu0 0.0
    %228 = vmatpush1.msra.mxu0 0.0
    %229 = vmatprep.subr.mxu0 0.0
    %230 = vmatpush1.msra.mxu0 0.0
    %231 = vmatprep.subr.mxu0 0.0
    %232 = vmatpush1.msra.mxu0 0.0
    %233 = vmatprep.subr.mxu0 0.0
    %234 = vmatpush1.msra.mxu0 0.0
    %235 = vmatprep.subr.mxu0 0.0
    %236 = vmatpush1.msra.mxu0 0.0
    %237 = vmatprep.subr.mxu0 0.0
    %238 = vmatpush1.msra.mxu0 0.0
    %239 = vmatprep.subr.mxu0 0.0
    %240 = vmatpush1.msra.mxu0 0.0
    %241 = vmatprep.subr.mxu0 0.0
    %242 = vmatpush1.msra.mxu0 0.0
    %243 = vmatprep.subr.mxu0 0.0
    %244 = vmatpush1.msra.mxu0 0.0
    %245 = vmatprep.subr.mxu0 0.0
    %246 = vmatpush1.msra.mxu0 0.0
    %247 = vmatprep.subr.mxu0 0.0
    %248 = vmatpush1.msra.mxu0 0.0
    %249 = vmatprep.subr.mxu0 0.0
    %250 = vmatpush1.msra.mxu0 0.0
    %251 = vmatprep.subr.mxu0 0.0
    %252 = vmatpush1.msra.mxu0 0.0
    %253 = vmatprep.subr.mxu0 0.0
    %254 = vmatpush1.msra.mxu0 0.0
    %255 = vmatprep.subr.mxu0 0.0
    %256 = vmatpush1.msra.mxu0 0.0
    %257 = vmatprep.subr.mxu0 0.0
    %258 = vmatpush1.msra.mxu0 0.0
    %259 = vmatprep.subr.mxu0 0.0
    %260 = vmatpush1.msra.mxu0 0.0
    %261 = vmatprep.subr.mxu0 0.0
    %262 = vmatpush1.msra.mxu0 0.0
    %263 = vmatprep.subr.mxu0 0.0
    %264 = vmatpush1.msra.mxu0 0.0
    %265 = vmatprep.subr.mxu0 0.0
    %266 = vmatpush1.msra.mxu0 0.0
    %267 = vmatprep.subr.mxu0 0.0
    %268 = vmatpush1.msra.mxu0 0.0
    %269 = vmatprep.subr.mxu0 0.0
    %270 = vmatpush1.msra.mxu0 0.0
    %271 = vmatprep.mubr.f32.mxu0 0.0
    %272 = vmatmul.mubr.f32.gmra.mrb[0].mxu0 %v65
    %v273 = vpop.f32.mrb[0].mxu0
    %v274 = vadd.f32 0.0, %v273
    %v275 = vpop.f32.mrb[0].mxu0
    %276 = vdwg.mxu0
    %277 = vmatprep.subr.mxu0 0.0
    %278 = vmatpush1.msra.mxu0 %v24
    %279 = vmatprep.subr.mxu0 0.0
    %280 = vmatpush1.msra.mxu0 %v25
    %281 = vmatprep.subr.mxu0 0.0
    %282 = vmatpush1.msra.mxu0 %v26
    %283 = vmatprep.subr.mxu0 0.0
    %284 = vmatpush1.msra.mxu0 %v27
    %285 = vmatprep.subr.mxu0 0.0
    %286 = vmatpush1.msra.mxu0 0.0
    %287 = vmatprep.subr.mxu0 0.0
    %288 = vmatpush1.msra.mxu0 0.0
    %289 = vmatprep.subr.mxu0 0.0
    %290 = vmatpush1.msra.mxu0 0.0
    %291 = vmatprep.subr.mxu0 0.0
    %292 = vmatpush1.msra.mxu0 0.0
    %293 = vmatprep.subr.mxu0 0.0
    %294 = vmatpush1.msra.mxu0 0.0
    %295 = vmatprep.subr.mxu0 0.0
    %296 = vmatpush1.msra.mxu0 0.0
    %297 = vmatprep.subr.mxu0 0.0
    %298 = vmatpush1.msra.mxu0 0.0
    %299 = vmatprep.subr.mxu0 0.0
    %300 = vmatpush1.msra.mxu0 0.0
    %301 = vmatprep.subr.mxu0 0.0
    %302 = vmatpush1.msra.mxu0 0.0
    %303 = vmatprep.subr.mxu0 0.0
    %304 = vmatpush1.msra.mxu0 0.0
    %305 = vmatprep.subr.mxu0 0.0
    %306 = vmatpush1.msra.mxu0 0.0
    %307 = vmatprep.subr.mxu0 0.0
    %308 = vmatpush1.msra.mxu0 0.0
    %309 = vmatprep.subr.mxu0 0.0
    %310 = vmatpush1.msra.mxu0 0.0
    %311 = vmatprep.subr.mxu0 0.0
    %312 = vmatpush1.msra.mxu0 0.0
    %313 = vmatprep.subr.mxu0 0.0
    %314 = vmatpush1.msra.mxu0 0.0
    %315 = vmatprep.subr.mxu0 0.0
    %316 = vmatpush1.msra.mxu0 0.0
    %317 = vmatprep.subr.mxu0 0.0
    %318 = vmatpush1.msra.mxu0 0.0
    %319 = vmatprep.subr.mxu0 0.0
    %320 = vmatpush1.msra.mxu0 0.0
    %321 = vmatprep.subr.mxu0 0.0
    %322 = vmatpush1.msra.mxu0 0.0
    %323 = vmatprep.subr.mxu0 0.0
    %324 = vmatpush1.msra.mxu0 0.0
    %325 = vmatprep.subr.mxu0 0.0
    %326 = vmatpush1.msra.mxu0 0.0
    %327 = vmatprep.subr.mxu0 0.0
    %328 = vmatpush1.msra.mxu0 0.0
    %329 = vmatprep.subr.mxu0 0.0
    %330 = vmatpush1.msra.mxu0 0.0
    %331 = vmatprep.subr.mxu0 0.0
    %332 = vmatpush1.msra.mxu0 0.0
    %333 = vmatprep.subr.mxu0 0.0
    %334 = vmatpush1.msra.mxu0 0.0
    %335 = vmatprep.subr.mxu0 0.0
    %336 = vmatpush1.msra.mxu0 0.0
    %337 = vmatprep.subr.mxu0 0.0
    %338 = vmatpush1.msra.mxu0 0.0
    %339 = vmatprep.subr.mxu0 0.0
    %340 = vmatpush1.msra.mxu0 0.0
    %341 = vmatprep.mubr.f32.mxu0 0.0
    %342 = vmatmul.mubr.f32.gmra.mrb[0].mxu0 %v65
    %v343 = vpop.f32.mrb[0].mxu0
    %v344 = vadd.f32 0.0, %v343
    %v345 = vpop.f32.mrb[0].mxu0
    %346 = vdwg.mxu0
    %347 = vmatprep.subr.mxu0 0.0
    %348 = vmatpush1.msra.mxu0 %v29
    %349 = vmatprep.subr.mxu0 0.0
    %350 = vmatpush1.msra.mxu0 %v30
    %351 = vmatprep.subr.mxu0 0.0
    %352 = vmatpush1.msra.mxu0 %v31
    %353 = vmatprep.subr.mxu0 0.0
    %354 = vmatpush1.msra.mxu0 %v32
    %355 = vmatprep.subr.mxu0 0.0
    %356 = vmatpush1.msra.mxu0 0.0
    %357 = vmatprep.subr.mxu0 0.0
    %358 = vmatpush1.msra.mxu0 0.0
    %359 = vmatprep.subr.mxu0 0.0
    %360 = vmatpush1.msra.mxu0 0.0
    %361 = vmatprep.subr.mxu0 0.0
    %362 = vmatpush1.msra.mxu0 0.0
    %363 = vmatprep.subr.mxu0 0.0
    %364 = vmatpush1.msra.mxu0 0.0
    %365 = vmatprep.subr.mxu0 0.0
    %366 = vmatpush1.msra.mxu0 0.0
    %367 = vmatprep.subr.mxu0 0.0
    %368 = vmatpush1.msra.mxu0 0.0
    %369 = vmatprep.subr.mxu0 0.0
    %370 = vmatpush1.msra.mxu0 0.0
    %371 = vmatprep.subr.mxu0 0.0
    %372 = vmatpush1.msra.mxu0 0.0
    %373 = vmatprep.subr.mxu0 0.0
    %374 = vmatpush1.msra.mxu0 0.0
    %375 = vmatprep.subr.mxu0 0.0
    %376 = vmatpush1.msra.mxu0 0.0
    %377 = vmatprep.subr.mxu0 0.0
    %378 = vmatpush1.msra.mxu0 0.0
    %379 = vmatprep.subr.mxu0 0.0
    %380 = vmatpush1.msra.mxu0 0.0
    %381 = vmatprep.subr.mxu0 0.0
    %382 = vmatpush1.msra.mxu0 0.0
    %383 = vmatprep.subr.mxu0 0.0
    %384 = vmatpush1.msra.mxu0 0.0
    %385 = vmatprep.subr.mxu0 0.0
    %386 = vmatpush1.msra.mxu0 0.0
    %387 = vmatprep.subr.mxu0 0.0
    %388 = vmatpush1.msra.mxu0 0.0
    %389 = vmatprep.subr.mxu0 0.0
    %390 = vmatpush1.msra.mxu0 0.0
    %391 = vmatprep.subr.mxu0 0.0
    %392 = vmatpush1.msra.mxu0 0.0
    %393 = vmatprep.subr.mxu0 0.0
    %394 = vmatpush1.msra.mxu0 0.0
    %395 = vmatprep.subr.mxu0 0.0
    %396 = vmatpush1.msra.mxu0 0.0
    %397 = vmatprep.subr.mxu0 0.0
    %398 = vmatpush1.msra.mxu0 0.0
    %399 = vmatprep.subr.mxu0 0.0
    %400 = vmatpush1.msra.mxu0 0.0
    %401 = vmatprep.subr.mxu0 0.0
    %402 = vmatpush1.msra.mxu0 0.0
    %403 = vmatprep.subr.mxu0 0.0
    %404 = vmatpush1.msra.mxu0 0.0
    %405 = vmatprep.subr.mxu0 0.0
    %406 = vmatpush1.msra.mxu0 0.0
    %407 = vmatprep.subr.mxu0 0.0
    %408 = vmatpush1.msra.mxu0 0.0
    %409 = vmatprep.subr.mxu0 0.0
    %410 = vmatpush1.msra.mxu0 0.0
    %411 = vmatprep.mubr.f32.mxu0 0.0
    %412 = vmatmul.mubr.f32.gmra.mrb[0].mxu0 %v65
    %v413 = vpop.f32.mrb[0].mxu0
    %v414 = vadd.f32 0.0, %v413
    %v415 = vpop.f32.mrb[0].mxu0
    %416 = vdwg.mxu0
    %417 = vmatprep.subr.mxu0 0.0
    %418 = vmatpush1.msra.mxu0 %v33
    %419 = vmatprep.subr.mxu0 0.0
    %420 = vmatpush1.msra.mxu0 %v34
    %421 = vmatprep.subr.mxu0 0.0
    %422 = vmatpush1.msra.mxu0 %v35
    %423 = vmatprep.subr.mxu0 0.0
    %424 = vmatpush1.msra.mxu0 %v36
    %425 = vmatprep.subr.mxu0 0.0
    %426 = vmatpush1.msra.mxu0 0.0
    %427 = vmatprep.subr.mxu0 0.0
    %428 = vmatpush1.msra.mxu0 0.0
    %429 = vmatprep.subr.mxu0 0.0
    %430 = vmatpush1.msra.mxu0 0.0
    %431 = vmatprep.subr.mxu0 0.0
    %432 = vmatpush1.msra.mxu0 0.0
    %433 = vmatprep.subr.mxu0 0.0
    %434 = vmatpush1.msra.mxu0 0.0
    %435 = vmatprep.subr.mxu0 0.0
    %436 = vmatpush1.msra.mxu0 0.0
    %437 = vmatprep.subr.mxu0 0.0
    %438 = vmatpush1.msra.mxu0 0.0
    %439 = vmatprep.subr.mxu0 0.0
    %440 = vmatpush1.msra.mxu0 0.0
    %441 = vmatprep.subr.mxu0 0.0
    %442 = vmatpush1.msra.mxu0 0.0
    %443 = vmatprep.subr.mxu0 0.0
    %444 = vmatpush1.msra.mxu0 0.0
    %445 = vmatprep.subr.mxu0 0.0
    %446 = vmatpush1.msra.mxu0 0.0
    %447 = vmatprep.subr.mxu0 0.0
    %448 = vmatpush1.msra.mxu0 0.0
    %449 = vmatprep.subr.mxu0 0.0
    %450 = vmatpush1.msra.mxu0 0.0
    %451 = vmatprep.subr.mxu0 0.0
    %452 = vmatpush1.msra.mxu0 0.0
    %453 = vmatprep.subr.mxu0 0.0
    %454 = vmatpush1.msra.mxu0 0.0
    %455 = vmatprep.subr.mxu0 0.0
    %456 = vmatpush1.msra.mxu0 0.0
    %457 = vmatprep.subr.mxu0 0.0
    %458 = vmatpush1.msra.mxu0 0.0
    %459 = vmatprep.subr.mxu0 0.0
    %460 = vmatpush1.msra.mxu0 0.0
    %461 = vmatprep.subr.mxu0 0.0
    %462 = vmatpush1.msra.mxu0 0.0
    %463 = vmatprep.subr.mxu0 0.0
    %464 = vmatpush1.msra.mxu0 0.0
    %465 = vmatprep.subr.mxu0 0.0
    %466 = vmatpush1.msra.mxu0 0.0
    %467 = vmatprep.subr.mxu0 0.0
    %468 = vmatpush1.msra.mxu0 0.0
    %469 = vmatprep.subr.mxu0 0.0
    %470 = vmatpush1.msra.mxu0 0.0
    %471 = vmatprep.subr.mxu0 0.0
    %472 = vmatpush1.msra.mxu0 0.0
    %473 = vmatprep.subr.mxu0 0.0
    %474 = vmatpush1.msra.mxu0 0.0
    %475 = vmatprep.subr.mxu0 0.0
    %476 = vmatpush1.msra.mxu0 0.0
    %477 = vmatprep.subr.mxu0 0.0
    %478 = vmatpush1.msra.mxu0 0.0
    %479 = vmatprep.subr.mxu0 0.0
    %480 = vmatpush1.msra.mxu0 0.0
    %481 = vmatprep.mubr.f32.mxu0 0.0
    %482 = vmatmul.mubr.f32.gmra.mrb[0].mxu0 %v65
    %v483 = vpop.f32.mrb[0].mxu0
    %v484 = vadd.f32 0.0, %v483
    %v485 = vpop.f32.mrb[0].mxu0
    %486 = vdwg.mxu0
    %487 = vmatprep.subr.mxu0 0.0
    %488 = vmatpush1.msra.mxu0 %v37
    %489 = vmatprep.subr.mxu0 0.0
    %490 = vmatpush1.msra.mxu0 %v38
    %491 = vmatprep.subr.mxu0 0.0
    %492 = vmatpush1.msra.mxu0 %v39
    %493 = vmatprep.subr.mxu0 0.0
    %494 = vmatpush1.msra.mxu0 %v40
    %495 = vmatprep.subr.mxu0 0.0
    %496 = vmatpush1.msra.mxu0 0.0
    %497 = vmatprep.subr.mxu0 0.0
    %498 = vmatpush1.msra.mxu0 0.0
    %499 = vmatprep.subr.mxu0 0.0
    %500 = vmatpush1.msra.mxu0 0.0
    %501 = vmatprep.subr.mxu0 0.0
    %502 = vmatpush1.msra.mxu0 0.0
    %503 = vmatprep.subr.mxu0 0.0
    %504 = vmatpush1.msra.mxu0 0.0
    %505 = vmatprep.subr.mxu0 0.0
    %506 = vmatpush1.msra.mxu0 0.0
    %507 = vmatprep.subr.mxu0 0.0
    %508 = vmatpush1.msra.mxu0 0.0
    %509 = vmatprep.subr.mxu0 0.0
    %510 = vmatpush1.msra.mxu0 0.0
    %511 = vmatprep.subr.mxu0 0.0
    %512 = vmatpush1.msra.mxu0 0.0
    %513 = vmatprep.subr.mxu0 0.0
    %514 = vmatpush1.msra.mxu0 0.0
    %515 = vmatprep.subr.mxu0 0.0
    %516 = vmatpush1.msra.mxu0 0.0
    %517 = vmatprep.subr.mxu0 0.0
    %518 = vmatpush1.msra.mxu0 0.0
    %519 = vmatprep.subr.mxu0 0.0
    %520 = vmatpush1.msra.mxu0 0.0
    %521 = vmatprep.subr.mxu0 0.0
    %522 = vmatpush1.msra.mxu0 0.0
    %523 = vmatprep.subr.mxu0 0.0
    %524 = vmatpush1.msra.mxu0 0.0
    %525 = vmatprep.subr.mxu0 0.0
    %526 = vmatpush1.msra.mxu0 0.0
    %527 = vmatprep.subr.mxu0 0.0
    %528 = vmatpush1.msra.mxu0 0.0
    %529 = vmatprep.subr.mxu0 0.0
    %530 = vmatpush1.msra.mxu0 0.0
    %531 = vmatprep.subr.mxu0 0.0
    %532 = vmatpush1.msra.mxu0 0.0
    %533 = vmatprep.subr.mxu0 0.0
    %534 = vmatpush1.msra.mxu0 0.0
    %535 = vmatprep.subr.mxu0 0.0
    %536 = vmatpush1.msra.mxu0 0.0
    %537 = vmatprep.subr.mxu0 0.0
    %538 = vmatpush1.msra.mxu0 0.0
    %539 = vmatprep.subr.mxu0 0.0
    %540 = vmatpush1.msra.mxu0 0.0
    %541 = vmatprep.subr.mxu0 0.0
    %542 = vmatpush1.msra.mxu0 0.0
    %543 = vmatprep.subr.mxu0 0.0
    %544 = vmatpush1.msra.mxu0 0.0
    %545 = vmatprep.subr.mxu0 0.0
    %546 = vmatpush1.msra.mxu0 0.0
    %547 = vmatprep.subr.mxu0 0.0
    %548 = vmatpush1.msra.mxu0 0.0
    %549 = vmatprep.subr.mxu0 0.0
    %550 = vmatpush1.msra.mxu0 0.0
    %551 = vmatprep.mubr.f32.mxu0 0.0
    %552 = vmatmul.mubr.f32.gmra.mrb[0].mxu0 %v65
    %v553 = vpop.f32.mrb[0].mxu0
    %v554 = vadd.f32 0.0, %v553
    %v555 = vpop.f32.mrb[0].mxu0
    %556 = vdwg.mxu0
    %557 = vmatprep.subr.mxu0 0.0
    %558 = vmatpush1.msra.mxu0 %v41
    %559 = vmatprep.subr.mxu0 0.0
    %560 = vmatpush1.msra.mxu0 %v42
    %561 = vmatprep.subr.mxu0 0.0
    %562 = vmatpush1.msra.mxu0 %v43
    %563 = vmatprep.subr.mxu0 0.0
    %564 = vmatpush1.msra.mxu0 %v44
    %565 = vmatprep.subr.mxu0 0.0
    %566 = vmatpush1.msra.mxu0 0.0
    %567 = vmatprep.subr.mxu0 0.0
    %568 = vmatpush1.msra.mxu0 0.0
    %569 = vmatprep.subr.mxu0 0.0
    %570 = vmatpush1.msra.mxu0 0.0
    %571 = vmatprep.subr.mxu0 0.0
    %572 = vmatpush1.msra.mxu0 0.0
    %573 = vmatprep.subr.mxu0 0.0
    %574 = vmatpush1.msra.mxu0 0.0
    %575 = vmatprep.subr.mxu0 0.0
    %576 = vmatpush1.msra.mxu0 0.0
    %577 = vmatprep.subr.mxu0 0.0
    %578 = vmatpush1.msra.mxu0 0.0
    %579 = vmatprep.subr.mxu0 0.0
    %580 = vmatpush1.msra.mxu0 0.0
    %581 = vmatprep.subr.mxu0 0.0
    %582 = vmatpush1.msra.mxu0 0.0
    %583 = vmatprep.subr.mxu0 0.0
    %584 = vmatpush1.msra.mxu0 0.0
    %585 = vmatprep.subr.mxu0 0.0
    %586 = vmatpush1.msra.mxu0 0.0
    %587 = vmatprep.subr.mxu0 0.0
    %588 = vmatpush1.msra.mxu0 0.0
    %589 = vmatprep.subr.mxu0 0.0
    %590 = vmatpush1.msra.mxu0 0.0
    %591 = vmatprep.subr.mxu0 0.0
    %592 = vmatpush1.msra.mxu0 0.0
    %593 = vmatprep.subr.mxu0 0.0
    %594 = vmatpush1.msra.mxu0 0.0
    %595 = vmatprep.subr.mxu0 0.0
    %596 = vmatpush1.msra.mxu0 0.0
    %597 = vmatprep.subr.mxu0 0.0
    %598 = vmatpush1.msra.mxu0 0.0
    %599 = vmatprep.subr.mxu0 0.0
    %600 = vmatpush1.msra.mxu0 0.0
    %601 = vmatprep.subr.mxu0 0.0
    %602 = vmatpush1.msra.mxu0 0.0
    %603 = vmatprep.subr.mxu0 0.0
    %604 = vmatpush1.msra.mxu0 0.0
    %605 = vmatprep.subr.mxu0 0.0
    %606 = vmatpush1.msra.mxu0 0.0
    %607 = vmatprep.subr.mxu0 0.0
    %608 = vmatpush1.msra.mxu0 0.0
    %609 = vmatprep.subr.mxu0 0.0
    %610 = vmatpush1.msra.mxu0 0.0
    %611 = vmatprep.subr.mxu0 0.0
    %612 = vmatpush1.msra.mxu0 0.0
    %613 = vmatprep.subr.mxu0 0.0
    %614 = vmatpush1.msra.mxu0 0.0
    %615 = vmatprep.subr.mxu0 0.0
    %616 = vmatpush1.msra.mxu0 0.0
    %617 = vmatprep.subr.mxu0 0.0
    %618 = vmatpush1.msra.mxu0 0.0
    %619 = vmatprep.subr.mxu0 0.0
    %620 = vmatpush1.msra.mxu0 0.0
    %621 = vmatprep.mubr.f32.mxu0 0.0
    %622 = vmatmul.mubr.f32.gmra.mrb[0].mxu0 %v65
    %v623 = vpop.f32.mrb[0].mxu0
    %v624 = vadd.f32 0.0, %v623
    %v625 = vpop.f32.mrb[0].mxu0
    %626 = vdwg.mxu0
    %627 = vmatprep.subr.mxu0 0.0
    %628 = vmatpush1.msra.mxu0 %v46
    %629 = vmatprep.subr.mxu0 0.0
    %630 = vmatpush1.msra.mxu0 %v47
    %631 = vmatprep.subr.mxu0 0.0
    %632 = vmatpush1.msra.mxu0 %v48
    %633 = vmatprep.subr.mxu0 0.0
    %634 = vmatpush1.msra.mxu0 %v49
    %635 = vmatprep.subr.mxu0 0.0
    %636 = vmatpush1.msra.mxu0 0.0
    %637 = vmatprep.subr.mxu0 0.0
    %638 = vmatpush1.msra.mxu0 0.0
    %639 = vmatprep.subr.mxu0 0.0
    %640 = vmatpush1.msra.mxu0 0.0
    %641 = vmatprep.subr.mxu0 0.0
    %642 = vmatpush1.msra.mxu0 0.0
    %643 = vmatprep.subr.mxu0 0.0
    %644 = vmatpush1.msra.mxu0 0.0
    %645 = vmatprep.subr.mxu0 0.0
    %646 = vmatpush1.msra.mxu0 0.0
    %647 = vmatprep.subr.mxu0 0.0
    %648 = vmatpush1.msra.mxu0 0.0
    %649 = vmatprep.subr.mxu0 0.0
    %650 = vmatpush1.msra.mxu0 0.0
    %651 = vmatprep.subr.mxu0 0.0
    %652 = vmatpush1.msra.mxu0 0.0
    %653 = vmatprep.subr.mxu0 0.0
    %654 = vmatpush1.msra.mxu0 0.0
    %655 = vmatprep.subr.mxu0 0.0
    %656 = vmatpush1.msra.mxu0 0.0
    %657 = vmatprep.subr.mxu0 0.0
    %658 = vmatpush1.msra.mxu0 0.0
    %659 = vmatprep.subr.mxu0 0.0
    %660 = vmatpush1.msra.mxu0 0.0
    %661 = vmatprep.subr.mxu0 0.0
    %662 = vmatpush1.msra.mxu0 0.0
    %663 = vmatprep.subr.mxu0 0.0
    %664 = vmatpush1.msra.mxu0 0.0
    %665 = vmatprep.subr.mxu0 0.0
    %666 = vmatpush1.msra.mxu0 0.0
    %667 = vmatprep.subr.mxu0 0.0
    %668 = vmatpush1.msra.mxu0 0.0
    %669 = vmatprep.subr.mxu0 0.0
    %670 = vmatpush1.msra.mxu0 0.0
    %671 = vmatprep.subr.mxu0 0.0
    %672 = vmatpush1.msra.mxu0 0.0
    %673 = vmatprep.subr.mxu0 0.0
    %674 = vmatpush1.msra.mxu0 0.0
    %675 = vmatprep.subr.mxu0 0.0
    %676 = vmatpush1.msra.mxu0 0.0
    %677 = vmatprep.subr.mxu0 0.0
    %678 = vmatpush1.msra.mxu0 0.0
    %679 = vmatprep.subr.mxu0 0.0
    %680 = vmatpush1.msra.mxu0 0.0
    %681 = vmatprep.subr.mxu0 0.0
    %682 = vmatpush1.msra.mxu0 0.0
    %683 = vmatprep.subr.mxu0 0.0
    %684 = vmatpush1.msra.mxu0 0.0
    %685 = vmatprep.subr.mxu0 0.0
    %686 = vmatpush1.msra.mxu0 0.0
    %687 = vmatprep.subr.mxu0 0.0
    %688 = vmatpush1.msra.mxu0 0.0
    %689 = vmatprep.subr.mxu0 0.0
    %690 = vmatpush1.msra.mxu0 0.0
    %691 = vmatprep.mubr.f32.mxu0 0.0
    %692 = vmatmul.mubr.f32.gmra.mrb[0].mxu0 %v65
    %v693 = vpop.f32.mrb[0].mxu0
    %v694 = vadd.f32 0.0, %v693
    %v695 = vpop.f32.mrb[0].mxu0
    %696 = vdwg.mxu0
    %697 = vmatprep.subr.mxu0 0.0
    %698 = vmatpush1.msra.mxu0 %v50
    %699 = vmatprep.subr.mxu0 0.0
    %700 = vmatpush1.msra.mxu0 %v51
    %701 = vmatprep.subr.mxu0 0.0
    %702 = vmatpush1.msra.mxu0 %v52
    %703 = vmatprep.subr.mxu0 0.0
    %704 = vmatpush1.msra.mxu0 %v53
    %705 = vmatprep.subr.mxu0 0.0
    %706 = vmatpush1.msra.mxu0 0.0
    %707 = vmatprep.subr.mxu0 0.0
    %708 = vmatpush1.msra.mxu0 0.0
    %709 = vmatprep.subr.mxu0 0.0
    %710 = vmatpush1.msra.mxu0 0.0
    %711 = vmatprep.subr.mxu0 0.0
    %712 = vmatpush1.msra.mxu0 0.0
    %713 = vmatprep.subr.mxu0 0.0
    %714 = vmatpush1.msra.mxu0 0.0
    %715 = vmatprep.subr.mxu0 0.0
    %716 = vmatpush1.msra.mxu0 0.0
    %717 = vmatprep.subr.mxu0 0.0
    %718 = vmatpush1.msra.mxu0 0.0
    %719 = vmatprep.subr.mxu0 0.0
    %720 = vmatpush1.msra.mxu0 0.0
    %721 = vmatprep.subr.mxu0 0.0
    %722 = vmatpush1.msra.mxu0 0.0
    %723 = vmatprep.subr.mxu0 0.0
    %724 = vmatpush1.msra.mxu0 0.0
    %725 = vmatprep.subr.mxu0 0.0
    %726 = vmatpush1.msra.mxu0 0.0
    %727 = vmatprep.subr.mxu0 0.0
    %728 = vmatpush1.msra.mxu0 0.0
    %729 = vmatprep.subr.mxu0 0.0
    %730 = vmatpush1.msra.mxu0 0.0
    %731 = vmatprep.subr.mxu0 0.0
    %732 = vmatpush1.msra.mxu0 0.0
    %733 = vmatprep.subr.mxu0 0.0
    %734 = vmatpush1.msra.mxu0 0.0
    %735 = vmatprep.subr.mxu0 0.0
    %736 = vmatpush1.msra.mxu0 0.0
    %737 = vmatprep.subr.mxu0 0.0
    %738 = vmatpush1.msra.mxu0 0.0
    %739 = vmatprep.subr.mxu0 0.0
    %740 = vmatpush1.msra.mxu0 0.0
    %741 = vmatprep.subr.mxu0 0.0
    %742 = vmatpush1.msra.mxu0 0.0
    %743 = vmatprep.subr.mxu0 0.0
    %744 = vmatpush1.msra.mxu0 0.0
    %745 = vmatprep.subr.mxu0 0.0
    %746 = vmatpush1.msra.mxu0 0.0
    %747 = vmatprep.subr.mxu0 0.0
    %748 = vmatpush1.msra.mxu0 0.0
    %749 = vmatprep.subr.mxu0 0.0
    %750 = vmatpush1.msra.mxu0 0.0
    %751 = vmatprep.subr.mxu0 0.0
    %752 = vmatpush1.msra.mxu0 0.0
    %753 = vmatprep.subr.mxu0 0.0
    %754 = vmatpush1.msra.mxu0 0.0
    %755 = vmatprep.subr.mxu0 0.0
    %756 = vmatpush1.msra.mxu0 0.0
    %757 = vmatprep.subr.mxu0 0.0
    %758 = vmatpush1.msra.mxu0 0.0
    %759 = vmatprep.subr.mxu0 0.0
    %760 = vmatpush1.msra.mxu0 0.0
    %761 = vmatprep.mubr.f32.mxu0 0.0
    %762 = vmatmul.mubr.f32.gmra.mrb[0].mxu0 %v65
    %v763 = vpop.f32.mrb[0].mxu0
    %v764 = vadd.f32 0.0, %v763
    %v765 = vpop.f32.mrb[0].mxu0
    %766 = vdwg.mxu0
    %767 = vmatprep.subr.mxu0 0.0
    %768 = vmatpush1.msra.mxu0 %v54
    %769 = vmatprep.subr.mxu0 0.0
    %770 = vmatpush1.msra.mxu0 %v55
    %771 = vmatprep.subr.mxu0 0.0
    %772 = vmatpush1.msra.mxu0 %v56
    %773 = vmatprep.subr.mxu0 0.0
    %774 = vmatpush1.msra.mxu0 %v57
    %775 = vmatprep.subr.mxu0 0.0
    %776 = vmatpush1.msra.mxu0 0.0
    %777 = vmatprep.subr.mxu0 0.0
    %778 = vmatpush1.msra.mxu0 0.0
    %779 = vmatprep.subr.mxu0 0.0
    %780 = vmatpush1.msra.mxu0 0.0
    %781 = vmatprep.subr.mxu0 0.0
    %782 = vmatpush1.msra.mxu0 0.0
    %783 = vmatprep.subr.mxu0 0.0
    %784 = vmatpush1.msra.mxu0 0.0
    %785 = vmatprep.subr.mxu0 0.0
    %786 = vmatpush1.msra.mxu0 0.0
    %787 = vmatprep.subr.mxu0 0.0
    %788 = vmatpush1.msra.mxu0 0.0
    %789 = vmatprep.subr.mxu0 0.0
    %790 = vmatpush1.msra.mxu0 0.0
    %791 = vmatprep.subr.mxu0 0.0
    %792 = vmatpush1.msra.mxu0 0.0
    %793 = vmatprep.subr.mxu0 0.0
    %794 = vmatpush1.msra.mxu0 0.0
    %795 = vmatprep.subr.mxu0 0.0
    %796 = vmatpush1.msra.mxu0 0.0
    %797 = vmatprep.subr.mxu0 0.0
    %798 = vmatpush1.msra.mxu0 0.0
    %799 = vmatprep.subr.mxu0 0.0
    %800 = vmatpush1.msra.mxu0 0.0
    %801 = vmatprep.subr.mxu0 0.0
    %802 = vmatpush1.msra.mxu0 0.0
    %803 = vmatprep.subr.mxu0 0.0
    %804 = vmatpush1.msra.mxu0 0.0
    %805 = vmatprep.subr.mxu0 0.0
    %806 = vmatpush1.msra.mxu0 0.0
    %807 = vmatprep.subr.mxu0 0.0
    %808 = vmatpush1.msra.mxu0 0.0
    %809 = vmatprep.subr.mxu0 0.0
    %810 = vmatpush1.msra.mxu0 0.0
    %811 = vmatprep.subr.mxu0 0.0
    %812 = vmatpush1.msra.mxu0 0.0
    %813 = vmatprep.subr.mxu0 0.0
    %814 = vmatpush1.msra.mxu0 0.0
    %815 = vmatprep.subr.mxu0 0.0
    %816 = vmatpush1.msra.mxu0 0.0
    %817 = vmatprep.subr.mxu0 0.0
    %818 = vmatpush1.msra.mxu0 0.0
    %819 = vmatprep.subr.mxu0 0.0
    %820 = vmatpush1.msra.mxu0 0.0
    %821 = vmatprep.subr.mxu0 0.0
    %822 = vmatpush1.msra.mxu0 0.0
    %823 = vmatprep.subr.mxu0 0.0
    %824 = vmatpush1.msra.mxu0 0.0
    %825 = vmatprep.subr.mxu0 0.0
    %826 = vmatpush1.msra.mxu0 0.0
    %827 = vmatprep.subr.mxu0 0.0
    %828 = vmatpush1.msra.mxu0 0.0
    %829 = vmatprep.subr.mxu0 0.0
    %830 = vmatpush1.msra.mxu0 0.0
    %831 = vmatprep.mubr.f32.mxu0 0.0
    %832 = vmatmul.mubr.f32.gmra.mrb[0].mxu0 %v65
    %v833 = vpop.f32.mrb[0].mxu0
    %v834 = vadd.f32 0.0, %v833
    %v835 = vpop.f32.mrb[0].mxu0
    %836 = vdwg.mxu0
    %837 = vmatprep.subr.mxu0 0.0
    %838 = vmatpush1.msra.mxu0 %v58
    %839 = vmatprep.subr.mxu0 0.0
    %840 = vmatpush1.msra.mxu0 %v59
    %841 = vmatprep.subr.mxu0 0.0
    %842 = vmatpush1.msra.mxu0 %v60
    %843 = vmatprep.subr.mxu0 0.0
    %844 = vmatpush1.msra.mxu0 %v61
    %845 = vmatprep.subr.mxu0 0.0
    %846 = vmatpush1.msra.mxu0 0.0
    %847 = vmatprep.subr.mxu0 0.0
    %848 = vmatpush1.msra.mxu0 0.0
    %849 = vmatprep.subr.mxu0 0.0
    %850 = vmatpush1.msra.mxu0 0.0
    %851 = vmatprep.subr.mxu0 0.0
    %852 = vmatpush1.msra.mxu0 0.0
    %853 = vmatprep.subr.mxu0 0.0
    %854 = vmatpush1.msra.mxu0 0.0
    %855 = vmatprep.subr.mxu0 0.0
    %856 = vmatpush1.msra.mxu0 0.0
    %857 = vmatprep.subr.mxu0 0.0
    %858 = vmatpush1.msra.mxu0 0.0
    %859 = vmatprep.subr.mxu0 0.0
    %860 = vmatpush1.msra.mxu0 0.0
    %861 = vmatprep.subr.mxu0 0.0
    %862 = vmatpush1.msra.mxu0 0.0
    %863 = vmatprep.subr.mxu0 0.0
    %864 = vmatpush1.msra.mxu0 0.0
    %865 = vmatprep.subr.mxu0 0.0
    %866 = vmatpush1.msra.mxu0 0.0
    %867 = vmatprep.subr.mxu0 0.0
    %868 = vmatpush1.msra.mxu0 0.0
    %869 = vmatprep.subr.mxu0 0.0
    %870 = vmatpush1.msra.mxu0 0.0
    %871 = vmatprep.subr.mxu0 0.0
    %872 = vmatpush1.msra.mxu0 0.0
    %873 = vmatprep.subr.mxu0 0.0
    %874 = vmatpush1.msra.mxu0 0.0
    %875 = vmatprep.subr.mxu0 0.0
    %876 = vmatpush1.msra.mxu0 0.0
    %877 = vmatprep.subr.mxu0 0.0
    %878 = vmatpush1.msra.mxu0 0.0
    %879 = vmatprep.subr.mxu0 0.0
    %880 = vmatpush1.msra.mxu0 0.0
    %881 = vmatprep.subr.mxu0 0.0
    %882 = vmatpush1.msra.mxu0 0.0
    %883 = vmatprep.subr.mxu0 0.0
    %884 = vmatpush1.msra.mxu0 0.0
    %885 = vmatprep.subr.mxu0 0.0
    %886 = vmatpush1.msra.mxu0 0.0
    %887 = vmatprep.subr.mxu0 0.0
    %888 = vmatpush1.msra.mxu0 0.0
    %889 = vmatprep.subr.mxu0 0.0
    %890 = vmatpush1.msra.mxu0 0.0
    %891 = vmatprep.subr.mxu0 0.0
    %892 = vmatpush1.msra.mxu0 0.0
    %893 = vmatprep.subr.mxu0 0.0
    %894 = vmatpush1.msra.mxu0 0.0
    %895 = vmatprep.subr.mxu0 0.0
    %896 = vmatpush1.msra.mxu0 0.0
    %897 = vmatprep.subr.mxu0 0.0
    %898 = vmatpush1.msra.mxu0 0.0
    %899 = vmatprep.subr.mxu0 0.0
    %900 = vmatpush1.msra.mxu0 0.0
    %901 = vmatprep.mubr.f32.mxu0 0.0
    %902 = vmatmul.mubr.f32.gmra.mrb[0].mxu0 %v65
    %v903 = vpop.f32.mrb[0].mxu0
    %v904 = vadd.f32 0.0, %v903
    %v905 = vpop.f32.mrb[0].mxu0
    %906 = vdwg.mxu0
    %vm907 = vcmask 64512
    %v909 = vsel %vm907, %v134, 0
    %v912 = vsel %vm907, %v414, 0
    %914 = vmatprep.subr.mxu0 0.0
    %915 = vmatpush1.xpose.msra.mxu0 %v912
    %916 = vmatprep.subr.mxu0 0.0
    %917 = vmatpush1.xpose.msra.mxu0 0.0
    %918 = vmatprep.subr.mxu0 0.0
    %919 = vmatpush1.xpose.msra.mxu0 0.0
    %920 = vmatprep.subr.mxu0 0.0
    %921 = vmatpush1.xpose.msra.mxu0 0.0
    %922 = vmatprep.subr.mxu0 0.0
    %923 = vmatpush1.xpose.msra.mxu0 0.0
    %924 = vmatprep.subr.mxu0 0.0
    %925 = vmatpush1.xpose.msra.mxu0 0.0
    %926 = vmatprep.subr.mxu0 0.0
    %927 = vmatpush1.xpose.msra.mxu0 0.0
    %928 = vmatprep.subr.mxu0 0.0
    %929 = vmatpush1.xpose.msra.mxu0 0.0
    %930 = vmatprep.subr.mxu0 0.0
    %931 = vmatpush1.xpose.msra.mxu0 0.0
    %932 = vmatprep.subr.mxu0 0.0
    %933 = vmatpush1.xpose.msra.mxu0 0.0
    %934 = vmatprep.subr.mxu0 0.0
    %935 = vmatpush1.xpose.msra.mxu0 0.0
    %936 = vmatprep.subr.mxu0 0.0
    %937 = vmatpush1.xpose.msra.mxu0 0.0
    %938 = vmatprep.subr.mxu0 0.0
    %939 = vmatpush1.xpose.msra.mxu0 0.0
    %940 = vmatprep.subr.mxu0 0.0
    %941 = vmatpush1.xpose.msra.mxu0 0.0
    %942 = vmatprep.subr.mxu0 0.0
    %943 = vmatpush1.xpose.msra.mxu0 0.0
    %944 = vmatprep.subr.mxu0 0.0
    %945 = vmatpush1.xpose.msra.mxu0 0.0
    %946 = vmatprep.subr.mxu0 0.0
    %947 = vmatpush1.xpose.msra.mxu0 0.0
    %948 = vmatprep.subr.mxu0 0.0
    %949 = vmatpush1.xpose.msra.mxu0 0.0
    %950 = vmatprep.subr.mxu0 0.0
    %951 = vmatpush1.xpose.msra.mxu0 0.0
    %952 = vmatprep.subr.mxu0 0.0
    %953 = vmatpush1.xpose.msra.mxu0 0.0
    %954 = vmatprep.subr.mxu0 0.0
    %955 = vmatpush1.xpose.msra.mxu0 0.0
    %956 = vmatprep.subr.mxu0 0.0
    %957 = vmatpush1.xpose.msra.mxu0 0.0
    %958 = vmatprep.subr.mxu0 0.0
    %959 = vmatpush1.xpose.msra.mxu0 0.0
    %960 = vmatprep.subr.mxu0 0.0
    %961 = vmatpush1.xpose.msra.mxu0 0.0
    %962 = vmatprep.subr.mxu0 0.0
    %963 = vmatpush1.xpose.msra.mxu0 0.0
    %964 = vmatprep.subr.mxu0 0.0
    %965 = vmatpush1.xpose.msra.mxu0 0.0
    %966 = vmatprep.subr.mxu0 0.0
    %967 = vmatpush1.xpose.msra.mxu0 0.0
    %968 = vmatprep.subr.mxu0 0.0
    %969 = vmatpush1.xpose.msra.mxu0 0.0
    %970 = vmatprep.subr.mxu0 0.0
    %971 = vmatpush1.xpose.msra.mxu0 0.0
    %972 = vmatprep.subr.mxu0 0.0
    %973 = vmatpush1.xpose.msra.mxu0 0.0
    %974 = vmatprep.subr.mxu0 0.0
    %975 = vmatpush1.xpose.msra.mxu0 0.0
    %976 = vmatprep.subr.mxu0 0.0
    %977 = vmatpush1.xpose.msra.mxu0 0.0
    %978 = vmatprep.mubr.f32.mxu0 0.0
    %979 = vmatmul.mubr.f32.gmra.mrb[0].mxu0 %v909
    %v980 = vpop.f32.mrb[0].mxu0
    %v981 = vadd.f32 0.0, %v980
    %v982 = vpop.f32.mrb[0].mxu0
    %983 = vdwg.mxu0
    %v985 = vsel %vm907, %v204, 0
    %v988 = vsel %vm907, %v484, 0
    %990 = vmatprep.subr.mxu0 0.0
    %991 = vmatpush1.xpose.msra.mxu0 %v988
    %992 = vmatprep.subr.mxu0 0.0
    %993 = vmatpush1.xpose.msra.mxu0 0.0
    %994 = vmatprep.subr.mxu0 0.0
    %995 = vmatpush1.xpose.msra.mxu0 0.0
    %996 = vmatprep.subr.mxu0 0.0
    %997 = vmatpush1.xpose.msra.mxu0 0.0
    %998 = vmatprep.subr.mxu0 0.0
    %999 = vmatpush1.xpose.msra.mxu0 0.0
    %1000 = vmatprep.subr.mxu0 0.0
    %1001 = vmatpush1.xpose.msra.mxu0 0.0
    %1002 = vmatprep.subr.mxu0 0.0
    %1003 = vmatpush1.xpose.msra.mxu0 0.0
    %1004 = vmatprep.subr.mxu0 0.0
    %1005 = vmatpush1.xpose.msra.mxu0 0.0
    %1006 = vmatprep.subr.mxu0 0.0
    %1007 = vmatpush1.xpose.msra.mxu0 0.0
    %1008 = vmatprep.subr.mxu0 0.0
    %1009 = vmatpush1.xpose.msra.mxu0 0.0
    %1010 = vmatprep.subr.mxu0 0.0
    %1011 = vmatpush1.xpose.msra.mxu0 0.0
    %1012 = vmatprep.subr.mxu0 0.0
    %1013 = vmatpush1.xpose.msra.mxu0 0.0
    %1014 = vmatprep.subr.mxu0 0.0
    %1015 = vmatpush1.xpose.msra.mxu0 0.0
    %1016 = vmatprep.subr.mxu0 0.0
    %1017 = vmatpush1.xpose.msra.mxu0 0.0
    %1018 = vmatprep.subr.mxu0 0.0
    %1019 = vmatpush1.xpose.msra.mxu0 0.0
    %1020 = vmatprep.subr.mxu0 0.0
    %1021 = vmatpush1.xpose.msra.mxu0 0.0
    %1022 = vmatprep.subr.mxu0 0.0
    %1023 = vmatpush1.xpose.msra.mxu0 0.0
    %1024 = vmatprep.subr.mxu0 0.0
    %1025 = vmatpush1.xpose.msra.mxu0 0.0
    %1026 = vmatprep.subr.mxu0 0.0
    %1027 = vmatpush1.xpose.msra.mxu0 0.0
    %1028 = vmatprep.subr.mxu0 0.0
    %1029 = vmatpush1.xpose.msra.mxu0 0.0
    %1030 = vmatprep.subr.mxu0 0.0
    %1031 = vmatpush1.xpose.msra.mxu0 0.0
    %1032 = vmatprep.subr.mxu0 0.0
    %1033 = vmatpush1.xpose.msra.mxu0 0.0
    %1034 = vmatprep.subr.mxu0 0.0
    %1035 = vmatpush1.xpose.msra.mxu0 0.0
    %1036 = vmatprep.subr.mxu0 0.0
    %1037 = vmatpush1.xpose.msra.mxu0 0.0
    %1038 = vmatprep.subr.mxu0 0.0
    %1039 = vmatpush1.xpose.msra.mxu0 0.0
    %1040 = vmatprep.subr.mxu0 0.0
    %1041 = vmatpush1.xpose.msra.mxu0 0.0
    %1042 = vmatprep.subr.mxu0 0.0
    %1043 = vmatpush1.xpose.msra.mxu0 0.0
    %1044 = vmatprep.subr.mxu0 0.0
    %1045 = vmatpush1.xpose.msra.mxu0 0.0
    %1046 = vmatprep.subr.mxu0 0.0
    %1047 = vmatpush1.xpose.msra.mxu0 0.0
    %1048 = vmatprep.subr.mxu0 0.0
    %1049 = vmatpush1.xpose.msra.mxu0 0.0
    %1050 = vmatprep.subr.mxu0 0.0
    %1051 = vmatpush1.xpose.msra.mxu0 0.0
    %1052 = vmatprep.subr.mxu0 0.0
    %1053 = vmatpush1.xpose.msra.mxu0 0.0
    %1054 = vmatprep.mubr.f32.mxu0 0.0
    %1055 = vmatmul.mubr.f32.gmra.mrb[0].mxu0 %v985
    %v1056 = vpop.f32.mrb[0].mxu0
    %v1057 = vadd.f32 0.0, %v1056
    %v1058 = vpop.f32.mrb[0].mxu0
    %1059 = vdwg.mxu0
    %v1061 = vsel %vm907, %v274, 0
    %v1064 = vsel %vm907, %v554, 0
    %1066 = vmatprep.subr.mxu0 0.0
    %1067 = vmatpush1.xpose.msra.mxu0 %v1064
    %1068 = vmatprep.subr.mxu0 0.0
    %1069 = vmatpush1.xpose.msra.mxu0 0.0
    %1070 = vmatprep.subr.mxu0 0.0
    %1071 = vmatpush1.xpose.msra.mxu0 0.0
    %1072 = vmatprep.subr.mxu0 0.0
    %1073 = vmatpush1.xpose.msra.mxu0 0.0
    %1074 = vmatprep.subr.mxu0 0.0
    %1075 = vmatpush1.xpose.msra.mxu0 0.0
    %1076 = vmatprep.subr.mxu0 0.0
    %1077 = vmatpush1.xpose.msra.mxu0 0.0
    %1078 = vmatprep.subr.mxu0 0.0
    %1079 = vmatpush1.xpose.msra.mxu0 0.0
    %1080 = vmatprep.subr.mxu0 0.0
    %1081 = vmatpush1.xpose.msra.mxu0 0.0
    %1082 = vmatprep.subr.mxu0 0.0
    %1083 = vmatpush1.xpose.msra.mxu0 0.0
    %1084 = vmatprep.subr.mxu0 0.0
    %1085 = vmatpush1.xpose.msra.mxu0 0.0
    %1086 = vmatprep.subr.mxu0 0.0
    %1087 = vmatpush1.xpose.msra.mxu0 0.0
    %1088 = vmatprep.subr.mxu0 0.0
    %1089 = vmatpush1.xpose.msra.mxu0 0.0
    %1090 = vmatprep.subr.mxu0 0.0
    %1091 = vmatpush1.xpose.msra.mxu0 0.0
    %1092 = vmatprep.subr.mxu0 0.0
    %1093 = vmatpush1.xpose.msra.mxu0 0.0
    %1094 = vmatprep.subr.mxu0 0.0
    %1095 = vmatpush1.xpose.msra.mxu0 0.0
    %1096 = vmatprep.subr.mxu0 0.0
    %1097 = vmatpush1.xpose.msra.mxu0 0.0
    %1098 = vmatprep.subr.mxu0 0.0
    %1099 = vmatpush1.xpose.msra.mxu0 0.0
    %1100 = vmatprep.subr.mxu0 0.0
    %1101 = vmatpush1.xpose.msra.mxu0 0.0
    %1102 = vmatprep.subr.mxu0 0.0
    %1103 = vmatpush1.xpose.msra.mxu0 0.0
    %1104 = vmatprep.subr.mxu0 0.0
    %1105 = vmatpush1.xpose.msra.mxu0 0.0
    %1106 = vmatprep.subr.mxu0 0.0
    %1107 = vmatpush1.xpose.msra.mxu0 0.0
    %1108 = vmatprep.subr.mxu0 0.0
    %1109 = vmatpush1.xpose.msra.mxu0 0.0
    %1110 = vmatprep.subr.mxu0 0.0
    %1111 = vmatpush1.xpose.msra.mxu0 0.0
    %1112 = vmatprep.subr.mxu0 0.0
    %1113 = vmatpush1.xpose.msra.mxu0 0.0
    %1114 = vmatprep.subr.mxu0 0.0
    %1115 = vmatpush1.xpose.msra.mxu0 0.0
    %1116 = vmatprep.subr.mxu0 0.0
    %1117 = vmatpush1.xpose.msra.mxu0 0.0
    %1118 = vmatprep.subr.mxu0 0.0
    %1119 = vmatpush1.xpose.msra.mxu0 0.0
    %1120 = vmatprep.subr.mxu0 0.0
    %1121 = vmatpush1.xpose.msra.mxu0 0.0
    %1122 = vmatprep.subr.mxu0 0.0
    %1123 = vmatpush1.xpose.msra.mxu0 0.0
    %1124 = vmatprep.subr.mxu0 0.0
    %1125 = vmatpush1.xpose.msra.mxu0 0.0
    %1126 = vmatprep.subr.mxu0 0.0
    %1127 = vmatpush1.xpose.msra.mxu0 0.0
    %1128 = vmatprep.subr.mxu0 0.0
    %1129 = vmatpush1.xpose.msra.mxu0 0.0
    %1130 = vmatprep.mubr.f32.mxu0 0.0
    %1131 = vmatmul.mubr.f32.gmra.mrb[0].mxu0 %v1061
    %v1132 = vpop.f32.mrb[0].mxu0
    %v1133 = vadd.f32 0.0, %v1132
    %v1134 = vpop.f32.mrb[0].mxu0
    %1135 = vdwg.mxu0
    %v1137 = vsel %vm907, %v344, 0
    %v1140 = vsel %vm907, %v624, 0
    %1142 = vmatprep.subr.mxu0 0.0
    %1143 = vmatpush1.xpose.msra.mxu0 %v1140
    %1144 = vmatprep.subr.mxu0 0.0
    %1145 = vmatpush1.xpose.msra.mxu0 0.0
    %1146 = vmatprep.subr.mxu0 0.0
    %1147 = vmatpush1.xpose.msra.mxu0 0.0
    %1148 = vmatprep.subr.mxu0 0.0
    %1149 = vmatpush1.xpose.msra.mxu0 0.0
    %1150 = vmatprep.subr.mxu0 0.0
    %1151 = vmatpush1.xpose.msra.mxu0 0.0
    %1152 = vmatprep.subr.mxu0 0.0
    %1153 = vmatpush1.xpose.msra.mxu0 0.0
    %1154 = vmatprep.subr.mxu0 0.0
    %1155 = vmatpush1.xpose.msra.mxu0 0.0
    %1156 = vmatprep.subr.mxu0 0.0
    %1157 = vmatpush1.xpose.msra.mxu0 0.0
    %1158 = vmatprep.subr.mxu0 0.0
    %1159 = vmatpush1.xpose.msra.mxu0 0.0
    %1160 = vmatprep.subr.mxu0 0.0
    %1161 = vmatpush1.xpose.msra.mxu0 0.0
    %1162 = vmatprep.subr.mxu0 0.0
    %1163 = vmatpush1.xpose.msra.mxu0 0.0
    %1164 = vmatprep.subr.mxu0 0.0
    %1165 = vmatpush1.xpose.msra.mxu0 0.0
    %1166 = vmatprep.subr.mxu0 0.0
    %1167 = vmatpush1.xpose.msra.mxu0 0.0
    %1168 = vmatprep.subr.mxu0 0.0
    %1169 = vmatpush1.xpose.msra.mxu0 0.0
    %1170 = vmatprep.subr.mxu0 0.0
    %1171 = vmatpush1.xpose.msra.mxu0 0.0
    %1172 = vmatprep.subr.mxu0 0.0
    %1173 = vmatpush1.xpose.msra.mxu0 0.0
    %1174 = vmatprep.subr.mxu0 0.0
    %1175 = vmatpush1.xpose.msra.mxu0 0.0
    %1176 = vmatprep.subr.mxu0 0.0
    %1177 = vmatpush1.xpose.msra.mxu0 0.0
    %1178 = vmatprep.subr.mxu0 0.0
    %1179 = vmatpush1.xpose.msra.mxu0 0.0
    %1180 = vmatprep.subr.mxu0 0.0
    %1181 = vmatpush1.xpose.msra.mxu0 0.0
    %1182 = vmatprep.subr.mxu0 0.0
    %1183 = vmatpush1.xpose.msra.mxu0 0.0
    %1184 = vmatprep.subr.mxu0 0.0
    %1185 = vmatpush1.xpose.msra.mxu0 0.0
    %1186 = vmatprep.subr.mxu0 0.0
    %1187 = vmatpush1.xpose.msra.mxu0 0.0
    %1188 = vmatprep.subr.mxu0 0.0
    %1189 = vmatpush1.xpose.msra.mxu0 0.0
    %1190 = vmatprep.subr.mxu0 0.0
    %1191 = vmatpush1.xpose.msra.mxu0 0.0
    %1192 = vmatprep.subr.mxu0 0.0
    %1193 = vmatpush1.xpose.msra.mxu0 0.0
    %1194 = vmatprep.subr.mxu0 0.0
    %1195 = vmatpush1.xpose.msra.mxu0 0.0
    %1196 = vmatprep.subr.mxu0 0.0
    %1197 = vmatpush1.xpose.msra.mxu0 0.0
    %1198 = vmatprep.subr.mxu0 0.0
    %1199 = vmatpush1.xpose.msra.mxu0 0.0
    %1200 = vmatprep.subr.mxu0 0.0
    %1201 = vmatpush1.xpose.msra.mxu0 0.0
    %1202 = vmatprep.subr.mxu0 0.0
    %1203 = vmatpush1.xpose.msra.mxu0 0.0
    %1204 = vmatprep.subr.mxu0 0.0
    %1205 = vmatpush1.xpose.msra.mxu0 0.0
    %1206 = vmatprep.mubr.f32.mxu0 0.0
    %1207 = vmatmul.mubr.f32.gmra.mrb[0].mxu0 %v1137
    %v1208 = vpop.f32.mrb[0].mxu0
    %v1209 = vadd.f32 0.0, %v1208
    %v1210 = vpop.f32.mrb[0].mxu0
    %1211 = vdwg.mxu0
    %s1212 = scalar_lea.vmem %s0, 8
    %v1213 = vld [vmem:[%s1212] sm:$0xff]
    %v1215 = vsel %vm63, %v1213, 0
    %1217 = vmatprep.subr.mxu0 0.0
    %1218 = vmatpush1.msra.mxu0 %v12
    %1219 = vmatprep.subr.mxu0 0.0
    %1220 = vmatpush1.msra.mxu0 %v13
    %1221 = vmatprep.subr.mxu0 0.0
    %1222 = vmatpush1.msra.mxu0 %v14
    %1223 = vmatprep.subr.mxu0 0.0
    %1224 = vmatpush1.msra.mxu0 %v15
    %1225 = vmatprep.subr.mxu0 0.0
    %1226 = vmatpush1.msra.mxu0 0.0
    %1227 = vmatprep.subr.mxu0 0.0
    %1228 = vmatpush1.msra.mxu0 0.0
    %1229 = vmatprep.subr.mxu0 0.0
    %1230 = vmatpush1.msra.mxu0 0.0
    %1231 = vmatprep.subr.mxu0 0.0
    %1232 = vmatpush1.msra.mxu0 0.0
    %1233 = vmatprep.subr.mxu0 0.0
    %1234 = vmatpush1.msra.mxu0 0.0
    %1235 = vmatprep.subr.mxu0 0.0
    %1236 = vmatpush1.msra.mxu0 0.0
    %1237 = vmatprep.subr.mxu0 0.0
    %1238 = vmatpush1.msra.mxu0 0.0
    %1239 = vmatprep.subr.mxu0 0.0
    %1240 = vmatpush1.msra.mxu0 0.0
    %1241 = vmatprep.subr.mxu0 0.0
    %1242 = vmatpush1.msra.mxu0 0.0
    %1243 = vmatprep.subr.mxu0 0.0
    %1244 = vmatpush1.msra.mxu0 0.0
    %1245 = vmatprep.subr.mxu0 0.0
    %1246 = vmatpush1.msra.mxu0 0.0
    %1247 = vmatprep.subr.mxu0 0.0
    %1248 = vmatpush1.msra.mxu0 0.0
    %1249 = vmatprep.subr.mxu0 0.0
    %1250 = vmatpush1.msra.mxu0 0.0
    %1251 = vmatprep.subr.mxu0 0.0
    %1252 = vmatpush1.msra.mxu0 0.0
    %1253 = vmatprep.subr.mxu0 0.0
    %1254 = vmatpush1.msra.mxu0 0.0
    %1255 = vmatprep.subr.mxu0 0.0
    %1256 = vmatpush1.msra.mxu0 0.0
    %1257 = vmatprep.subr.mxu0 0.0
    %1258 = vmatpush1.msra.mxu0 0.0
    %1259 = vmatprep.subr.mxu0 0.0
    %1260 = vmatpush1.msra.mxu0 0.0
    %1261 = vmatprep.subr.mxu0 0.0
    %1262 = vmatpush1.msra.mxu0 0.0
    %1263 = vmatprep.subr.mxu0 0.0
    %1264 = vmatpush1.msra.mxu0 0.0
    %1265 = vmatprep.subr.mxu0 0.0
    %1266 = vmatpush1.msra.mxu0 0.0
    %1267 = vmatprep.subr.mxu0 0.0
    %1268 = vmatpush1.msra.mxu0 0.0
    %1269 = vmatprep.subr.mxu0 0.0
    %1270 = vmatpush1.msra.mxu0 0.0
    %1271 = vmatprep.subr.mxu0 0.0
    %1272 = vmatpush1.msra.mxu0 0.0
    %1273 = vmatprep.subr.mxu0 0.0
    %1274 = vmatpush1.msra.mxu0 0.0
    %1275 = vmatprep.subr.mxu0 0.0
    %1276 = vmatpush1.msra.mxu0 0.0
    %1277 = vmatprep.subr.mxu0 0.0
    %1278 = vmatpush1.msra.mxu0 0.0
    %1279 = vmatprep.subr.mxu0 0.0
    %1280 = vmatpush1.msra.mxu0 0.0
    %1281 = vmatprep.mubr.f32.mxu0 0.0
    %1282 = vmatmul.mubr.f32.gmra.mrb[0].mxu0 %v1215
    %v1283 = vpop.f32.mrb[0].mxu0
    %v1284 = vadd.f32 0.0, %v1283
    %v1285 = vpop.f32.mrb[0].mxu0
    %1286 = vdwg.mxu0
    %1287 = vmatprep.subr.mxu0 0.0
    %1288 = vmatpush1.msra.mxu0 %v16
    %1289 = vmatprep.subr.mxu0 0.0
    %1290 = vmatpush1.msra.mxu0 %v17
    %1291 = vmatprep.subr.mxu0 0.0
    %1292 = vmatpush1.msra.mxu0 %v18
    %1293 = vmatprep.subr.mxu0 0.0
    %1294 = vmatpush1.msra.mxu0 %v19
    %1295 = vmatprep.subr.mxu0 0.0
    %1296 = vmatpush1.msra.mxu0 0.0
    %1297 = vmatprep.subr.mxu0 0.0
    %1298 = vmatpush1.msra.mxu0 0.0
    %1299 = vmatprep.subr.mxu0 0.0
    %1300 = vmatpush1.msra.mxu0 0.0
    %1301 = vmatprep.subr.mxu0 0.0
    %1302 = vmatpush1.msra.mxu0 0.0
    %1303 = vmatprep.subr.mxu0 0.0
    %1304 = vmatpush1.msra.mxu0 0.0
    %1305 = vmatprep.subr.mxu0 0.0
    %1306 = vmatpush1.msra.mxu0 0.0
    %1307 = vmatprep.subr.mxu0 0.0
    %1308 = vmatpush1.msra.mxu0 0.0
    %1309 = vmatprep.subr.mxu0 0.0
    %1310 = vmatpush1.msra.mxu0 0.0
    %1311 = vmatprep.subr.mxu0 0.0
    %1312 = vmatpush1.msra.mxu0 0.0
    %1313 = vmatprep.subr.mxu0 0.0
    %1314 = vmatpush1.msra.mxu0 0.0
    %1315 = vmatprep.subr.mxu0 0.0
    %1316 = vmatpush1.msra.mxu0 0.0
    %1317 = vmatprep.subr.mxu0 0.0
    %1318 = vmatpush1.msra.mxu0 0.0
    %1319 = vmatprep.subr.mxu0 0.0
    %1320 = vmatpush1.msra.mxu0 0.0
    %1321 = vmatprep.subr.mxu0 0.0
    %1322 = vmatpush1.msra.mxu0 0.0
    %1323 = vmatprep.subr.mxu0 0.0
    %1324 = vmatpush1.msra.mxu0 0.0
    %1325 = vmatprep.subr.mxu0 0.0
    %1326 = vmatpush1.msra.mxu0 0.0
    %1327 = vmatprep.subr.mxu0 0.0
    %1328 = vmatpush1.msra.mxu0 0.0
    %1329 = vmatprep.subr.mxu0 0.0
    %1330 = vmatpush1.msra.mxu0 0.0
    %1331 = vmatprep.subr.mxu0 0.0
    %1332 = vmatpush1.msra.mxu0 0.0
    %1333 = vmatprep.subr.mxu0 0.0
    %1334 = vmatpush1.msra.mxu0 0.0
    %1335 = vmatprep.subr.mxu0 0.0
    %1336 = vmatpush1.msra.mxu0 0.0
    %1337 = vmatprep.subr.mxu0 0.0
    %1338 = vmatpush1.msra.mxu0 0.0
    %1339 = vmatprep.subr.mxu0 0.0
    %1340 = vmatpush1.msra.mxu0 0.0
    %1341 = vmatprep.subr.mxu0 0.0
    %1342 = vmatpush1.msra.mxu0 0.0
    %1343 = vmatprep.subr.mxu0 0.0
    %1344 = vmatpush1.msra.mxu0 0.0
    %1345 = vmatprep.subr.mxu0 0.0
    %1346 = vmatpush1.msra.mxu0 0.0
    %1347 = vmatprep.subr.mxu0 0.0
    %1348 = vmatpush1.msra.mxu0 0.0
    %1349 = vmatprep.subr.mxu0 0.0
    %1350 = vmatpush1.msra.mxu0 0.0
    %1351 = vmatprep.mubr.f32.mxu0 0.0
    %1352 = vmatmul.mubr.f32.gmra.mrb[0].mxu0 %v1215
    %v1353 = vpop.f32.mrb[0].mxu0
    %v1354 = vadd.f32 0.0, %v1353
    %v1355 = vpop.f32.mrb[0].mxu0
    %1356 = vdwg.mxu0
    %1357 = vmatprep.subr.mxu0 0.0
    %1358 = vmatpush1.msra.mxu0 %v20
    %1359 = vmatprep.subr.mxu0 0.0
    %1360 = vmatpush1.msra.mxu0 %v21
    %1361 = vmatprep.subr.mxu0 0.0
    %1362 = vmatpush1.msra.mxu0 %v22
    %1363 = vmatprep.subr.mxu0 0.0
    %1364 = vmatpush1.msra.mxu0 %v23
    %1365 = vmatprep.subr.mxu0 0.0
    %1366 = vmatpush1.msra.mxu0 0.0
    %1367 = vmatprep.subr.mxu0 0.0
    %1368 = vmatpush1.msra.mxu0 0.0
    %1369 = vmatprep.subr.mxu0 0.0
    %1370 = vmatpush1.msra.mxu0 0.0
    %1371 = vmatprep.subr.mxu0 0.0
    %1372 = vmatpush1.msra.mxu0 0.0
    %1373 = vmatprep.subr.mxu0 0.0
    %1374 = vmatpush1.msra.mxu0 0.0
    %1375 = vmatprep.subr.mxu0 0.0
    %1376 = vmatpush1.msra.mxu0 0.0
    %1377 = vmatprep.subr.mxu0 0.0
    %1378 = vmatpush1.msra.mxu0 0.0
    %1379 = vmatprep.subr.mxu0 0.0
    %1380 = vmatpush1.msra.mxu0 0.0
    %1381 = vmatprep.subr.mxu0 0.0
    %1382 = vmatpush1.msra.mxu0 0.0
    %1383 = vmatprep.subr.mxu0 0.0
    %1384 = vmatpush1.msra.mxu0 0.0
    %1385 = vmatprep.subr.mxu0 0.0
    %1386 = vmatpush1.msra.mxu0 0.0
    %1387 = vmatprep.subr.mxu0 0.0
    %1388 = vmatpush1.msra.mxu0 0.0
    %1389 = vmatprep.subr.mxu0 0.0
    %1390 = vmatpush1.msra.mxu0 0.0
    %1391 = vmatprep.subr.mxu0 0.0
    %1392 = vmatpush1.msra.mxu0 0.0
    %1393 = vmatprep.subr.mxu0 0.0
    %1394 = vmatpush1.msra.mxu0 0.0
    %1395 = vmatprep.subr.mxu0 0.0
    %1396 = vmatpush1.msra.mxu0 0.0
    %1397 = vmatprep.subr.mxu0 0.0
    %1398 = vmatpush1.msra.mxu0 0.0
    %1399 = vmatprep.subr.mxu0 0.0
    %1400 = vmatpush1.msra.mxu0 0.0
    %1401 = vmatprep.subr.mxu0 0.0
    %1402 = vmatpush1.msra.mxu0 0.0
    %1403 = vmatprep.subr.mxu0 0.0
    %1404 = vmatpush1.msra.mxu0 0.0
    %1405 = vmatprep.subr.mxu0 0.0
    %1406 = vmatpush1.msra.mxu0 0.0
    %1407 = vmatprep.subr.mxu0 0.0
    %1408 = vmatpush1.msra.mxu0 0.0
    %1409 = vmatprep.subr.mxu0 0.0
    %1410 = vmatpush1.msra.mxu0 0.0
    %1411 = vmatprep.subr.mxu0 0.0
    %1412 = vmatpush1.msra.mxu0 0.0
    %1413 = vmatprep.subr.mxu0 0.0
    %1414 = vmatpush1.msra.mxu0 0.0
    %1415 = vmatprep.subr.mxu0 0.0
    %1416 = vmatpush1.msra.mxu0 0.0
    %1417 = vmatprep.subr.mxu0 0.0
    %1418 = vmatpush1.msra.mxu0 0.0
    %1419 = vmatprep.subr.mxu0 0.0
    %1420 = vmatpush1.msra.mxu0 0.0
    %1421 = vmatprep.mubr.f32.mxu0 0.0
    %1422 = vmatmul.mubr.f32.gmra.mrb[0].mxu0 %v1215
    %v1423 = vpop.f32.mrb[0].mxu0
    %v1424 = vadd.f32 0.0, %v1423
    %v1425 = vpop.f32.mrb[0].mxu0
    %1426 = vdwg.mxu0
    %1427 = vmatprep.subr.mxu0 0.0
    %1428 = vmatpush1.msra.mxu0 %v24
    %1429 = vmatprep.subr.mxu0 0.0
    %1430 = vmatpush1.msra.mxu0 %v25
    %1431 = vmatprep.subr.mxu0 0.0
    %1432 = vmatpush1.msra.mxu0 %v26
    %1433 = vmatprep.subr.mxu0 0.0
    %1434 = vmatpush1.msra.mxu0 %v27
    %1435 = vmatprep.subr.mxu0 0.0
    %1436 = vmatpush1.msra.mxu0 0.0
    %1437 = vmatprep.subr.mxu0 0.0
    %1438 = vmatpush1.msra.mxu0 0.0
    %1439 = vmatprep.subr.mxu0 0.0
    %1440 = vmatpush1.msra.mxu0 0.0
    %1441 = vmatprep.subr.mxu0 0.0
    %1442 = vmatpush1.msra.mxu0 0.0
    %1443 = vmatprep.subr.mxu0 0.0
    %1444 = vmatpush1.msra.mxu0 0.0
    %1445 = vmatprep.subr.mxu0 0.0
    %1446 = vmatpush1.msra.mxu0 0.0
    %1447 = vmatprep.subr.mxu0 0.0
    %1448 = vmatpush1.msra.mxu0 0.0
    %1449 = vmatprep.subr.mxu0 0.0
    %1450 = vmatpush1.msra.mxu0 0.0
    %1451 = vmatprep.subr.mxu0 0.0
    %1452 = vmatpush1.msra.mxu0 0.0
    %1453 = vmatprep.subr.mxu0 0.0
    %1454 = vmatpush1.msra.mxu0 0.0
    %1455 = vmatprep.subr.mxu0 0.0
    %1456 = vmatpush1.msra.mxu0 0.0
    %1457 = vmatprep.subr.mxu0 0.0
    %1458 = vmatpush1.msra.mxu0 0.0
    %1459 = vmatprep.subr.mxu0 0.0
    %1460 = vmatpush1.msra.mxu0 0.0
    %1461 = vmatprep.subr.mxu0 0.0
    %1462 = vmatpush1.msra.mxu0 0.0
    %1463 = vmatprep.subr.mxu0 0.0
    %1464 = vmatpush1.msra.mxu0 0.0
    %1465 = vmatprep.subr.mxu0 0.0
    %1466 = vmatpush1.msra.mxu0 0.0
    %1467 = vmatprep.subr.mxu0 0.0
    %1468 = vmatpush1.msra.mxu0 0.0
    %1469 = vmatprep.subr.mxu0 0.0
    %1470 = vmatpush1.msra.mxu0 0.0
    %1471 = vmatprep.subr.mxu0 0.0
    %1472 = vmatpush1.msra.mxu0 0.0
    %1473 = vmatprep.subr.mxu0 0.0
    %1474 = vmatpush1.msra.mxu0 0.0
    %1475 = vmatprep.subr.mxu0 0.0
    %1476 = vmatpush1.msra.mxu0 0.0
    %1477 = vmatprep.subr.mxu0 0.0
    %1478 = vmatpush1.msra.mxu0 0.0
    %1479 = vmatprep.subr.mxu0 0.0
    %1480 = vmatpush1.msra.mxu0 0.0
    %1481 = vmatprep.subr.mxu0 0.0
    %1482 = vmatpush1.msra.mxu0 0.0
    %1483 = vmatprep.subr.mxu0 0.0
    %1484 = vmatpush1.msra.mxu0 0.0
    %1485 = vmatprep.subr.mxu0 0.0
    %1486 = vmatpush1.msra.mxu0 0.0
    %1487 = vmatprep.subr.mxu0 0.0
    %1488 = vmatpush1.msra.mxu0 0.0
    %1489 = vmatprep.subr.mxu0 0.0
    %1490 = vmatpush1.msra.mxu0 0.0
    %1491 = vmatprep.mubr.f32.mxu0 0.0
    %1492 = vmatmul.mubr.f32.gmra.mrb[0].mxu0 %v1215
    %v1493 = vpop.f32.mrb[0].mxu0
    %v1494 = vadd.f32 0.0, %v1493
    %v1495 = vpop.f32.mrb[0].mxu0
    %1496 = vdwg.mxu0
    %1497 = vmatprep.subr.mxu0 0.0
    %1498 = vmatpush1.msra.mxu0 %v29
    %1499 = vmatprep.subr.mxu0 0.0
    %1500 = vmatpush1.msra.mxu0 %v30
    %1501 = vmatprep.subr.mxu0 0.0
    %1502 = vmatpush1.msra.mxu0 %v31
    %1503 = vmatprep.subr.mxu0 0.0
    %1504 = vmatpush1.msra.mxu0 %v32
    %1505 = vmatprep.subr.mxu0 0.0
    %1506 = vmatpush1.msra.mxu0 0.0
    %1507 = vmatprep.subr.mxu0 0.0
    %1508 = vmatpush1.msra.mxu0 0.0
    %1509 = vmatprep.subr.mxu0 0.0
    %1510 = vmatpush1.msra.mxu0 0.0
    %1511 = vmatprep.subr.mxu0 0.0
    %1512 = vmatpush1.msra.mxu0 0.0
    %1513 = vmatprep.subr.mxu0 0.0
    %1514 = vmatpush1.msra.mxu0 0.0
    %1515 = vmatprep.subr.mxu0 0.0
    %1516 = vmatpush1.msra.mxu0 0.0
    %1517 = vmatprep.subr.mxu0 0.0
    %1518 = vmatpush1.msra.mxu0 0.0
    %1519 = vmatprep.subr.mxu0 0.0
    %1520 = vmatpush1.msra.mxu0 0.0
    %1521 = vmatprep.subr.mxu0 0.0
    %1522 = vmatpush1.msra.mxu0 0.0
    %1523 = vmatprep.subr.mxu0 0.0
    %1524 = vmatpush1.msra.mxu0 0.0
    %1525 = vmatprep.subr.mxu0 0.0
    %1526 = vmatpush1.msra.mxu0 0.0
    %1527 = vmatprep.subr.mxu0 0.0
    %1528 = vmatpush1.msra.mxu0 0.0
    %1529 = vmatprep.subr.mxu0 0.0
    %1530 = vmatpush1.msra.mxu0 0.0
    %1531 = vmatprep.subr.mxu0 0.0
    %1532 = vmatpush1.msra.mxu0 0.0
    %1533 = vmatprep.subr.mxu0 0.0
    %1534 = vmatpush1.msra.mxu0 0.0
    %1535 = vmatprep.subr.mxu0 0.0
    %1536 = vmatpush1.msra.mxu0 0.0
    %1537 = vmatprep.subr.mxu0 0.0
    %1538 = vmatpush1.msra.mxu0 0.0
    %1539 = vmatprep.subr.mxu0 0.0
    %1540 = vmatpush1.msra.mxu0 0.0
    %1541 = vmatprep.subr.mxu0 0.0
    %1542 = vmatpush1.msra.mxu0 0.0
    %1543 = vmatprep.subr.mxu0 0.0
    %1544 = vmatpush1.msra.mxu0 0.0
    %1545 = vmatprep.subr.mxu0 0.0
    %1546 = vmatpush1.msra.mxu0 0.0
    %1547 = vmatprep.subr.mxu0 0.0
    %1548 = vmatpush1.msra.mxu0 0.0
    %1549 = vmatprep.subr.mxu0 0.0
    %1550 = vmatpush1.msra.mxu0 0.0
    %1551 = vmatprep.subr.mxu0 0.0
    %1552 = vmatpush1.msra.mxu0 0.0
    %1553 = vmatprep.subr.mxu0 0.0
    %1554 = vmatpush1.msra.mxu0 0.0
    %1555 = vmatprep.subr.mxu0 0.0
    %1556 = vmatpush1.msra.mxu0 0.0
    %1557 = vmatprep.subr.mxu0 0.0
    %1558 = vmatpush1.msra.mxu0 0.0
    %1559 = vmatprep.subr.mxu0 0.0
    %1560 = vmatpush1.msra.mxu0 0.0
    %1561 = vmatprep.mubr.f32.mxu0 0.0
    %1562 = vmatmul.mubr.f32.gmra.mrb[0].mxu0 %v1215
    %v1563 = vpop.f32.mrb[0].mxu0
    %v1564 = vadd.f32 0.0, %v1563
    %v1565 = vpop.f32.mrb[0].mxu0
    %1566 = vdwg.mxu0
    %1567 = vmatprep.subr.mxu0 0.0
    %1568 = vmatpush1.msra.mxu0 %v33
    %1569 = vmatprep.subr.mxu0 0.0
    %1570 = vmatpush1.msra.mxu0 %v34
    %1571 = vmatprep.subr.mxu0 0.0
    %1572 = vmatpush1.msra.mxu0 %v35
    %1573 = vmatprep.subr.mxu0 0.0
    %1574 = vmatpush1.msra.mxu0 %v36
    %1575 = vmatprep.subr.mxu0 0.0
    %1576 = vmatpush1.msra.mxu0 0.0
    %1577 = vmatprep.subr.mxu0 0.0
    %1578 = vmatpush1.msra.mxu0 0.0
    %1579 = vmatprep.subr.mxu0 0.0
    %1580 = vmatpush1.msra.mxu0 0.0
    %1581 = vmatprep.subr.mxu0 0.0
    %1582 = vmatpush1.msra.mxu0 0.0
    %1583 = vmatprep.subr.mxu0 0.0
    %1584 = vmatpush1.msra.mxu0 0.0
    %1585 = vmatprep.subr.mxu0 0.0
    %1586 = vmatpush1.msra.mxu0 0.0
    %1587 = vmatprep.subr.mxu0 0.0
    %1588 = vmatpush1.msra.mxu0 0.0
    %1589 = vmatprep.subr.mxu0 0.0
    %1590 = vmatpush1.msra.mxu0 0.0
    %1591 = vmatprep.subr.mxu0 0.0
    %1592 = vmatpush1.msra.mxu0 0.0
    %1593 = vmatprep.subr.mxu0 0.0
    %1594 = vmatpush1.msra.mxu0 0.0
    %1595 = vmatprep.subr.mxu0 0.0
    %1596 = vmatpush1.msra.mxu0 0.0
    %1597 = vmatprep.subr.mxu0 0.0
    %1598 = vmatpush1.msra.mxu0 0.0
    %1599 = vmatprep.subr.mxu0 0.0
    %1600 = vmatpush1.msra.mxu0 0.0
    %1601 = vmatprep.subr.mxu0 0.0
    %1602 = vmatpush1.msra.mxu0 0.0
    %1603 = vmatprep.subr.mxu0 0.0
    %1604 = vmatpush1.msra.mxu0 0.0
    %1605 = vmatprep.subr.mxu0 0.0
    %1606 = vmatpush1.msra.mxu0 0.0
    %1607 = vmatprep.subr.mxu0 0.0
    %1608 = vmatpush1.msra.mxu0 0.0
    %1609 = vmatprep.subr.mxu0 0.0
    %1610 = vmatpush1.msra.mxu0 0.0
    %1611 = vmatprep.subr.mxu0 0.0
    %1612 = vmatpush1.msra.mxu0 0.0
    %1613 = vmatprep.subr.mxu0 0.0
    %1614 = vmatpush1.msra.mxu0 0.0
    %1615 = vmatprep.subr.mxu0 0.0
    %1616 = vmatpush1.msra.mxu0 0.0
    %1617 = vmatprep.subr.mxu0 0.0
    %1618 = vmatpush1.msra.mxu0 0.0
    %1619 = vmatprep.subr.mxu0 0.0
    %1620 = vmatpush1.msra.mxu0 0.0
    %1621 = vmatprep.subr.mxu0 0.0
    %1622 = vmatpush1.msra.mxu0 0.0
    %1623 = vmatprep.subr.mxu0 0.0
    %1624 = vmatpush1.msra.mxu0 0.0
    %1625 = vmatprep.subr.mxu0 0.0
    %1626 = vmatpush1.msra.mxu0 0.0
    %1627 = vmatprep.subr.mxu0 0.0
    %1628 = vmatpush1.msra.mxu0 0.0
    %1629 = vmatprep.subr.mxu0 0.0
    %1630 = vmatpush1.msra.mxu0 0.0
    %1631 = vmatprep.mubr.f32.mxu0 0.0
    %1632 = vmatmul.mubr.f32.gmra.mrb[0].mxu0 %v1215
    %v1633 = vpop.f32.mrb[0].mxu0
    %v1634 = vadd.f32 0.0, %v1633
    %v1635 = vpop.f32.mrb[0].mxu0
    %1636 = vdwg.mxu0
    %1637 = vmatprep.subr.mxu0 0.0
    %1638 = vmatpush1.msra.mxu0 %v37
    %1639 = vmatprep.subr.mxu0 0.0
    %1640 = vmatpush1.msra.mxu0 %v38
    %1641 = vmatprep.subr.mxu0 0.0
    %1642 = vmatpush1.msra.mxu0 %v39
    %1643 = vmatprep.subr.mxu0 0.0
    %1644 = vmatpush1.msra.mxu0 %v40
    %1645 = vmatprep.subr.mxu0 0.0
    %1646 = vmatpush1.msra.mxu0 0.0
    %1647 = vmatprep.subr.mxu0 0.0
    %1648 = vmatpush1.msra.mxu0 0.0
    %1649 = vmatprep.subr.mxu0 0.0
    %1650 = vmatpush1.msra.mxu0 0.0
    %1651 = vmatprep.subr.mxu0 0.0
    %1652 = vmatpush1.msra.mxu0 0.0
    %1653 = vmatprep.subr.mxu0 0.0
    %1654 = vmatpush1.msra.mxu0 0.0
    %1655 = vmatprep.subr.mxu0 0.0
    %1656 = vmatpush1.msra.mxu0 0.0
    %1657 = vmatprep.subr.mxu0 0.0
    %1658 = vmatpush1.msra.mxu0 0.0
    %1659 = vmatprep.subr.mxu0 0.0
    %1660 = vmatpush1.msra.mxu0 0.0
    %1661 = vmatprep.subr.mxu0 0.0
    %1662 = vmatpush1.msra.mxu0 0.0
    %1663 = vmatprep.subr.mxu0 0.0
    %1664 = vmatpush1.msra.mxu0 0.0
    %1665 = vmatprep.subr.mxu0 0.0
    %1666 = vmatpush1.msra.mxu0 0.0
    %1667 = vmatprep.subr.mxu0 0.0
    %1668 = vmatpush1.msra.mxu0 0.0
    %1669 = vmatprep.subr.mxu0 0.0
    %1670 = vmatpush1.msra.mxu0 0.0
    %1671 = vmatprep.subr.mxu0 0.0
    %1672 = vmatpush1.msra.mxu0 0.0
    %1673 = vmatprep.subr.mxu0 0.0
    %1674 = vmatpush1.msra.mxu0 0.0
    %1675 = vmatprep.subr.mxu0 0.0
    %1676 = vmatpush1.msra.mxu0 0.0
    %1677 = vmatprep.subr.mxu0 0.0
    %1678 = vmatpush1.msra.mxu0 0.0
    %1679 = vmatprep.subr.mxu0 0.0
    %1680 = vmatpush1.msra.mxu0 0.0
    %1681 = vmatprep.subr.mxu0 0.0
    %1682 = vmatpush1.msra.mxu0 0.0
    %1683 = vmatprep.subr.mxu0 0.0
    %1684 = vmatpush1.msra.mxu0 0.0
    %1685 = vmatprep.subr.mxu0 0.0
    %1686 = vmatpush1.msra.mxu0 0.0
    %1687 = vmatprep.subr.mxu0 0.0
    %1688 = vmatpush1.msra.mxu0 0.0
    %1689 = vmatprep.subr.mxu0 0.0
    %1690 = vmatpush1.msra.mxu0 0.0
    %1691 = vmatprep.subr.mxu0 0.0
    %1692 = vmatpush1.msra.mxu0 0.0
    %1693 = vmatprep.subr.mxu0 0.0
    %1694 = vmatpush1.msra.mxu0 0.0
    %1695 = vmatprep.subr.mxu0 0.0
    %1696 = vmatpush1.msra.mxu0 0.0
    %1697 = vmatprep.subr.mxu0 0.0
    %1698 = vmatpush1.msra.mxu0 0.0
    %1699 = vmatprep.subr.mxu0 0.0
    %1700 = vmatpush1.msra.mxu0 0.0
    %1701 = vmatprep.mubr.f32.mxu0 0.0
    %1702 = vmatmul.mubr.f32.gmra.mrb[0].mxu0 %v1215
    %v1703 = vpop.f32.mrb[0].mxu0
    %v1704 = vadd.f32 0.0, %v1703
    %v1705 = vpop.f32.mrb[0].mxu0
    %1706 = vdwg.mxu0
    %1707 = vmatprep.subr.mxu0 0.0
    %1708 = vmatpush1.msra.mxu0 %v41
    %1709 = vmatprep.subr.mxu0 0.0
    %1710 = vmatpush1.msra.mxu0 %v42
    %1711 = vmatprep.subr.mxu0 0.0
    %1712 = vmatpush1.msra.mxu0 %v43
    %1713 = vmatprep.subr.mxu0 0.0
    %1714 = vmatpush1.msra.mxu0 %v44
    %1715 = vmatprep.subr.mxu0 0.0
    %1716 = vmatpush1.msra.mxu0 0.0
    %1717 = vmatprep.subr.mxu0 0.0
    %1718 = vmatpush1.msra.mxu0 0.0
    %1719 = vmatprep.subr.mxu0 0.0
    %1720 = vmatpush1.msra.mxu0 0.0
    %1721 = vmatprep.subr.mxu0 0.0
    %1722 = vmatpush1.msra.mxu0 0.0
    %1723 = vmatprep.subr.mxu0 0.0
    %1724 = vmatpush1.msra.mxu0 0.0
    %1725 = vmatprep.subr.mxu0 0.0
    %1726 = vmatpush1.msra.mxu0 0.0
    %1727 = vmatprep.subr.mxu0 0.0
    %1728 = vmatpush1.msra.mxu0 0.0
    %1729 = vmatprep.subr.mxu0 0.0
    %1730 = vmatpush1.msra.mxu0 0.0
    %1731 = vmatprep.subr.mxu0 0.0
    %1732 = vmatpush1.msra.mxu0 0.0
    %1733 = vmatprep.subr.mxu0 0.0
    %1734 = vmatpush1.msra.mxu0 0.0
    %1735 = vmatprep.subr.mxu0 0.0
    %1736 = vmatpush1.msra.mxu0 0.0
    %1737 = vmatprep.subr.mxu0 0.0
    %1738 = vmatpush1.msra.mxu0 0.0
    %1739 = vmatprep.subr.mxu0 0.0
    %1740 = vmatpush1.msra.mxu0 0.0
    %1741 = vmatprep.subr.mxu0 0.0
    %1742 = vmatpush1.msra.mxu0 0.0
    %1743 = vmatprep.subr.mxu0 0.0
    %1744 = vmatpush1.msra.mxu0 0.0
    %1745 = vmatprep.subr.mxu0 0.0
    %1746 = vmatpush1.msra.mxu0 0.0
    %1747 = vmatprep.subr.mxu0 0.0
    %1748 = vmatpush1.msra.mxu0 0.0
    %1749 = vmatprep.subr.mxu0 0.0
    %1750 = vmatpush1.msra.mxu0 0.0
    %1751 = vmatprep.subr.mxu0 0.0
    %1752 = vmatpush1.msra.mxu0 0.0
    %1753 = vmatprep.subr.mxu0 0.0
    %1754 = vmatpush1.msra.mxu0 0.0
    %1755 = vmatprep.subr.mxu0 0.0
    %1756 = vmatpush1.msra.mxu0 0.0
    %1757 = vmatprep.subr.mxu0 0.0
    %1758 = vmatpush1.msra.mxu0 0.0
    %1759 = vmatprep.subr.mxu0 0.0
    %1760 = vmatpush1.msra.mxu0 0.0
    %1761 = vmatprep.subr.mxu0 0.0
    %1762 = vmatpush1.msra.mxu0 0.0
    %1763 = vmatprep.subr.mxu0 0.0
    %1764 = vmatpush1.msra.mxu0 0.0
    %1765 = vmatprep.subr.mxu0 0.0
    %1766 = vmatpush1.msra.mxu0 0.0
    %1767 = vmatprep.subr.mxu0 0.0
    %1768 = vmatpush1.msra.mxu0 0.0
    %1769 = vmatprep.subr.mxu0 0.0
    %1770 = vmatpush1.msra.mxu0 0.0
    %1771 = vmatprep.mubr.f32.mxu0 0.0
    %1772 = vmatmul.mubr.f32.gmra.mrb[0].mxu0 %v1215
    %v1773 = vpop.f32.mrb[0].mxu0
    %v1774 = vadd.f32 0.0, %v1773
    %v1775 = vpop.f32.mrb[0].mxu0
    %1776 = vdwg.mxu0
    %1777 = vmatprep.subr.mxu0 0.0
    %1778 = vmatpush1.msra.mxu0 %v46
    %1779 = vmatprep.subr.mxu0 0.0
    %1780 = vmatpush1.msra.mxu0 %v47
    %1781 = vmatprep.subr.mxu0 0.0
    %1782 = vmatpush1.msra.mxu0 %v48
    %1783 = vmatprep.subr.mxu0 0.0
    %1784 = vmatpush1.msra.mxu0 %v49
    %1785 = vmatprep.subr.mxu0 0.0
    %1786 = vmatpush1.msra.mxu0 0.0
    %1787 = vmatprep.subr.mxu0 0.0
    %1788 = vmatpush1.msra.mxu0 0.0
    %1789 = vmatprep.subr.mxu0 0.0
    %1790 = vmatpush1.msra.mxu0 0.0
    %1791 = vmatprep.subr.mxu0 0.0
    %1792 = vmatpush1.msra.mxu0 0.0
    %1793 = vmatprep.subr.mxu0 0.0
    %1794 = vmatpush1.msra.mxu0 0.0
    %1795 = vmatprep.subr.mxu0 0.0
    %1796 = vmatpush1.msra.mxu0 0.0
    %1797 = vmatprep.subr.mxu0 0.0
    %1798 = vmatpush1.msra.mxu0 0.0
    %1799 = vmatprep.subr.mxu0 0.0
    %1800 = vmatpush1.msra.mxu0 0.0
    %1801 = vmatprep.subr.mxu0 0.0
    %1802 = vmatpush1.msra.mxu0 0.0
    %1803 = vmatprep.subr.mxu0 0.0
    %1804 = vmatpush1.msra.mxu0 0.0
    %1805 = vmatprep.subr.mxu0 0.0
    %1806 = vmatpush1.msra.mxu0 0.0
    %1807 = vmatprep.subr.mxu0 0.0
    %1808 = vmatpush1.msra.mxu0 0.0
    %1809 = vmatprep.subr.mxu0 0.0
    %1810 = vmatpush1.msra.mxu0 0.0
    %1811 = vmatprep.subr.mxu0 0.0
    %1812 = vmatpush1.msra.mxu0 0.0
    %1813 = vmatprep.subr.mxu0 0.0
    %1814 = vmatpush1.msra.mxu0 0.0
    %1815 = vmatprep.subr.mxu0 0.0
    %1816 = vmatpush1.msra.mxu0 0.0
    %1817 = vmatprep.subr.mxu0 0.0
    %1818 = vmatpush1.msra.mxu0 0.0
    %1819 = vmatprep.subr.mxu0 0.0
    %1820 = vmatpush1.msra.mxu0 0.0
    %1821 = vmatprep.subr.mxu0 0.0
    %1822 = vmatpush1.msra.mxu0 0.0
    %1823 = vmatprep.subr.mxu0 0.0
    %1824 = vmatpush1.msra.mxu0 0.0
    %1825 = vmatprep.subr.mxu0 0.0
    %1826 = vmatpush1.msra.mxu0 0.0
    %1827 = vmatprep.subr.mxu0 0.0
    %1828 = vmatpush1.msra.mxu0 0.0
    %1829 = vmatprep.subr.mxu0 0.0
    %1830 = vmatpush1.msra.mxu0 0.0
    %1831 = vmatprep.subr.mxu0 0.0
    %1832 = vmatpush1.msra.mxu0 0.0
    %1833 = vmatprep.subr.mxu0 0.0
    %1834 = vmatpush1.msra.mxu0 0.0
    %1835 = vmatprep.subr.mxu0 0.0
    %1836 = vmatpush1.msra.mxu0 0.0
    %1837 = vmatprep.subr.mxu0 0.0
    %1838 = vmatpush1.msra.mxu0 0.0
    %1839 = vmatprep.subr.mxu0 0.0
    %1840 = vmatpush1.msra.mxu0 0.0
    %1841 = vmatprep.mubr.f32.mxu0 0.0
    %1842 = vmatmul.mubr.f32.gmra.mrb[0].mxu0 %v1215
    %v1843 = vpop.f32.mrb[0].mxu0
    %v1844 = vadd.f32 0.0, %v1843
    %v1845 = vpop.f32.mrb[0].mxu0
    %1846 = vdwg.mxu0
    %1847 = vmatprep.subr.mxu0 0.0
    %1848 = vmatpush1.msra.mxu0 %v50
    %1849 = vmatprep.subr.mxu0 0.0
    %1850 = vmatpush1.msra.mxu0 %v51
    %1851 = vmatprep.subr.mxu0 0.0
    %1852 = vmatpush1.msra.mxu0 %v52
    %1853 = vmatprep.subr.mxu0 0.0
    %1854 = vmatpush1.msra.mxu0 %v53
    %1855 = vmatprep.subr.mxu0 0.0
    %1856 = vmatpush1.msra.mxu0 0.0
    %1857 = vmatprep.subr.mxu0 0.0
    %1858 = vmatpush1.msra.mxu0 0.0
    %1859 = vmatprep.subr.mxu0 0.0
    %1860 = vmatpush1.msra.mxu0 0.0
    %1861 = vmatprep.subr.mxu0 0.0
    %1862 = vmatpush1.msra.mxu0 0.0
    %1863 = vmatprep.subr.mxu0 0.0
    %1864 = vmatpush1.msra.mxu0 0.0
    %1865 = vmatprep.subr.mxu0 0.0
    %1866 = vmatpush1.msra.mxu0 0.0
    %1867 = vmatprep.subr.mxu0 0.0
    %1868 = vmatpush1.msra.mxu0 0.0
    %1869 = vmatprep.subr.mxu0 0.0
    %1870 = vmatpush1.msra.mxu0 0.0
    %1871 = vmatprep.subr.mxu0 0.0
    %1872 = vmatpush1.msra.mxu0 0.0
    %1873 = vmatprep.subr.mxu0 0.0
    %1874 = vmatpush1.msra.mxu0 0.0
    %1875 = vmatprep.subr.mxu0 0.0
    %1876 = vmatpush1.msra.mxu0 0.0
    %1877 = vmatprep.subr.mxu0 0.0
    %1878 = vmatpush1.msra.mxu0 0.0
    %1879 = vmatprep.subr.mxu0 0.0
    %1880 = vmatpush1.msra.mxu0 0.0
    %1881 = vmatprep.subr.mxu0 0.0
    %1882 = vmatpush1.msra.mxu0 0.0
    %1883 = vmatprep.subr.mxu0 0.0
    %1884 = vmatpush1.msra.mxu0 0.0
    %1885 = vmatprep.subr.mxu0 0.0
    %1886 = vmatpush1.msra.mxu0 0.0
    %1887 = vmatprep.subr.mxu0 0.0
    %1888 = vmatpush1.msra.mxu0 0.0
    %1889 = vmatprep.subr.mxu0 0.0
    %1890 = vmatpush1.msra.mxu0 0.0
    %1891 = vmatprep.subr.mxu0 0.0
    %1892 = vmatpush1.msra.mxu0 0.0
    %1893 = vmatprep.subr.mxu0 0.0
    %1894 = vmatpush1.msra.mxu0 0.0
    %1895 = vmatprep.subr.mxu0 0.0
    %1896 = vmatpush1.msra.mxu0 0.0
    %1897 = vmatprep.subr.mxu0 0.0
    %1898 = vmatpush1.msra.mxu0 0.0
    %1899 = vmatprep.subr.mxu0 0.0
    %1900 = vmatpush1.msra.mxu0 0.0
    %1901 = vmatprep.subr.mxu0 0.0
    %1902 = vmatpush1.msra.mxu0 0.0
    %1903 = vmatprep.subr.mxu0 0.0
    %1904 = vmatpush1.msra.mxu0 0.0
    %1905 = vmatprep.subr.mxu0 0.0
    %1906 = vmatpush1.msra.mxu0 0.0
    %1907 = vmatprep.subr.mxu0 0.0
    %1908 = vmatpush1.msra.mxu0 0.0
    %1909 = vmatprep.subr.mxu0 0.0
    %1910 = vmatpush1.msra.mxu0 0.0
    %1911 = vmatprep.mubr.f32.mxu0 0.0
    %1912 = vmatmul.mubr.f32.gmra.mrb[0].mxu0 %v1215
    %v1913 = vpop.f32.mrb[0].mxu0
    %v1914 = vadd.f32 0.0, %v1913
    %v1915 = vpop.f32.mrb[0].mxu0
    %1916 = vdwg.mxu0
    %1917 = vmatprep.subr.mxu0 0.0
    %1918 = vmatpush1.msra.mxu0 %v54
    %1919 = vmatprep.subr.mxu0 0.0
    %1920 = vmatpush1.msra.mxu0 %v55
    %1921 = vmatprep.subr.mxu0 0.0
    %1922 = vmatpush1.msra.mxu0 %v56
    %1923 = vmatprep.subr.mxu0 0.0
    %1924 = vmatpush1.msra.mxu0 %v57
    %1925 = vmatprep.subr.mxu0 0.0
    %1926 = vmatpush1.msra.mxu0 0.0
    %1927 = vmatprep.subr.mxu0 0.0
    %1928 = vmatpush1.msra.mxu0 0.0
    %1929 = vmatprep.subr.mxu0 0.0
    %1930 = vmatpush1.msra.mxu0 0.0
    %1931 = vmatprep.subr.mxu0 0.0
    %1932 = vmatpush1.msra.mxu0 0.0
    %1933 = vmatprep.subr.mxu0 0.0
    %1934 = vmatpush1.msra.mxu0 0.0
    %1935 = vmatprep.subr.mxu0 0.0
    %1936 = vmatpush1.msra.mxu0 0.0
    %1937 = vmatprep.subr.mxu0 0.0
    %1938 = vmatpush1.msra.mxu0 0.0
    %1939 = vmatprep.subr.mxu0 0.0
    %1940 = vmatpush1.msra.mxu0 0.0
    %1941 = vmatprep.subr.mxu0 0.0
    %1942 = vmatpush1.msra.mxu0 0.0
    %1943 = vmatprep.subr.mxu0 0.0
    %1944 = vmatpush1.msra.mxu0 0.0
    %1945 = vmatprep.subr.mxu0 0.0
    %1946 = vmatpush1.msra.mxu0 0.0
    %1947 = vmatprep.subr.mxu0 0.0
    %1948 = vmatpush1.msra.mxu0 0.0
    %1949 = vmatprep.subr.mxu0 0.0
    %1950 = vmatpush1.msra.mxu0 0.0
    %1951 = vmatprep.subr.mxu0 0.0
    %1952 = vmatpush1.msra.mxu0 0.0
    %1953 = vmatprep.subr.mxu0 0.0
    %1954 = vmatpush1.msra.mxu0 0.0
    %1955 = vmatprep.subr.mxu0 0.0
    %1956 = vmatpush1.msra.mxu0 0.0
    %1957 = vmatprep.subr.mxu0 0.0
    %1958 = vmatpush1.msra.mxu0 0.0
    %1959 = vmatprep.subr.mxu0 0.0
    %1960 = vmatpush1.msra.mxu0 0.0
    %1961 = vmatprep.subr.mxu0 0.0
    %1962 = vmatpush1.msra.mxu0 0.0
    %1963 = vmatprep.subr.mxu0 0.0
    %1964 = vmatpush1.msra.mxu0 0.0
    %1965 = vmatprep.subr.mxu0 0.0
    %1966 = vmatpush1.msra.mxu0 0.0
    %1967 = vmatprep.subr.mxu0 0.0
    %1968 = vmatpush1.msra.mxu0 0.0
    %1969 = vmatprep.subr.mxu0 0.0
    %1970 = vmatpush1.msra.mxu0 0.0
    %1971 = vmatprep.subr.mxu0 0.0
    %1972 = vmatpush1.msra.mxu0 0.0
    %1973 = vmatprep.subr.mxu0 0.0
    %1974 = vmatpush1.msra.mxu0 0.0
    %1975 = vmatprep.subr.mxu0 0.0
    %1976 = vmatpush1.msra.mxu0 0.0
    %1977 = vmatprep.subr.mxu0 0.0
    %1978 = vmatpush1.msra.mxu0 0.0
    %1979 = vmatprep.subr.mxu0 0.0
    %1980 = vmatpush1.msra.mxu0 0.0
    %1981 = vmatprep.mubr.f32.mxu0 0.0
    %1982 = vmatmul.mubr.f32.gmra.mrb[0].mxu0 %v1215
    %v1983 = vpop.f32.mrb[0].mxu0
    %v1984 = vadd.f32 0.0, %v1983
    %v1985 = vpop.f32.mrb[0].mxu0
    %1986 = vdwg.mxu0
    %1987 = vmatprep.subr.mxu0 0.0
    %1988 = vmatpush1.msra.mxu0 %v58
    %1989 = vmatprep.subr.mxu0 0.0
    %1990 = vmatpush1.msra.mxu0 %v59
    %1991 = vmatprep.subr.mxu0 0.0
    %1992 = vmatpush1.msra.mxu0 %v60
    %1993 = vmatprep.subr.mxu0 0.0
    %1994 = vmatpush1.msra.mxu0 %v61
    %1995 = vmatprep.subr.mxu0 0.0
    %1996 = vmatpush1.msra.mxu0 0.0
    %1997 = vmatprep.subr.mxu0 0.0
    %1998 = vmatpush1.msra.mxu0 0.0
    %1999 = vmatprep.subr.mxu0 0.0
    %2000 = vmatpush1.msra.mxu0 0.0
    %2001 = vmatprep.subr.mxu0 0.0
    %2002 = vmatpush1.msra.mxu0 0.0
    %2003 = vmatprep.subr.mxu0 0.0
    %2004 = vmatpush1.msra.mxu0 0.0
    %2005 = vmatprep.subr.mxu0 0.0
    %2006 = vmatpush1.msra.mxu0 0.0
    %2007 = vmatprep.subr.mxu0 0.0
    %2008 = vmatpush1.msra.mxu0 0.0
    %2009 = vmatprep.subr.mxu0 0.0
    %2010 = vmatpush1.msra.mxu0 0.0
    %2011 = vmatprep.subr.mxu0 0.0
    %2012 = vmatpush1.msra.mxu0 0.0
    %2013 = vmatprep.subr.mxu0 0.0
    %2014 = vmatpush1.msra.mxu0 0.0
    %2015 = vmatprep.subr.mxu0 0.0
    %2016 = vmatpush1.msra.mxu0 0.0
    %2017 = vmatprep.subr.mxu0 0.0
    %2018 = vmatpush1.msra.mxu0 0.0
    %2019 = vmatprep.subr.mxu0 0.0
    %2020 = vmatpush1.msra.mxu0 0.0
    %2021 = vmatprep.subr.mxu0 0.0
    %2022 = vmatpush1.msra.mxu0 0.0
    %2023 = vmatprep.subr.mxu0 0.0
    %2024 = vmatpush1.msra.mxu0 0.0
    %2025 = vmatprep.subr.mxu0 0.0
    %2026 = vmatpush1.msra.mxu0 0.0
    %2027 = vmatprep.subr.mxu0 0.0
    %2028 = vmatpush1.msra.mxu0 0.0
    %2029 = vmatprep.subr.mxu0 0.0
    %2030 = vmatpush1.msra.mxu0 0.0
    %2031 = vmatprep.subr.mxu0 0.0
    %2032 = vmatpush1.msra.mxu0 0.0
    %2033 = vmatprep.subr.mxu0 0.0
    %2034 = vmatpush1.msra.mxu0 0.0
    %2035 = vmatprep.subr.mxu0 0.0
    %2036 = vmatpush1.msra.mxu0 0.0
    %2037 = vmatprep.subr.mxu0 0.0
    %2038 = vmatpush1.msra.mxu0 0.0
    %2039 = vmatprep.subr.mxu0 0.0
    %2040 = vmatpush1.msra.mxu0 0.0
    %2041 = vmatprep.subr.mxu0 0.0
    %2042 = vmatpush1.msra.mxu0 0.0
    %2043 = vmatprep.subr.mxu0 0.0
    %2044 = vmatpush1.msra.mxu0 0.0
    %2045 = vmatprep.subr.mxu0 0.0
    %2046 = vmatpush1.msra.mxu0 0.0
    %2047 = vmatprep.subr.mxu0 0.0
    %2048 = vmatpush1.msra.mxu0 0.0
    %2049 = vmatprep.subr.mxu0 0.0
    %2050 = vmatpush1.msra.mxu0 0.0
    %2051 = vmatprep.mubr.f32.mxu0 0.0
    %2052 = vmatmul.mubr.f32.gmra.mrb[0].mxu0 %v1215
    %v2053 = vpop.f32.mrb[0].mxu0
    %v2054 = vadd.f32 0.0, %v2053
    %v2055 = vpop.f32.mrb[0].mxu0
    %2056 = vdwg.mxu0
    %v2058 = vsel %vm907, %v1284, 0
    %v2061 = vsel %vm907, %v1564, 0
    %2063 = vmatprep.subr.mxu0 0.0
    %2064 = vmatpush1.xpose.msra.mxu0 %v2061
    %2065 = vmatprep.subr.mxu0 0.0
    %2066 = vmatpush1.xpose.msra.mxu0 0.0
    %2067 = vmatprep.subr.mxu0 0.0
    %2068 = vmatpush1.xpose.msra.mxu0 0.0
    %2069 = vmatprep.subr.mxu0 0.0
    %2070 = vmatpush1.xpose.msra.mxu0 0.0
    %2071 = vmatprep.subr.mxu0 0.0
    %2072 = vmatpush1.xpose.msra.mxu0 0.0
    %2073 = vmatprep.subr.mxu0 0.0
    %2074 = vmatpush1.xpose.msra.mxu0 0.0
    %2075 = vmatprep.subr.mxu0 0.0
    %2076 = vmatpush1.xpose.msra.mxu0 0.0
    %2077 = vmatprep.subr.mxu0 0.0
    %2078 = vmatpush1.xpose.msra.mxu0 0.0
    %2079 = vmatprep.subr.mxu0 0.0
    %2080 = vmatpush1.xpose.msra.mxu0 0.0
    %2081 = vmatprep.subr.mxu0 0.0
    %2082 = vmatpush1.xpose.msra.mxu0 0.0
    %2083 = vmatprep.subr.mxu0 0.0
    %2084 = vmatpush1.xpose.msra.mxu0 0.0
    %2085 = vmatprep.subr.mxu0 0.0
    %2086 = vmatpush1.xpose.msra.mxu0 0.0
    %2087 = vmatprep.subr.mxu0 0.0
    %2088 = vmatpush1.xpose.msra.mxu0 0.0
    %2089 = vmatprep.subr.mxu0 0.0
    %2090 = vmatpush1.xpose.msra.mxu0 0.0
    %2091 = vmatprep.subr.mxu0 0.0
    %2092 = vmatpush1.xpose.msra.mxu0 0.0
    %2093 = vmatprep.subr.mxu0 0.0
    %2094 = vmatpush1.xpose.msra.mxu0 0.0
    %2095 = vmatprep.subr.mxu0 0.0
    %2096 = vmatpush1.xpose.msra.mxu0 0.0
    %2097 = vmatprep.subr.mxu0 0.0
    %2098 = vmatpush1.xpose.msra.mxu0 0.0
    %2099 = vmatprep.subr.mxu0 0.0
    %2100 = vmatpush1.xpose.msra.mxu0 0.0
    %2101 = vmatprep.subr.mxu0 0.0
    %2102 = vmatpush1.xpose.msra.mxu0 0.0
    %2103 = vmatprep.subr.mxu0 0.0
    %2104 = vmatpush1.xpose.msra.mxu0 0.0
    %2105 = vmatprep.subr.mxu0 0.0
    %2106 = vmatpush1.xpose.msra.mxu0 0.0
    %2107 = vmatprep.subr.mxu0 0.0
    %2108 = vmatpush1.xpose.msra.mxu0 0.0
    %2109 = vmatprep.subr.mxu0 0.0
    %2110 = vmatpush1.xpose.msra.mxu0 0.0
    %2111 = vmatprep.subr.mxu0 0.0
    %2112 = vmatpush1.xpose.msra.mxu0 0.0
    %2113 = vmatprep.subr.mxu0 0.0
    %2114 = vmatpush1.xpose.msra.mxu0 0.0
    %2115 = vmatprep.subr.mxu0 0.0
    %2116 = vmatpush1.xpose.msra.mxu0 0.0
    %2117 = vmatprep.subr.mxu0 0.0
    %2118 = vmatpush1.xpose.msra.mxu0 0.0
    %2119 = vmatprep.subr.mxu0 0.0
    %2120 = vmatpush1.xpose.msra.mxu0 0.0
    %2121 = vmatprep.subr.mxu0 0.0
    %2122 = vmatpush1.xpose.msra.mxu0 0.0
    %2123 = vmatprep.subr.mxu0 0.0
    %2124 = vmatpush1.xpose.msra.mxu0 0.0
    %2125 = vmatprep.subr.mxu0 0.0
    %2126 = vmatpush1.xpose.msra.mxu0 0.0
    %2127 = vmatprep.mubr.f32.mxu0 0.0
    %2128 = vmatmul.mubr.f32.gmra.mrb[0].mxu0 %v2058
    %v2129 = vpop.f32.mrb[0].mxu0
    %v2130 = vadd.f32 0.0, %v2129
    %v2131 = vpop.f32.mrb[0].mxu0
    %2132 = vdwg.mxu0
    %v2134 = vsel %vm907, %v1354, 0
    %v2137 = vsel %vm907, %v1634, 0
    %2139 = vmatprep.subr.mxu0 0.0
    %2140 = vmatpush1.xpose.msra.mxu0 %v2137
    %2141 = vmatprep.subr.mxu0 0.0
    %2142 = vmatpush1.xpose.msra.mxu0 0.0
    %2143 = vmatprep.subr.mxu0 0.0
    %2144 = vmatpush1.xpose.msra.mxu0 0.0
    %2145 = vmatprep.subr.mxu0 0.0
    %2146 = vmatpush1.xpose.msra.mxu0 0.0
    %2147 = vmatprep.subr.mxu0 0.0
    %2148 = vmatpush1.xpose.msra.mxu0 0.0
    %2149 = vmatprep.subr.mxu0 0.0
    %2150 = vmatpush1.xpose.msra.mxu0 0.0
    %2151 = vmatprep.subr.mxu0 0.0
    %2152 = vmatpush1.xpose.msra.mxu0 0.0
    %2153 = vmatprep.subr.mxu0 0.0
    %2154 = vmatpush1.xpose.msra.mxu0 0.0
    %2155 = vmatprep.subr.mxu0 0.0
    %2156 = vmatpush1.xpose.msra.mxu0 0.0
    %2157 = vmatprep.subr.mxu0 0.0
    %2158 = vmatpush1.xpose.msra.mxu0 0.0
    %2159 = vmatprep.subr.mxu0 0.0
    %2160 = vmatpush1.xpose.msra.mxu0 0.0
    %2161 = vmatprep.subr.mxu0 0.0
    %2162 = vmatpush1.xpose.msra.mxu0 0.0
    %2163 = vmatprep.subr.mxu0 0.0
    %2164 = vmatpush1.xpose.msra.mxu0 0.0
    %2165 = vmatprep.subr.mxu0 0.0
    %2166 = vmatpush1.xpose.msra.mxu0 0.0
    %2167 = vmatprep.subr.mxu0 0.0
    %2168 = vmatpush1.xpose.msra.mxu0 0.0
    %2169 = vmatprep.subr.mxu0 0.0
    %2170 = vmatpush1.xpose.msra.mxu0 0.0
    %2171 = vmatprep.subr.mxu0 0.0
    %2172 = vmatpush1.xpose.msra.mxu0 0.0
    %2173 = vmatprep.subr.mxu0 0.0
    %2174 = vmatpush1.xpose.msra.mxu0 0.0
    %2175 = vmatprep.subr.mxu0 0.0
    %2176 = vmatpush1.xpose.msra.mxu0 0.0
    %2177 = vmatprep.subr.mxu0 0.0
    %2178 = vmatpush1.xpose.msra.mxu0 0.0
    %2179 = vmatprep.subr.mxu0 0.0
    %2180 = vmatpush1.xpose.msra.mxu0 0.0
    %2181 = vmatprep.subr.mxu0 0.0
    %2182 = vmatpush1.xpose.msra.mxu0 0.0
    %2183 = vmatprep.subr.mxu0 0.0
    %2184 = vmatpush1.xpose.msra.mxu0 0.0
    %2185 = vmatprep.subr.mxu0 0.0
    %2186 = vmatpush1.xpose.msra.mxu0 0.0
    %2187 = vmatprep.subr.mxu0 0.0
    %2188 = vmatpush1.xpose.msra.mxu0 0.0
    %2189 = vmatprep.subr.mxu0 0.0
    %2190 = vmatpush1.xpose.msra.mxu0 0.0
    %2191 = vmatprep.subr.mxu0 0.0
    %2192 = vmatpush1.xpose.msra.mxu0 0.0
    %2193 = vmatprep.subr.mxu0 0.0
    %2194 = vmatpush1.xpose.msra.mxu0 0.0
    %2195 = vmatprep.subr.mxu0 0.0
    %2196 = vmatpush1.xpose.msra.mxu0 0.0
    %2197 = vmatprep.subr.mxu0 0.0
    %2198 = vmatpush1.xpose.msra.mxu0 0.0
    %2199 = vmatprep.subr.mxu0 0.0
    %2200 = vmatpush1.xpose.msra.mxu0 0.0
    %2201 = vmatprep.subr.mxu0 0.0
    %2202 = vmatpush1.xpose.msra.mxu0 0.0
    %2203 = vmatprep.mubr.f32.mxu0 0.0
    %2204 = vmatmul.mubr.f32.gmra.mrb[0].mxu0 %v2134
    %v2205 = vpop.f32.mrb[0].mxu0
    %v2206 = vadd.f32 0.0, %v2205
    %v2207 = vpop.f32.mrb[0].mxu0
    %2208 = vdwg.mxu0
    %v2210 = vsel %vm907, %v1424, 0
    %v2213 = vsel %vm907, %v1704, 0
    %2215 = vmatprep.subr.mxu0 0.0
    %2216 = vmatpush1.xpose.msra.mxu0 %v2213
    %2217 = vmatprep.subr.mxu0 0.0
    %2218 = vmatpush1.xpose.msra.mxu0 0.0
    %2219 = vmatprep.subr.mxu0 0.0
    %2220 = vmatpush1.xpose.msra.mxu0 0.0
    %2221 = vmatprep.subr.mxu0 0.0
    %2222 = vmatpush1.xpose.msra.mxu0 0.0
    %2223 = vmatprep.subr.mxu0 0.0
    %2224 = vmatpush1.xpose.msra.mxu0 0.0
    %2225 = vmatprep.subr.mxu0 0.0
    %2226 = vmatpush1.xpose.msra.mxu0 0.0
    %2227 = vmatprep.subr.mxu0 0.0
    %2228 = vmatpush1.xpose.msra.mxu0 0.0
    %2229 = vmatprep.subr.mxu0 0.0
    %2230 = vmatpush1.xpose.msra.mxu0 0.0
    %2231 = vmatprep.subr.mxu0 0.0
    %2232 = vmatpush1.xpose.msra.mxu0 0.0
    %2233 = vmatprep.subr.mxu0 0.0
    %2234 = vmatpush1.xpose.msra.mxu0 0.0
    %2235 = vmatprep.subr.mxu0 0.0
    %2236 = vmatpush1.xpose.msra.mxu0 0.0
    %2237 = vmatprep.subr.mxu0 0.0
    %2238 = vmatpush1.xpose.msra.mxu0 0.0
    %2239 = vmatprep.subr.mxu0 0.0
    %2240 = vmatpush1.xpose.msra.mxu0 0.0
    %2241 = vmatprep.subr.mxu0 0.0
    %2242 = vmatpush1.xpose.msra.mxu0 0.0
    %2243 = vmatprep.subr.mxu0 0.0
    %2244 = vmatpush1.xpose.msra.mxu0 0.0
    %2245 = vmatprep.subr.mxu0 0.0
    %2246 = vmatpush1.xpose.msra.mxu0 0.0
    %2247 = vmatprep.subr.mxu0 0.0
    %2248 = vmatpush1.xpose.msra.mxu0 0.0
    %2249 = vmatprep.subr.mxu0 0.0
    %2250 = vmatpush1.xpose.msra.mxu0 0.0
    %2251 = vmatprep.subr.mxu0 0.0
    %2252 = vmatpush1.xpose.msra.mxu0 0.0
    %2253 = vmatprep.subr.mxu0 0.0
    %2254 = vmatpush1.xpose.msra.mxu0 0.0
    %2255 = vmatprep.subr.mxu0 0.0
    %2256 = vmatpush1.xpose.msra.mxu0 0.0
    %2257 = vmatprep.subr.mxu0 0.0
    %2258 = vmatpush1.xpose.msra.mxu0 0.0
    %2259 = vmatprep.subr.mxu0 0.0
    %2260 = vmatpush1.xpose.msra.mxu0 0.0
    %2261 = vmatprep.subr.mxu0 0.0
    %2262 = vmatpush1.xpose.msra.mxu0 0.0
    %2263 = vmatprep.subr.mxu0 0.0
    %2264 = vmatpush1.xpose.msra.mxu0 0.0
    %2265 = vmatprep.subr.mxu0 0.0
    %2266 = vmatpush1.xpose.msra.mxu0 0.0
    %2267 = vmatprep.subr.mxu0 0.0
    %2268 = vmatpush1.xpose.msra.mxu0 0.0
    %2269 = vmatprep.subr.mxu0 0.0
    %2270 = vmatpush1.xpose.msra.mxu0 0.0
    %2271 = vmatprep.subr.mxu0 0.0
    %2272 = vmatpush1.xpose.msra.mxu0 0.0
    %2273 = vmatprep.subr.mxu0 0.0
    %2274 = vmatpush1.xpose.msra.mxu0 0.0
    %2275 = vmatprep.subr.mxu0 0.0
    %2276 = vmatpush1.xpose.msra.mxu0 0.0
    %2277 = vmatprep.subr.mxu0 0.0
    %2278 = vmatpush1.xpose.msra.mxu0 0.0
    %2279 = vmatprep.mubr.f32.mxu0 0.0
    %2280 = vmatmul.mubr.f32.gmra.mrb[0].mxu0 %v2210
    %v2281 = vpop.f32.mrb[0].mxu0
    %v2282 = vadd.f32 0.0, %v2281
    %v2283 = vpop.f32.mrb[0].mxu0
    %2284 = vdwg.mxu0
    %v2286 = vsel %vm907, %v1494, 0
    %v2289 = vsel %vm907, %v1774, 0
    %2291 = vmatprep.subr.mxu0 0.0
    %2292 = vmatpush1.xpose.msra.mxu0 %v2289
    %2293 = vmatprep.subr.mxu0 0.0
    %2294 = vmatpush1.xpose.msra.mxu0 0.0
    %2295 = vmatprep.subr.mxu0 0.0
    %2296 = vmatpush1.xpose.msra.mxu0 0.0
    %2297 = vmatprep.subr.mxu0 0.0
    %2298 = vmatpush1.xpose.msra.mxu0 0.0
    %2299 = vmatprep.subr.mxu0 0.0
    %2300 = vmatpush1.xpose.msra.mxu0 0.0
    %2301 = vmatprep.subr.mxu0 0.0
    %2302 = vmatpush1.xpose.msra.mxu0 0.0
    %2303 = vmatprep.subr.mxu0 0.0
    %2304 = vmatpush1.xpose.msra.mxu0 0.0
    %2305 = vmatprep.subr.mxu0 0.0
    %2306 = vmatpush1.xpose.msra.mxu0 0.0
    %2307 = vmatprep.subr.mxu0 0.0
    %2308 = vmatpush1.xpose.msra.mxu0 0.0
    %2309 = vmatprep.subr.mxu0 0.0
    %2310 = vmatpush1.xpose.msra.mxu0 0.0
    %2311 = vmatprep.subr.mxu0 0.0
    %2312 = vmatpush1.xpose.msra.mxu0 0.0
    %2313 = vmatprep.subr.mxu0 0.0
    %2314 = vmatpush1.xpose.msra.mxu0 0.0
    %2315 = vmatprep.subr.mxu0 0.0
    %2316 = vmatpush1.xpose.msra.mxu0 0.0
    %2317 = vmatprep.subr.mxu0 0.0
    %2318 = vmatpush1.xpose.msra.mxu0 0.0
    %2319 = vmatprep.subr.mxu0 0.0
    %2320 = vmatpush1.xpose.msra.mxu0 0.0
    %2321 = vmatprep.subr.mxu0 0.0
    %2322 = vmatpush1.xpose.msra.mxu0 0.0
    %2323 = vmatprep.subr.mxu0 0.0
    %2324 = vmatpush1.xpose.msra.mxu0 0.0
    %2325 = vmatprep.subr.mxu0 0.0
    %2326 = vmatpush1.xpose.msra.mxu0 0.0
    %2327 = vmatprep.subr.mxu0 0.0
    %2328 = vmatpush1.xpose.msra.mxu0 0.0
    %2329 = vmatprep.subr.mxu0 0.0
    %2330 = vmatpush1.xpose.msra.mxu0 0.0
    %2331 = vmatprep.subr.mxu0 0.0
    %2332 = vmatpush1.xpose.msra.mxu0 0.0
    %2333 = vmatprep.subr.mxu0 0.0
    %2334 = vmatpush1.xpose.msra.mxu0 0.0
    %2335 = vmatprep.subr.mxu0 0.0
    %2336 = vmatpush1.xpose.msra.mxu0 0.0
    %2337 = vmatprep.subr.mxu0 0.0
    %2338 = vmatpush1.xpose.msra.mxu0 0.0
    %2339 = vmatprep.subr.mxu0 0.0
    %2340 = vmatpush1.xpose.msra.mxu0 0.0
    %2341 = vmatprep.subr.mxu0 0.0
    %2342 = vmatpush1.xpose.msra.mxu0 0.0
    %2343 = vmatprep.subr.mxu0 0.0
    %2344 = vmatpush1.xpose.msra.mxu0 0.0
    %2345 = vmatprep.subr.mxu0 0.0
    %2346 = vmatpush1.xpose.msra.mxu0 0.0
    %2347 = vmatprep.subr.mxu0 0.0
    %2348 = vmatpush1.xpose.msra.mxu0 0.0
    %2349 = vmatprep.subr.mxu0 0.0
    %2350 = vmatpush1.xpose.msra.mxu0 0.0
    %2351 = vmatprep.subr.mxu0 0.0
    %2352 = vmatpush1.xpose.msra.mxu0 0.0
    %2353 = vmatprep.subr.mxu0 0.0
    %2354 = vmatpush1.xpose.msra.mxu0 0.0
    %2355 = vmatprep.mubr.f32.mxu0 0.0
    %2356 = vmatmul.mubr.f32.gmra.mrb[0].mxu0 %v2286
    %v2357 = vpop.f32.mrb[0].mxu0
    %v2358 = vadd.f32 0.0, %v2357
    %v2359 = vpop.f32.mrb[0].mxu0
    %2360 = vdwg.mxu0
    %v2361 = vlaneseq
    %v2362 = vshrl.u32 %v2361, 7
    %v2363 = vlaneseq
    %v2364 = vand.u32 %v2363, 127
    %vm2365 = vcmp.le.s32.totalorder %v2364, %v2362
    %v2366 = vsel %vm2365, 0.0, -1e+30
    %v2367 = vadd.f32 %v981, %v2366
    %v2368 = vadd.f32 %v1057, %v2366
    %v2369 = vadd.f32 %v1133, %v2366
    %v2370 = vadd.f32 %v1209, %v2366
    %v2371 = vadd.f32 %v2130, %v2366
    %v2372 = vadd.f32 %v2206, %v2366
    %v2373 = vadd.f32 %v2282, %v2366
    %v2374 = vadd.f32 %v2358, %v2366
    %v2375 = vsel %vm907, %v2367, -inf
    %2376 = vmax.xlane.f32.xlu0 %v2375
    %v2377 = vpop.xlane.xlu0 %2376
    %v2378 = vsel %vm907, %v2368, -inf
    %2379 = vmax.xlane.f32.xlu0 %v2378
    %v2380 = vpop.xlane.xlu0 %2379
    %v2381 = vsel %vm907, %v2369, -inf
    %2382 = vmax.xlane.f32.xlu0 %v2381
    %v2383 = vpop.xlane.xlu0 %2382
    %v2384 = vsel %vm907, %v2370, -inf
    %2385 = vmax.xlane.f32.xlu0 %v2384
    %v2386 = vpop.xlane.xlu0 %2385
    %v2387 = vsel %vm907, %v2371, -inf
    %2388 = vmax.xlane.f32.xlu0 %v2387
    %v2389 = vpop.xlane.xlu0 %2388
    %v2390 = vsel %vm907, %v2372, -inf
    %2391 = vmax.xlane.f32.xlu0 %v2390
    %v2392 = vpop.xlane.xlu0 %2391
    %v2393 = vsel %vm907, %v2373, -inf
    %2394 = vmax.xlane.f32.xlu0 %v2393
    %v2395 = vpop.xlane.xlu0 %2394
    %v2396 = vsel %vm907, %v2374, -inf
    %2397 = vmax.xlane.f32.xlu0 %v2396
    %v2398 = vpop.xlane.xlu0 %2397
    %v2399 = vsub.f32 %v2367, %v2377
    %v2400 = vsub.f32 %v2368, %v2380
    %v2401 = vsub.f32 %v2369, %v2383
    %v2402 = vsub.f32 %v2370, %v2386
    %v2403 = vsub.f32 %v2371, %v2389
    %v2404 = vsub.f32 %v2372, %v2392
    %v2405 = vsub.f32 %v2373, %v2395
    %v2406 = vsub.f32 %v2374, %v2398
    %v2407 = vmul.f32 %v2399, 1.442695
    %v2408 = vpow.pop %v2407
    %v2409 = vmul.f32 %v2400, 1.442695
    %v2410 = vpow.pop %v2409
    %v2411 = vmul.f32 %v2401, 1.442695
    %v2412 = vpow.pop %v2411
    %v2413 = vmul.f32 %v2402, 1.442695
    %v2414 = vpow.pop %v2413
    %v2415 = vmul.f32 %v2403, 1.442695
    %v2416 = vpow.pop %v2415
    %v2417 = vmul.f32 %v2404, 1.442695
    %v2418 = vpow.pop %v2417
    %v2419 = vmul.f32 %v2405, 1.442695
    %v2420 = vpow.pop %v2419
    %v2421 = vmul.f32 %v2406, 1.442695
    %v2422 = vpow.pop %v2421
    %v2423 = vsel %vm907, %v2408, 0.0
    %2424 = vadd.xlane.f32.xlu0 %v2423
    %v2425 = vpop.xlane.xlu0 %2424
    %v2426 = vsel %vm907, %v2410, 0.0
    %2427 = vadd.xlane.f32.xlu0 %v2426
    %v2428 = vpop.xlane.xlu0 %2427
    %v2429 = vsel %vm907, %v2412, 0.0
    %2430 = vadd.xlane.f32.xlu0 %v2429
    %v2431 = vpop.xlane.xlu0 %2430
    %v2432 = vsel %vm907, %v2414, 0.0
    %2433 = vadd.xlane.f32.xlu0 %v2432
    %v2434 = vpop.xlane.xlu0 %2433
    %v2435 = vsel %vm907, %v2416, 0.0
    %2436 = vadd.xlane.f32.xlu0 %v2435
    %v2437 = vpop.xlane.xlu0 %2436
    %v2438 = vsel %vm907, %v2418, 0.0
    %2439 = vadd.xlane.f32.xlu0 %v2438
    %v2440 = vpop.xlane.xlu0 %2439
    %v2441 = vsel %vm907, %v2420, 0.0
    %2442 = vadd.xlane.f32.xlu0 %v2441
    %v2443 = vpop.xlane.xlu0 %2442
    %v2444 = vsel %vm907, %v2422, 0.0
    %2445 = vadd.xlane.f32.xlu0 %v2444
    %v2446 = vpop.xlane.xlu0 %2445
    %v2447 = vrcp.pop %v2425
    %v2448 = vmul.f32 %v2408, %v2447
    %v2449 = vrcp.pop %v2428
    %v2450 = vmul.f32 %v2410, %v2449
    %v2451 = vrcp.pop %v2431
    %v2452 = vmul.f32 %v2412, %v2451
    %v2453 = vrcp.pop %v2434
    %v2454 = vmul.f32 %v2414, %v2453
    %v2455 = vrcp.pop %v2437
    %v2456 = vmul.f32 %v2416, %v2455
    %v2457 = vrcp.pop %v2440
    %v2458 = vmul.f32 %v2418, %v2457
    %v2459 = vrcp.pop %v2443
    %v2460 = vmul.f32 %v2420, %v2459
    %v2461 = vrcp.pop %v2446
    %v2462 = vmul.f32 %v2422, %v2461
    %v2464 = vsel %vm907, %v2448, 0
    %2466 = vmatprep.subr.mxu0 0.0
    %2467 = vmatpush1.msra.mxu0 %v694
    %2468 = vmatprep.subr.mxu0 0.0
    %2469 = vmatpush1.msra.mxu0 0.0
    %2470 = vmatprep.subr.mxu0 0.0
    %2471 = vmatpush1.msra.mxu0 0.0
    %2472 = vmatprep.subr.mxu0 0.0
    %2473 = vmatpush1.msra.mxu0 0.0
    %2474 = vmatprep.subr.mxu0 0.0
    %2475 = vmatpush1.msra.mxu0 0.0
    %2476 = vmatprep.subr.mxu0 0.0
    %2477 = vmatpush1.msra.mxu0 0.0
    %2478 = vmatprep.subr.mxu0 0.0
    %2479 = vmatpush1.msra.mxu0 0.0
    %2480 = vmatprep.subr.mxu0 0.0
    %2481 = vmatpush1.msra.mxu0 0.0
    %2482 = vmatprep.subr.mxu0 0.0
    %2483 = vmatpush1.msra.mxu0 0.0
    %2484 = vmatprep.subr.mxu0 0.0
    %2485 = vmatpush1.msra.mxu0 0.0
    %2486 = vmatprep.subr.mxu0 0.0
    %2487 = vmatpush1.msra.mxu0 0.0
    %2488 = vmatprep.subr.mxu0 0.0
    %2489 = vmatpush1.msra.mxu0 0.0
    %2490 = vmatprep.subr.mxu0 0.0
    %2491 = vmatpush1.msra.mxu0 0.0
    %2492 = vmatprep.subr.mxu0 0.0
    %2493 = vmatpush1.msra.mxu0 0.0
    %2494 = vmatprep.subr.mxu0 0.0
    %2495 = vmatpush1.msra.mxu0 0.0
    %2496 = vmatprep.subr.mxu0 0.0
    %2497 = vmatpush1.msra.mxu0 0.0
    %2498 = vmatprep.subr.mxu0 0.0
    %2499 = vmatpush1.msra.mxu0 0.0
    %2500 = vmatprep.subr.mxu0 0.0
    %2501 = vmatpush1.msra.mxu0 0.0
    %2502 = vmatprep.subr.mxu0 0.0
    %2503 = vmatpush1.msra.mxu0 0.0
    %2504 = vmatprep.subr.mxu0 0.0
    %2505 = vmatpush1.msra.mxu0 0.0
    %2506 = vmatprep.subr.mxu0 0.0
    %2507 = vmatpush1.msra.mxu0 0.0
    %2508 = vmatprep.subr.mxu0 0.0
    %2509 = vmatpush1.msra.mxu0 0.0
    %2510 = vmatprep.subr.mxu0 0.0
    %2511 = vmatpush1.msra.mxu0 0.0
    %2512 = vmatprep.subr.mxu0 0.0
    %2513 = vmatpush1.msra.mxu0 0.0
    %2514 = vmatprep.subr.mxu0 0.0
    %2515 = vmatpush1.msra.mxu0 0.0
    %2516 = vmatprep.subr.mxu0 0.0
    %2517 = vmatpush1.msra.mxu0 0.0
    %2518 = vmatprep.subr.mxu0 0.0
    %2519 = vmatpush1.msra.mxu0 0.0
    %2520 = vmatprep.subr.mxu0 0.0
    %2521 = vmatpush1.msra.mxu0 0.0
    %2522 = vmatprep.subr.mxu0 0.0
    %2523 = vmatpush1.msra.mxu0 0.0
    %2524 = vmatprep.subr.mxu0 0.0
    %2525 = vmatpush1.msra.mxu0 0.0
    %2526 = vmatprep.subr.mxu0 0.0
    %2527 = vmatpush1.msra.mxu0 0.0
    %2528 = vmatprep.subr.mxu0 0.0
    %2529 = vmatpush1.msra.mxu0 0.0
    %2530 = vmatprep.mubr.f32.mxu0 0.0
    %2531 = vmatmul.mubr.f32.gmra.mrb[0].mxu0 %v2464
    %v2532 = vpop.f32.mrb[0].mxu0
    %v2533 = vadd.f32 0.0, %v2532
    %v2534 = vpop.f32.mrb[0].mxu0
    %2535 = vdwg.mxu0
    %v2537 = vsel %vm907, %v2450, 0
    %2539 = vmatprep.subr.mxu0 0.0
    %2540 = vmatpush1.msra.mxu0 %v764
    %2541 = vmatprep.subr.mxu0 0.0
    %2542 = vmatpush1.msra.mxu0 0.0
    %2543 = vmatprep.subr.mxu0 0.0
    %2544 = vmatpush1.msra.mxu0 0.0
    %2545 = vmatprep.subr.mxu0 0.0
    %2546 = vmatpush1.msra.mxu0 0.0
    %2547 = vmatprep.subr.mxu0 0.0
    %2548 = vmatpush1.msra.mxu0 0.0
    %2549 = vmatprep.subr.mxu0 0.0
    %2550 = vmatpush1.msra.mxu0 0.0
    %2551 = vmatprep.subr.mxu0 0.0
    %2552 = vmatpush1.msra.mxu0 0.0
    %2553 = vmatprep.subr.mxu0 0.0
    %2554 = vmatpush1.msra.mxu0 0.0
    %2555 = vmatprep.subr.mxu0 0.0
    %2556 = vmatpush1.msra.mxu0 0.0
    %2557 = vmatprep.subr.mxu0 0.0
    %2558 = vmatpush1.msra.mxu0 0.0
    %2559 = vmatprep.subr.mxu0 0.0
    %2560 = vmatpush1.msra.mxu0 0.0
    %2561 = vmatprep.subr.mxu0 0.0
    %2562 = vmatpush1.msra.mxu0 0.0
    %2563 = vmatprep.subr.mxu0 0.0
    %2564 = vmatpush1.msra.mxu0 0.0
    %2565 = vmatprep.subr.mxu0 0.0
    %2566 = vmatpush1.msra.mxu0 0.0
    %2567 = vmatprep.subr.mxu0 0.0
    %2568 = vmatpush1.msra.mxu0 0.0
    %2569 = vmatprep.subr.mxu0 0.0
    %2570 = vmatpush1.msra.mxu0 0.0
    %2571 = vmatprep.subr.mxu0 0.0
    %2572 = vmatpush1.msra.mxu0 0.0
    %2573 = vmatprep.subr.mxu0 0.0
    %2574 = vmatpush1.msra.mxu0 0.0
    %2575 = vmatprep.subr.mxu0 0.0
    %2576 = vmatpush1.msra.mxu0 0.0
    %2577 = vmatprep.subr.mxu0 0.0
    %2578 = vmatpush1.msra.mxu0 0.0
    %2579 = vmatprep.subr.mxu0 0.0
    %2580 = vmatpush1.msra.mxu0 0.0
    %2581 = vmatprep.subr.mxu0 0.0
    %2582 = vmatpush1.msra.mxu0 0.0
    %2583 = vmatprep.subr.mxu0 0.0
    %2584 = vmatpush1.msra.mxu0 0.0
    %2585 = vmatprep.subr.mxu0 0.0
    %2586 = vmatpush1.msra.mxu0 0.0
    %2587 = vmatprep.subr.mxu0 0.0
    %2588 = vmatpush1.msra.mxu0 0.0
    %2589 = vmatprep.subr.mxu0 0.0
    %2590 = vmatpush1.msra.mxu0 0.0
    %2591 = vmatprep.subr.mxu0 0.0
    %2592 = vmatpush1.msra.mxu0 0.0
    %2593 = vmatprep.subr.mxu0 0.0
    %2594 = vmatpush1.msra.mxu0 0.0
    %2595 = vmatprep.subr.mxu0 0.0
    %2596 = vmatpush1.msra.mxu0 0.0
    %2597 = vmatprep.subr.mxu0 0.0
    %2598 = vmatpush1.msra.mxu0 0.0
    %2599 = vmatprep.subr.mxu0 0.0
    %2600 = vmatpush1.msra.mxu0 0.0
    %2601 = vmatprep.subr.mxu0 0.0
    %2602 = vmatpush1.msra.mxu0 0.0
    %2603 = vmatprep.mubr.f32.mxu0 0.0
    %2604 = vmatmul.mubr.f32.gmra.mrb[0].mxu0 %v2537
    %v2605 = vpop.f32.mrb[0].mxu0
    %v2606 = vadd.f32 0.0, %v2605
    %v2607 = vpop.f32.mrb[0].mxu0
    %2608 = vdwg.mxu0
    %v2610 = vsel %vm907, %v2452, 0
    %2612 = vmatprep.subr.mxu0 0.0
    %2613 = vmatpush1.msra.mxu0 %v834
    %2614 = vmatprep.subr.mxu0 0.0
    %2615 = vmatpush1.msra.mxu0 0.0
    %2616 = vmatprep.subr.mxu0 0.0
    %2617 = vmatpush1.msra.mxu0 0.0
    %2618 = vmatprep.subr.mxu0 0.0
    %2619 = vmatpush1.msra.mxu0 0.0
    %2620 = vmatprep.subr.mxu0 0.0
    %2621 = vmatpush1.msra.mxu0 0.0
    %2622 = vmatprep.subr.mxu0 0.0
    %2623 = vmatpush1.msra.mxu0 0.0
    %2624 = vmatprep.subr.mxu0 0.0
    %2625 = vmatpush1.msra.mxu0 0.0
    %2626 = vmatprep.subr.mxu0 0.0
    %2627 = vmatpush1.msra.mxu0 0.0
    %2628 = vmatprep.subr.mxu0 0.0
    %2629 = vmatpush1.msra.mxu0 0.0
    %2630 = vmatprep.subr.mxu0 0.0
    %2631 = vmatpush1.msra.mxu0 0.0
    %2632 = vmatprep.subr.mxu0 0.0
    %2633 = vmatpush1.msra.mxu0 0.0
    %2634 = vmatprep.subr.mxu0 0.0
    %2635 = vmatpush1.msra.mxu0 0.0
    %2636 = vmatprep.subr.mxu0 0.0
    %2637 = vmatpush1.msra.mxu0 0.0
    %2638 = vmatprep.subr.mxu0 0.0
    %2639 = vmatpush1.msra.mxu0 0.0
    %2640 = vmatprep.subr.mxu0 0.0
    %2641 = vmatpush1.msra.mxu0 0.0
    %2642 = vmatprep.subr.mxu0 0.0
    %2643 = vmatpush1.msra.mxu0 0.0
    %2644 = vmatprep.subr.mxu0 0.0
    %2645 = vmatpush1.msra.mxu0 0.0
    %2646 = vmatprep.subr.mxu0 0.0
    %2647 = vmatpush1.msra.mxu0 0.0
    %2648 = vmatprep.subr.mxu0 0.0
    %2649 = vmatpush1.msra.mxu0 0.0
    %2650 = vmatprep.subr.mxu0 0.0
    %2651 = vmatpush1.msra.mxu0 0.0
    %2652 = vmatprep.subr.mxu0 0.0
    %2653 = vmatpush1.msra.mxu0 0.0
    %2654 = vmatprep.subr.mxu0 0.0
    %2655 = vmatpush1.msra.mxu0 0.0
    %2656 = vmatprep.subr.mxu0 0.0
    %2657 = vmatpush1.msra.mxu0 0.0
    %2658 = vmatprep.subr.mxu0 0.0
    %2659 = vmatpush1.msra.mxu0 0.0
    %2660 = vmatprep.subr.mxu0 0.0
    %2661 = vmatpush1.msra.mxu0 0.0
    %2662 = vmatprep.subr.mxu0 0.0
    %2663 = vmatpush1.msra.mxu0 0.0
    %2664 = vmatprep.subr.mxu0 0.0
    %2665 = vmatpush1.msra.mxu0 0.0
    %2666 = vmatprep.subr.mxu0 0.0
    %2667 = vmatpush1.msra.mxu0 0.0
    %2668 = vmatprep.subr.mxu0 0.0
    %2669 = vmatpush1.msra.mxu0 0.0
    %2670 = vmatprep.subr.mxu0 0.0
    %2671 = vmatpush1.msra.mxu0 0.0
    %2672 = vmatprep.subr.mxu0 0.0
    %2673 = vmatpush1.msra.mxu0 0.0
    %2674 = vmatprep.subr.mxu0 0.0
    %2675 = vmatpush1.msra.mxu0 0.0
    %2676 = vmatprep.mubr.f32.mxu0 0.0
    %2677 = vmatmul.mubr.f32.gmra.mrb[0].mxu0 %v2610
    %v2678 = vpop.f32.mrb[0].mxu0
    %v2679 = vadd.f32 0.0, %v2678
    %v2680 = vpop.f32.mrb[0].mxu0
    %2681 = vdwg.mxu0
    %v2683 = vsel %vm907, %v2454, 0
    %2685 = vmatprep.subr.mxu0 0.0
    %2686 = vmatpush1.msra.mxu0 %v904
    %2687 = vmatprep.subr.mxu0 0.0
    %2688 = vmatpush1.msra.mxu0 0.0
    %2689 = vmatprep.subr.mxu0 0.0
    %2690 = vmatpush1.msra.mxu0 0.0
    %2691 = vmatprep.subr.mxu0 0.0
    %2692 = vmatpush1.msra.mxu0 0.0
    %2693 = vmatprep.subr.mxu0 0.0
    %2694 = vmatpush1.msra.mxu0 0.0
    %2695 = vmatprep.subr.mxu0 0.0
    %2696 = vmatpush1.msra.mxu0 0.0
    %2697 = vmatprep.subr.mxu0 0.0
    %2698 = vmatpush1.msra.mxu0 0.0
    %2699 = vmatprep.subr.mxu0 0.0
    %2700 = vmatpush1.msra.mxu0 0.0
    %2701 = vmatprep.subr.mxu0 0.0
    %2702 = vmatpush1.msra.mxu0 0.0
    %2703 = vmatprep.subr.mxu0 0.0
    %2704 = vmatpush1.msra.mxu0 0.0
    %2705 = vmatprep.subr.mxu0 0.0
    %2706 = vmatpush1.msra.mxu0 0.0
    %2707 = vmatprep.subr.mxu0 0.0
    %2708 = vmatpush1.msra.mxu0 0.0
    %2709 = vmatprep.subr.mxu0 0.0
    %2710 = vmatpush1.msra.mxu0 0.0
    %2711 = vmatprep.subr.mxu0 0.0
    %2712 = vmatpush1.msra.mxu0 0.0
    %2713 = vmatprep.subr.mxu0 0.0
    %2714 = vmatpush1.msra.mxu0 0.0
    %2715 = vmatprep.subr.mxu0 0.0
    %2716 = vmatpush1.msra.mxu0 0.0
    %2717 = vmatprep.subr.mxu0 0.0
    %2718 = vmatpush1.msra.mxu0 0.0
    %2719 = vmatprep.subr.mxu0 0.0
    %2720 = vmatpush1.msra.mxu0 0.0
    %2721 = vmatprep.subr.mxu0 0.0
    %2722 = vmatpush1.msra.mxu0 0.0
    %2723 = vmatprep.subr.mxu0 0.0
    %2724 = vmatpush1.msra.mxu0 0.0
    %2725 = vmatprep.subr.mxu0 0.0
    %2726 = vmatpush1.msra.mxu0 0.0
    %2727 = vmatprep.subr.mxu0 0.0
    %2728 = vmatpush1.msra.mxu0 0.0
    %2729 = vmatprep.subr.mxu0 0.0
    %2730 = vmatpush1.msra.mxu0 0.0
    %2731 = vmatprep.subr.mxu0 0.0
    %2732 = vmatpush1.msra.mxu0 0.0
    %2733 = vmatprep.subr.mxu0 0.0
    %2734 = vmatpush1.msra.mxu0 0.0
    %2735 = vmatprep.subr.mxu0 0.0
    %2736 = vmatpush1.msra.mxu0 0.0
    %2737 = vmatprep.subr.mxu0 0.0
    %2738 = vmatpush1.msra.mxu0 0.0
    %2739 = vmatprep.subr.mxu0 0.0
    %2740 = vmatpush1.msra.mxu0 0.0
    %2741 = vmatprep.subr.mxu0 0.0
    %2742 = vmatpush1.msra.mxu0 0.0
    %2743 = vmatprep.subr.mxu0 0.0
    %2744 = vmatpush1.msra.mxu0 0.0
    %2745 = vmatprep.subr.mxu0 0.0
    %2746 = vmatpush1.msra.mxu0 0.0
    %2747 = vmatprep.subr.mxu0 0.0
    %2748 = vmatpush1.msra.mxu0 0.0
    %2749 = vmatprep.mubr.f32.mxu0 0.0
    %2750 = vmatmul.mubr.f32.gmra.mrb[0].mxu0 %v2683
    %v2751 = vpop.f32.mrb[0].mxu0
    %v2752 = vadd.f32 0.0, %v2751
    %v2753 = vpop.f32.mrb[0].mxu0
    %2754 = vdwg.mxu0
    %v2756 = vsel %vm907, %v2456, 0
    %2758 = vmatprep.subr.mxu0 0.0
    %2759 = vmatpush1.msra.mxu0 %v1844
    %2760 = vmatprep.subr.mxu0 0.0
    %2761 = vmatpush1.msra.mxu0 0.0
    %2762 = vmatprep.subr.mxu0 0.0
    %2763 = vmatpush1.msra.mxu0 0.0
    %2764 = vmatprep.subr.mxu0 0.0
    %2765 = vmatpush1.msra.mxu0 0.0
    %2766 = vmatprep.subr.mxu0 0.0
    %2767 = vmatpush1.msra.mxu0 0.0
    %2768 = vmatprep.subr.mxu0 0.0
    %2769 = vmatpush1.msra.mxu0 0.0
    %2770 = vmatprep.subr.mxu0 0.0
    %2771 = vmatpush1.msra.mxu0 0.0
    %2772 = vmatprep.subr.mxu0 0.0
    %2773 = vmatpush1.msra.mxu0 0.0
    %2774 = vmatprep.subr.mxu0 0.0
    %2775 = vmatpush1.msra.mxu0 0.0
    %2776 = vmatprep.subr.mxu0 0.0
    %2777 = vmatpush1.msra.mxu0 0.0
    %2778 = vmatprep.subr.mxu0 0.0
    %2779 = vmatpush1.msra.mxu0 0.0
    %2780 = vmatprep.subr.mxu0 0.0
    %2781 = vmatpush1.msra.mxu0 0.0
    %2782 = vmatprep.subr.mxu0 0.0
    %2783 = vmatpush1.msra.mxu0 0.0
    %2784 = vmatprep.subr.mxu0 0.0
    %2785 = vmatpush1.msra.mxu0 0.0
    %2786 = vmatprep.subr.mxu0 0.0
    %2787 = vmatpush1.msra.mxu0 0.0
    %2788 = vmatprep.subr.mxu0 0.0
    %2789 = vmatpush1.msra.mxu0 0.0
    %2790 = vmatprep.subr.mxu0 0.0
    %2791 = vmatpush1.msra.mxu0 0.0
    %2792 = vmatprep.subr.mxu0 0.0
    %2793 = vmatpush1.msra.mxu0 0.0
    %2794 = vmatprep.subr.mxu0 0.0
    %2795 = vmatpush1.msra.mxu0 0.0
    %2796 = vmatprep.subr.mxu0 0.0
    %2797 = vmatpush1.msra.mxu0 0.0
    %2798 = vmatprep.subr.mxu0 0.0
    %2799 = vmatpush1.msra.mxu0 0.0
    %2800 = vmatprep.subr.mxu0 0.0
    %2801 = vmatpush1.msra.mxu0 0.0
    %2802 = vmatprep.subr.mxu0 0.0
    %2803 = vmatpush1.msra.mxu0 0.0
    %2804 = vmatprep.subr.mxu0 0.0
    %2805 = vmatpush1.msra.mxu0 0.0
    %2806 = vmatprep.subr.mxu0 0.0
    %2807 = vmatpush1.msra.mxu0 0.0
    %2808 = vmatprep.subr.mxu0 0.0
    %2809 = vmatpush1.msra.mxu0 0.0
    %2810 = vmatprep.subr.mxu0 0.0
    %2811 = vmatpush1.msra.mxu0 0.0
    %2812 = vmatprep.subr.mxu0 0.0
    %2813 = vmatpush1.msra.mxu0 0.0
    %2814 = vmatprep.subr.mxu0 0.0
    %2815 = vmatpush1.msra.mxu0 0.0
    %2816 = vmatprep.subr.mxu0 0.0
    %2817 = vmatpush1.msra.mxu0 0.0
    %2818 = vmatprep.subr.mxu0 0.0
    %2819 = vmatpush1.msra.mxu0 0.0
    %2820 = vmatprep.subr.mxu0 0.0
    %2821 = vmatpush1.msra.mxu0 0.0
    %2822 = vmatprep.mubr.f32.mxu0 0.0
    %2823 = vmatmul.mubr.f32.gmra.mrb[0].mxu0 %v2756
    %v2824 = vpop.f32.mrb[0].mxu0
    %v2825 = vadd.f32 0.0, %v2824
    %v2826 = vpop.f32.mrb[0].mxu0
    %2827 = vdwg.mxu0
    %v2829 = vsel %vm907, %v2458, 0
    %2831 = vmatprep.subr.mxu0 0.0
    %2832 = vmatpush1.msra.mxu0 %v1914
    %2833 = vmatprep.subr.mxu0 0.0
    %2834 = vmatpush1.msra.mxu0 0.0
    %2835 = vmatprep.subr.mxu0 0.0
    %2836 = vmatpush1.msra.mxu0 0.0
    %2837 = vmatprep.subr.mxu0 0.0
    %2838 = vmatpush1.msra.mxu0 0.0
    %2839 = vmatprep.subr.mxu0 0.0
    %2840 = vmatpush1.msra.mxu0 0.0
    %2841 = vmatprep.subr.mxu0 0.0
    %2842 = vmatpush1.msra.mxu0 0.0
    %2843 = vmatprep.subr.mxu0 0.0
    %2844 = vmatpush1.msra.mxu0 0.0
    %2845 = vmatprep.subr.mxu0 0.0
    %2846 = vmatpush1.msra.mxu0 0.0
    %2847 = vmatprep.subr.mxu0 0.0
    %2848 = vmatpush1.msra.mxu0 0.0
    %2849 = vmatprep.subr.mxu0 0.0
    %2850 = vmatpush1.msra.mxu0 0.0
    %2851 = vmatprep.subr.mxu0 0.0
    %2852 = vmatpush1.msra.mxu0 0.0
    %2853 = vmatprep.subr.mxu0 0.0
    %2854 = vmatpush1.msra.mxu0 0.0
    %2855 = vmatprep.subr.mxu0 0.0
    %2856 = vmatpush1.msra.mxu0 0.0
    %2857 = vmatprep.subr.mxu0 0.0
    %2858 = vmatpush1.msra.mxu0 0.0
    %2859 = vmatprep.subr.mxu0 0.0
    %2860 = vmatpush1.msra.mxu0 0.0
    %2861 = vmatprep.subr.mxu0 0.0
    %2862 = vmatpush1.msra.mxu0 0.0
    %2863 = vmatprep.subr.mxu0 0.0
    %2864 = vmatpush1.msra.mxu0 0.0
    %2865 = vmatprep.subr.mxu0 0.0
    %2866 = vmatpush1.msra.mxu0 0.0
    %2867 = vmatprep.subr.mxu0 0.0
    %2868 = vmatpush1.msra.mxu0 0.0
    %2869 = vmatprep.subr.mxu0 0.0
    %2870 = vmatpush1.msra.mxu0 0.0
    %2871 = vmatprep.subr.mxu0 0.0
    %2872 = vmatpush1.msra.mxu0 0.0
    %2873 = vmatprep.subr.mxu0 0.0
    %2874 = vmatpush1.msra.mxu0 0.0
    %2875 = vmatprep.subr.mxu0 0.0
    %2876 = vmatpush1.msra.mxu0 0.0
    %2877 = vmatprep.subr.mxu0 0.0
    %2878 = vmatpush1.msra.mxu0 0.0
    %2879 = vmatprep.subr.mxu0 0.0
    %2880 = vmatpush1.msra.mxu0 0.0
    %2881 = vmatprep.subr.mxu0 0.0
    %2882 = vmatpush1.msra.mxu0 0.0
    %2883 = vmatprep.subr.mxu0 0.0
    %2884 = vmatpush1.msra.mxu0 0.0
    %2885 = vmatprep.subr.mxu0 0.0
    %2886 = vmatpush1.msra.mxu0 0.0
    %2887 = vmatprep.subr.mxu0 0.0
    %2888 = vmatpush1.msra.mxu0 0.0
    %2889 = vmatprep.subr.mxu0 0.0
    %2890 = vmatpush1.msra.mxu0 0.0
    %2891 = vmatprep.subr.mxu0 0.0
    %2892 = vmatpush1.msra.mxu0 0.0
    %2893 = vmatprep.subr.mxu0 0.0
    %2894 = vmatpush1.msra.mxu0 0.0
    %2895 = vmatprep.mubr.f32.mxu0 0.0
    %2896 = vmatmul.mubr.f32.gmra.mrb[0].mxu0 %v2829
    %v2897 = vpop.f32.mrb[0].mxu0
    %v2898 = vadd.f32 0.0, %v2897
    %v2899 = vpop.f32.mrb[0].mxu0
    %2900 = vdwg.mxu0
    %v2902 = vsel %vm907, %v2460, 0
    %2904 = vmatprep.subr.mxu0 0.0
    %2905 = vmatpush1.msra.mxu0 %v1984
    %2906 = vmatprep.subr.mxu0 0.0
    %2907 = vmatpush1.msra.mxu0 0.0
    %2908 = vmatprep.subr.mxu0 0.0
    %2909 = vmatpush1.msra.mxu0 0.0
    %2910 = vmatprep.subr.mxu0 0.0
    %2911 = vmatpush1.msra.mxu0 0.0
    %2912 = vmatprep.subr.mxu0 0.0
    %2913 = vmatpush1.msra.mxu0 0.0
    %2914 = vmatprep.subr.mxu0 0.0
    %2915 = vmatpush1.msra.mxu0 0.0
    %2916 = vmatprep.subr.mxu0 0.0
    %2917 = vmatpush1.msra.mxu0 0.0
    %2918 = vmatprep.subr.mxu0 0.0
    %2919 = vmatpush1.msra.mxu0 0.0
    %2920 = vmatprep.subr.mxu0 0.0
    %2921 = vmatpush1.msra.mxu0 0.0
    %2922 = vmatprep.subr.mxu0 0.0
    %2923 = vmatpush1.msra.mxu0 0.0
    %2924 = vmatprep.subr.mxu0 0.0
    %2925 = vmatpush1.msra.mxu0 0.0
    %2926 = vmatprep.subr.mxu0 0.0
    %2927 = vmatpush1.msra.mxu0 0.0
    %2928 = vmatprep.subr.mxu0 0.0
    %2929 = vmatpush1.msra.mxu0 0.0
    %2930 = vmatprep.subr.mxu0 0.0
    %2931 = vmatpush1.msra.mxu0 0.0
    %2932 = vmatprep.subr.mxu0 0.0
    %2933 = vmatpush1.msra.mxu0 0.0
    %2934 = vmatprep.subr.mxu0 0.0
    %2935 = vmatpush1.msra.mxu0 0.0
    %2936 = vmatprep.subr.mxu0 0.0
    %2937 = vmatpush1.msra.mxu0 0.0
    %2938 = vmatprep.subr.mxu0 0.0
    %2939 = vmatpush1.msra.mxu0 0.0
    %2940 = vmatprep.subr.mxu0 0.0
    %2941 = vmatpush1.msra.mxu0 0.0
    %2942 = vmatprep.subr.mxu0 0.0
    %2943 = vmatpush1.msra.mxu0 0.0
    %2944 = vmatprep.subr.mxu0 0.0
    %2945 = vmatpush1.msra.mxu0 0.0
    %2946 = vmatprep.subr.mxu0 0.0
    %2947 = vmatpush1.msra.mxu0 0.0
    %2948 = vmatprep.subr.mxu0 0.0
    %2949 = vmatpush1.msra.mxu0 0.0
    %2950 = vmatprep.subr.mxu0 0.0
    %2951 = vmatpush1.msra.mxu0 0.0
    %2952 = vmatprep.subr.mxu0 0.0
    %2953 = vmatpush1.msra.mxu0 0.0
    %2954 = vmatprep.subr.mxu0 0.0
    %2955 = vmatpush1.msra.mxu0 0.0
    %2956 = vmatprep.subr.mxu0 0.0
    %2957 = vmatpush1.msra.mxu0 0.0
    %2958 = vmatprep.subr.mxu0 0.0
    %2959 = vmatpush1.msra.mxu0 0.0
    %2960 = vmatprep.subr.mxu0 0.0
    %2961 = vmatpush1.msra.mxu0 0.0
    %2962 = vmatprep.subr.mxu0 0.0
    %2963 = vmatpush1.msra.mxu0 0.0
    %2964 = vmatprep.subr.mxu0 0.0
    %2965 = vmatpush1.msra.mxu0 0.0
    %2966 = vmatprep.subr.mxu0 0.0
    %2967 = vmatpush1.msra.mxu0 0.0
    %2968 = vmatprep.mubr.f32.mxu0 0.0
    %2969 = vmatmul.mubr.f32.gmra.mrb[0].mxu0 %v2902
    %v2970 = vpop.f32.mrb[0].mxu0
    %v2971 = vadd.f32 0.0, %v2970
    %v2972 = vpop.f32.mrb[0].mxu0
    %2973 = vdwg.mxu0
    %v2975 = vsel %vm907, %v2462, 0
    %2977 = vmatprep.subr.mxu0 0.0
    %2978 = vmatpush1.msra.mxu0 %v2054
    %2979 = vmatprep.subr.mxu0 0.0
    %2980 = vmatpush1.msra.mxu0 0.0
    %2981 = vmatprep.subr.mxu0 0.0
    %2982 = vmatpush1.msra.mxu0 0.0
    %2983 = vmatprep.subr.mxu0 0.0
    %2984 = vmatpush1.msra.mxu0 0.0
    %2985 = vmatprep.subr.mxu0 0.0
    %2986 = vmatpush1.msra.mxu0 0.0
    %2987 = vmatprep.subr.mxu0 0.0
    %2988 = vmatpush1.msra.mxu0 0.0
    %2989 = vmatprep.subr.mxu0 0.0
    %2990 = vmatpush1.msra.mxu0 0.0
    %2991 = vmatprep.subr.mxu0 0.0
    %2992 = vmatpush1.msra.mxu0 0.0
    %2993 = vmatprep.subr.mxu0 0.0
    %2994 = vmatpush1.msra.mxu0 0.0
    %2995 = vmatprep.subr.mxu0 0.0
    %2996 = vmatpush1.msra.mxu0 0.0
    %2997 = vmatprep.subr.mxu0 0.0
    %2998 = vmatpush1.msra.mxu0 0.0
    %2999 = vmatprep.subr.mxu0 0.0
    %3000 = vmatpush1.msra.mxu0 0.0
    %3001 = vmatprep.subr.mxu0 0.0
    %3002 = vmatpush1.msra.mxu0 0.0
    %3003 = vmatprep.subr.mxu0 0.0
    %3004 = vmatpush1.msra.mxu0 0.0
    %3005 = vmatprep.subr.mxu0 0.0
    %3006 = vmatpush1.msra.mxu0 0.0
    %3007 = vmatprep.subr.mxu0 0.0
    %3008 = vmatpush1.msra.mxu0 0.0
    %3009 = vmatprep.subr.mxu0 0.0
    %3010 = vmatpush1.msra.mxu0 0.0
    %3011 = vmatprep.subr.mxu0 0.0
    %3012 = vmatpush1.msra.mxu0 0.0
    %3013 = vmatprep.subr.mxu0 0.0
    %3014 = vmatpush1.msra.mxu0 0.0
    %3015 = vmatprep.subr.mxu0 0.0
    %3016 = vmatpush1.msra.mxu0 0.0
    %3017 = vmatprep.subr.mxu0 0.0
    %3018 = vmatpush1.msra.mxu0 0.0
    %3019 = vmatprep.subr.mxu0 0.0
    %3020 = vmatpush1.msra.mxu0 0.0
    %3021 = vmatprep.subr.mxu0 0.0
    %3022 = vmatpush1.msra.mxu0 0.0
    %3023 = vmatprep.subr.mxu0 0.0
    %3024 = vmatpush1.msra.mxu0 0.0
    %3025 = vmatprep.subr.mxu0 0.0
    %3026 = vmatpush1.msra.mxu0 0.0
    %3027 = vmatprep.subr.mxu0 0.0
    %3028 = vmatpush1.msra.mxu0 0.0
    %3029 = vmatprep.subr.mxu0 0.0
    %3030 = vmatpush1.msra.mxu0 0.0
    %3031 = vmatprep.subr.mxu0 0.0
    %3032 = vmatpush1.msra.mxu0 0.0
    %3033 = vmatprep.subr.mxu0 0.0
    %3034 = vmatpush1.msra.mxu0 0.0
    %3035 = vmatprep.subr.mxu0 0.0
    %3036 = vmatpush1.msra.mxu0 0.0
    %3037 = vmatprep.subr.mxu0 0.0
    %3038 = vmatpush1.msra.mxu0 0.0
    %3039 = vmatprep.subr.mxu0 0.0
    %3040 = vmatpush1.msra.mxu0 0.0
    %3041 = vmatprep.mubr.f32.mxu0 0.0
    %3042 = vmatmul.mubr.f32.gmra.mrb[0].mxu0 %v2975
    %v3043 = vpop.f32.mrb[0].mxu0
    %v3044 = vadd.f32 0.0, %v3043
    %v3045 = vpop.f32.mrb[0].mxu0
    %3046 = vdwg.mxu0
    %3047 = vst.msk [vmem:[#allocation2] sm:$0xff] %vm907, %v2533
    %3049 = vrot.lane.b32.xlu0 %v2606, 8
    %v3050 = vpop.permute.xlu0 %3049
    %vm3052 = vcmask 130112
    %3053 = vst.msk [vmem:[#allocation2] sm:$0xff] %vm3052, %v3050
    %3055 = vrot.lane.b32.xlu0 %v2679, 16
    %v3056 = vpop.permute.xlu0 %3055
    %vm3058 = vcmask 195712
    %3059 = vst.msk [vmem:[#allocation2] sm:$0xff] %vm3058, %v3056
    %3061 = vrot.lane.b32.xlu0 %v2752, 24
    %v3062 = vpop.permute.xlu0 %3061
    %vm3064 = vcmask 261312
    %3065 = vst.msk [vmem:[#allocation2] sm:$0xff] %vm3064, %v3062
    %3066 = vst.msk [vmem:[#allocation2 + $0x8] sm:$0xff] %vm907, %v2825
    %3068 = vrot.lane.b32.xlu0 %v2898, 8
    %v3069 = vpop.permute.xlu0 %3068
    %3071 = vst.msk [vmem:[#allocation2 + $0x8] sm:$0xff] %vm3052, %v3069
    %3073 = vrot.lane.b32.xlu0 %v2971, 16
    %v3074 = vpop.permute.xlu0 %3073
    %3076 = vst.msk [vmem:[#allocation2 + $0x8] sm:$0xff] %vm3058, %v3074
    %3078 = vrot.lane.b32.xlu0 %v3044, 24
    %v3079 = vpop.permute.xlu0 %3078
    %3081 = vst.msk [vmem:[#allocation2 + $0x8] sm:$0xff] %vm3064, %v3079
    // Predicated region
    $region10: #{multi_head_attention.1} parent=1 // pred_check
      _
    $region11: #{multi_head_attention.1} parent=1 // pred_check_branch
      %3083 = sbr.rel (0) target = $region13
    $region12: #{multi_head_attention.1} parent=1 // pred_region
      %s3085 = ssub.s32 256, 256
      %3086 = vsyncadd [#allocation3], %s3085
      %s3087 = sshll.u32 [#allocation2], 4
      %s3088 = int_to_ptr.vmem [resolvable:$true] %s3087
      %3093 = dma.vmem_to_hbm [thread:$0]  %s3088, 256, %s2, [#allocation3], 128, 128, 8
    $region13: #{multi_head_attention.1} parent=1 // pred_fallthru
      _
    // Predicated region
    $region14: #{multi_head_attention.1} parent=1 // pred_check
      _
    $region15: #{multi_head_attention.1} parent=1 // pred_check_branch
      %3095 = sbr.rel (0) target = $region17
    $region16: #{multi_head_attention.1} parent=1 // pred_region
      %3096 = dma.done [#allocation3], 256
    $region17: #{multi_head_attention.1} parent=1 // pred_fallthru
      _
    %3097 = vsyncpa [#allocation3], 1

</llo_original>
